<compile_context>
chip_gen: v7x
topology: tpu7x:2x2x1
jax: 0.10.0
libtpu: 0.0.40
codegen_flags: <defaults>
</compile_context>

<pallas_src>
import functools

import numpy as np
import jax
import jax.numpy as jnp
from jax import lax
from jax.experimental import pallas as pl
from jax.experimental.pallas import tpu as pltpu

_MS_SSIM_WEIGHTS = [0.0448, 0.2856, 0.3001, 0.2363, 0.1333]


# ----------------------------------------------------------------------------
# Parameter / helper construction (plain JAX / numpy glue)
# ----------------------------------------------------------------------------
def _round_up(a, m):
    return ((a + m - 1) // m) * m


def _fspecial_gauss_1d(size, sigma):
    """1-D Gaussian window (numpy float32, mirrors the torch construction)."""
    coords = np.arange(size, dtype=np.float32) - (size // 2)
    g = np.exp(-(coords ** 2) / np.float32(2.0 * sigma ** 2))
    return (g / g.sum()).astype(np.float32)


def _toeplitz_right_np(g, w):
    """(W, Wout) matrix T with (X @ T)[:, j] = sum_k g[k] * X[:, j+k] (valid conv)."""
    win = g.shape[0]
    wout = w - win + 1
    t = np.zeros((w, wout), np.float32)
    for j in range(wout):
        t[j:j + win, j] = g
    return t


def _avg_pool2(x, pad_h, pad_w):
    """torch F.avg_pool2d(x, kernel_size=2, padding=(pad_h, pad_w)), count_include_pad=True."""
    x = jnp.pad(x, ((0, 0), (0, 0), (pad_h, pad_h), (pad_w, pad_w)))
    s = lax.reduce_window(x, 0.0, lax.add, (1, 1, 2, 2), (1, 1, 2, 2), "VALID")
    return s * 0.25


# ----------------------------------------------------------------------------
# Generation-aware sizing helpers (guarded: fall back to conservative defaults)
# ----------------------------------------------------------------------------
def _tpu_vmem_limit_bytes():
    cap = 64 * 1024 * 1024
    try:
        info = pltpu.get_tpu_info()
        for name in ("vmem_capacity_bytes", "vmem_bytes", "vmem_size_bytes"):
            v = getattr(info, name, None)
            if v:
                cap = int(v)
                break
    except Exception:
        pass
    # Keep the scoped limit at half the physical VMEM (32 MiB on v7x, 64 MiB on v5e/v6e).
    return int(min(cap // 2, 64 * 1024 * 1024))


def _tpu_num_tensorcores():
    try:
        info = pltpu.get_tpu_info()
        for name in ("num_cores", "core_count", "num_tensorcores", "tensorcore_count"):
            v = getattr(info, name, None)
            if v:
                return max(1, int(v))
    except Exception:
        pass
    try:
        kind = jax.devices()[0].device_kind.lower()
        if "v3" in kind or "v4" in kind or "7" in kind:
            return 2
    except Exception:
        pass
    return 1


def _choose_batch(nc, hp, w, hout, wout, vmem_limit, num_cores):
    """Pick the per-grid-step image batch B from the VMEM budget."""
    per_img = 4 * (
        2 * 2 * hp * w        # x, y input blocks, double-buffered
        + 3 * hp * w          # x*x, y*y, x*y staged values
        + 5 * hp * wout       # horizontally filtered slabs
        + 8 * hout * wout     # vertical accumulators + ssim / cs maps
    )
    fixed = 4 * (2 * w * wout) + (2 << 20)   # tw (double-buffered) + slack
    budget = max(vmem_limit - fixed, per_img)
    b = int(max(1, min(nc, budget // per_img, 64)))
    # Only force >=num_cores grid steps on multi-TensorCore chips (v7x); on
    # 1-TC chips the grid is a sequential loop and B should stay maximal.
    if num_cores >= 2 and nc >= 2:
        b = min(b, -(-nc // num_cores))
    return max(1, b)


# ----------------------------------------------------------------------------
# Pallas kernel: SSIM / CS values for one scale, B images per grid step
# ----------------------------------------------------------------------------
def _ssim_scale_kernel(x_ref, y_ref, tw_ref, out_ref, *,
                       g, hout, wout, c1, c2, cs_only, inv_count):
    b, hp, w = x_ref.shape
    win = len(g)

    xv = x_ref[...].reshape(b * hp, w)     # free reshape: hp is a multiple of 8
    yv = y_ref[...].reshape(b * hp, w)
    tw = tw_ref[...]                       # (W, Wout)

    # Horizontal Gaussian pass: one dense, fully batched matmul per quantity
    # (M = B*Hp rows), fed directly from the input refs / register values.
    def hconv(m2):
        r = jnp.dot(m2, tw, preferred_element_type=jnp.float32)
        return r.reshape(b, hp, wout)

    hz = (hconv(xv), hconv(yv), hconv(xv * xv), hconv(yv * yv), hconv(xv * yv))

    # Vertical Gaussian pass: O(win) shift-and-accumulate along the sublane axis.
    # Padded rows (>= original H) are never read because k + hout - 1 <= H - 1.
    acc = [g[0] * a[:, 0:hout, :] for a in hz]
    for k in range(1, win):
        gk = g[k]
        acc = [s + gk * a[:, k:k + hout, :] for s, a in zip(acc, hz)]
    mu1, mu2, sxx, syy, sxy = acc

    mu1_sq = mu1 * mu1
    mu2_sq = mu2 * mu2
    mu1_mu2 = mu1 * mu2
    sigma1_sq = sxx - mu1_sq
    sigma2_sq = syy - mu2_sq
    sigma12 = sxy - mu1_mu2

    cs_map = (2.0 * sigma12 + c2) / (sigma1_sq + sigma2_sq + c2)
    if cs_only:
        ssim_map = cs_map
    else:
        ssim_map = (2.0 * mu1_mu2 + c1) / (mu1_sq + mu2_sq + c1) * cs_map

    # Batched spatial mean -> one (B,) lane row per grid step.
    vals = jnp.sum(jnp.sum(ssim_map, axis=-1), axis=-1) * inv_count   # (B,)
    out_ref[...] = vals.reshape(1, 1, b)


def _ssim_per_channel_pallas(x, y, g_np, data_range, cs_only):
    """x, y: (N, C, H, W) -> (N, C) ssim (or cs) values."""
    n, c, h, w = x.shape
    nc = n * c
    win = int(g_np.shape[0])
    hout = h - win + 1
    wout = w - win + 1
    hp = _round_up(h, 8)

    tw = jnp.asarray(_toeplitz_right_np(g_np, w))          # (W, Wout)

    vmem_limit = _tpu_vmem_limit_bytes()
    num_cores = _tpu_num_tensorcores()
    B = _choose_batch(nc, hp, w, hout, wout, vmem_limit, num_cores)
    num_blocks = -(-nc // B)
    nc_pad = num_blocks * B

    xr = x.reshape(nc, h, w).astype(jnp.float32)
    yr = y.reshape(nc, h, w).astype(jnp.float32)
    xr = jnp.pad(xr, ((0, nc_pad - nc), (0, hp - h), (0, 0)))
    yr = jnp.pad(yr, ((0, nc_pad - nc), (0, hp - h), (0, 0)))

    kernel = functools.partial(
        _ssim_scale_kernel,
        g=tuple(float(v) for v in g_np),
        hout=hout, wout=wout,
        c1=float((0.01 * data_range) ** 2),
        c2=float((0.03 * data_range) ** 2),
        cs_only=bool(cs_only),
        inv_count=1.0 / float(hout * wout))

    out = pl.pallas_call(
        kernel,
        out_shape=jax.ShapeDtypeStruct((num_blocks, 1, B), jnp.float32),
        grid=(num_blocks,),
        in_specs=[
            pl.BlockSpec((B, hp, w), lambda i: (i, 0, 0)),
            pl.BlockSpec((B, hp, w), lambda i: (i, 0, 0)),
            pl.BlockSpec((w, wout), lambda i: (0, 0)),
        ],
        out_specs=pl.BlockSpec((1, 1, B), lambda i: (i, 0, 0)),
        compiler_params=pltpu.CompilerParams(
            dimension_semantics=("parallel",),
            vmem_limit_bytes=vmem_limit),
    )(xr, yr, tw)

    # Padded batch images (all zeros) produce cs=1 garbage; drop them here.
    vals = out.reshape(nc_pad)[:nc]
    return vals.reshape(n, c)


# ----------------------------------------------------------------------------
# MS-SSIM (mirrors ams_ssim / MS_SSIM.forward)
# ----------------------------------------------------------------------------
def ms_ssim_pallas(x, y, win_size=11, win_sigma=1.5, data_range=255.0,
                   size_average=True, weights=None):
    if x.ndim != 4:
        raise ValueError("Input images must be 4-d tensors.")
    if x.shape != y.shape:
        raise ValueError("Input images must have the same dimensions.")
    if win_size % 2 != 1:
        raise ValueError("Window size must be odd.")
    if weights is None:
        weights = jnp.asarray(_MS_SSIM_WEIGHTS, dtype=jnp.float32)
    else:
        weights = jnp.asarray(weights, dtype=jnp.float32)
    scales = weights.shape[0]

    vals = []
    for i in range(scales):
        if i > 0:
            pad_h = x.shape[2] % 2
            pad_w = x.shape[3] % 2
            x = _avg_pool2(x, pad_h, pad_w)
            y = _avg_pool2(y, pad_h, pad_w)
        smaller_side = min(x.shape[-2:])
        ws = win_size if smaller_side > win_size else smaller_side
        g_np = _fspecial_gauss_1d(ws, win_sigma)
        vals.append(
            _ssim_per_channel_pallas(x, y, g_np, data_range, cs_only=(i < scales - 1)))

    mcs_and_ssim = jnp.stack(vals, axis=-1)                                 # (N, C, S)
    msssim = jnp.prod(jnp.maximum(mcs_and_ssim, 0.0) ** weights, axis=-1)   # (N, C)
    if size_average:
        return jnp.mean(msssim)
    return jnp.mean(msssim, axis=-1)


class MS_SSIM:
    """JAX/Pallas mirror of the PyTorch MS_SSIM module."""

    def __init__(self, win_size=11, win_sigma=1.5, data_range=255.0,
                 size_average=True, channel=3, weights=None):
        # NOTE: the PyTorch module registers a `win` buffer of shape
        # (channel, 1, 1, win_size), but ams_ssim rebuilds the window per scale,
        # so only its generating params matter.  The PyTorch default
        # data_range=None would raise inside _ssim_per_channel; we default 255.
        self.win_size = win_size
        self.win_sigma = win_sigma
        self.data_range = data_range
        self.size_average = size_average
        if weights is None:
            weights = _MS_SSIM_WEIGHTS
        self.weights = jnp.asarray(weights, dtype=jnp.float32)

    def __call__(self, x, y):
        return ms_ssim_pallas(x, y, win_size=self.win_size, win_sigma=self.win_sigma,
                              data_range=self.data_range,
                              size_average=self.size_average, weights=self.weights)


# ----------------------------------------------------------------------------
# Pure-JAX reference (mirrors the PyTorch code op-for-op) for verification
# ----------------------------------------------------------------------------
def _ref_gaussian_filter(x, g):
    c = x.shape[1]
    win = g.shape[0]
    kw = jnp.broadcast_to(g.reshape(1, 1, 1, win), (c, 1, 1, win))
    out = lax.conv_general_dilated(x, kw, (1, 1), "VALID",
                                   dimension_numbers=("NCHW", "OIHW", "NCHW"),
                                   feature_group_count=c)
    kh = jnp.broadcast_to(g.reshape(1, 1, win, 1), (c, 1, win, 1))
    out = lax.conv_general_dilated(out, kh, (1, 1), "VALID",
                                   dimension_numbers=("NCHW", "OIHW", "NCHW"),
                                   feature_group_count=c)
    return out


def _ref_ssim_per_channel(x, y, g, data_range, cs_only):
    c1 = (0.01 * data_range) ** 2
    c2 = (0.03 * data_range) ** 2
    mu1 = _ref_gaussian_filter(x, g)
    mu2 = _ref_gaussian_filter(y, g)
    mu1_sq, mu2_sq, mu1_mu2 = mu1 * mu1, mu2 * mu2, mu1 * mu2
    sigma1_sq = _ref_gaussian_filter(x * x, g) - mu1_sq
    sigma2_sq = _ref_gaussian_filter(y * y, g) - mu2_sq
    sigma12 = _ref_gaussian_filter(x * y, g) - mu1_mu2
    cs_map = (2 * sigma12 + c2) / (sigma1_sq + sigma2_sq + c2)
    ssim_map = cs_map if cs_only else (2 * mu1_mu2 + c1) / (mu1_sq + mu2_sq + c1) * cs_map
    return jnp.mean(ssim_map, axis=(-2, -1))


def _ref_ms_ssim(x, y, win_size=11, win_sigma=1.5, data_range=255.0,
                 size_average=True, weights=None):
    if weights is None:
        weights = jnp.asarray(_MS_SSIM_WEIGHTS, dtype=jnp.float32)
    scales = weights.shape[0]
    vals = []
    for i in range(scales):
        if i > 0:
            pad_h, pad_w = x.shape[2] % 2, x.shape[3] % 2
            x = _avg_pool2(x, pad_h, pad_w)
            y = _avg_pool2(y, pad_h, pad_w)
        smaller = min(x.shape[-2:])
        ws = win_size if smaller > win_size else smaller
        g = jnp.asarray(_fspecial_gauss_1d(ws, win_sigma))
        vals.append(_ref_ssim_per_channel(x, y, g, data_range, cs_only=(i < scales - 1)))
    mcs = jnp.stack(vals, axis=-1)
    ms = jnp.prod(jnp.maximum(mcs, 0.0) ** weights, axis=-1)
    return jnp.mean(ms) if size_average else jnp.mean(ms, axis=-1)


# ----------------------------------------------------------------------------
if __name__ == "__main__":
    key = jax.random.PRNGKey(0)
    kx, kn = jax.random.split(key)
    # Small NCHW images; 33 (odd H) exercises the avg_pool padding branch.
    N, C, H, W = 2, 3, 33, 32
    x = jax.random.uniform(kx, (N, C, H, W), dtype=jnp.float32, minval=0.0, maxval=255.0)
    y = jnp.clip(x + 10.0 * jax.random.normal(kn, (N, C, H, W), dtype=jnp.float32),
                 0.0, 255.0)

    model = MS_SSIM(win_size=11, win_sigma=1.5, data_range=255.0,
                    size_average=True, channel=C)

    out = model(x, y)
    out = jax.block_until_ready(out)

    ref = jax.block_until_ready(_ref_ms_ssim(x, y, data_range=255.0))
    np.testing.assert_allclose(np.asarray(out), np.asarray(ref), rtol=1e-4, atol=1e-4)
    assert np.isfinite(np.asarray(out)).all()

    print("KERNEL_OK")
</pallas_src>

<mosaic_0001>
module attributes {stable_mosaic.version = 11 : i64} {
  func.func @_ssim_scale_kernel(%arg0: i32, %arg1: memref<6x40x32xf32, #tpu.memory_space<vmem>>, %arg2: memref<6x40x32xf32, #tpu.memory_space<vmem>>, %arg3: memref<32x22xf32, #tpu.memory_space<vmem>>, %arg4: memref<1x1x6xf32, #tpu.memory_space<vmem>>) attributes {dimension_semantics = [#tpu.dimension_semantics<parallel>], iteration_bounds = array<i64: 1>, scalar_prefetch = 0 : i64, scratch_operands = 0 : i64, tpu.core_type = #tpu.core_type<tc>, window_params = [{transform_indices = @transform_0, window_bounds = array<i64: 6, 40, 32>}, {transform_indices = @transform_1, window_bounds = array<i64: 6, 40, 32>}, {pipeline_mode = #tpu.pipeline_mode<synchronous>, transform_indices = @transform_2, window_bounds = array<i64: 32, 22>}, {transform_indices = @transform_3, window_bounds = array<i64: 1, 1, 6>}]} {
    %c0 = arith.constant 0 : index
    %c0_0 = arith.constant 0 : index
    %c0_1 = arith.constant 0 : index
    %0 = vector.load %arg1[%c0, %c0_0, %c0_1] : memref<6x40x32xf32, #tpu.memory_space<vmem>>, vector<6x40x32xf32>
    %1 = vector.shape_cast %0 : vector<6x40x32xf32> to vector<240x32xf32>
    %c0_2 = arith.constant 0 : index
    %c0_3 = arith.constant 0 : index
    %c0_4 = arith.constant 0 : index
    %2 = vector.load %arg2[%c0_2, %c0_3, %c0_4] : memref<6x40x32xf32, #tpu.memory_space<vmem>>, vector<6x40x32xf32>
    %3 = vector.shape_cast %2 : vector<6x40x32xf32> to vector<240x32xf32>
    %c0_5 = arith.constant 0 : index
    %c0_6 = arith.constant 0 : index
    %4 = vector.load %arg3[%c0_5, %c0_6] : memref<32x22xf32, #tpu.memory_space<vmem>>, vector<32x22xf32>
    %cst = arith.constant dense<0.000000e+00> : vector<240x22xf32>
    %5 = tpu.matmul %1, %4, %cst {dimension_numbers = #tpu.dot_dimension_numbers<[1], [0], [0], [1], [0, 0, 1, 1], [], []>} : vector<240x32xf32>, vector<32x22xf32>, vector<240x22xf32> -> vector<240x22xf32>
    %6 = vector.shape_cast %5 : vector<240x22xf32> to vector<6x40x22xf32>
    %cst_7 = arith.constant dense<0.000000e+00> : vector<240x22xf32>
    %7 = tpu.matmul %3, %4, %cst_7 {dimension_numbers = #tpu.dot_dimension_numbers<[1], [0], [0], [1], [0, 0, 1, 1], [], []>} : vector<240x32xf32>, vector<32x22xf32>, vector<240x22xf32> -> vector<240x22xf32>
    %8 = vector.shape_cast %7 : vector<240x22xf32> to vector<6x40x22xf32>
    %9 = arith.mulf %1, %1 : vector<240x32xf32>
    %cst_8 = arith.constant dense<0.000000e+00> : vector<240x22xf32>
    %10 = tpu.matmul %9, %4, %cst_8 {dimension_numbers = #tpu.dot_dimension_numbers<[1], [0], [0], [1], [0, 0, 1, 1], [], []>} : vector<240x32xf32>, vector<32x22xf32>, vector<240x22xf32> -> vector<240x22xf32>
    %11 = vector.shape_cast %10 : vector<240x22xf32> to vector<6x40x22xf32>
    %12 = arith.mulf %3, %3 : vector<240x32xf32>
    %cst_9 = arith.constant dense<0.000000e+00> : vector<240x22xf32>
    %13 = tpu.matmul %12, %4, %cst_9 {dimension_numbers = #tpu.dot_dimension_numbers<[1], [0], [0], [1], [0, 0, 1, 1], [], []>} : vector<240x32xf32>, vector<32x22xf32>, vector<240x22xf32> -> vector<240x22xf32>
    %14 = vector.shape_cast %13 : vector<240x22xf32> to vector<6x40x22xf32>
    %15 = arith.mulf %1, %3 : vector<240x32xf32>
    %cst_10 = arith.constant dense<0.000000e+00> : vector<240x22xf32>
    %16 = tpu.matmul %15, %4, %cst_10 {dimension_numbers = #tpu.dot_dimension_numbers<[1], [0], [0], [1], [0, 0, 1, 1], [], []>} : vector<240x32xf32>, vector<32x22xf32>, vector<240x22xf32> -> vector<240x22xf32>
    %17 = vector.shape_cast %16 : vector<240x22xf32> to vector<6x40x22xf32>
    %18 = vector.extract_strided_slice %6 {offsets = [0, 0, 0], sizes = [6, 23, 22], strides = [1, 1, 1]} : vector<6x40x22xf32> to vector<6x23x22xf32>
    %cst_11 = arith.constant 0.00102838036 : f32
    %19 = vector.broadcast %cst_11 : f32 to vector<6x23x22xf32>
    %20 = arith.mulf %19, %18 : vector<6x23x22xf32>
    %21 = vector.extract_strided_slice %8 {offsets = [0, 0, 0], sizes = [6, 23, 22], strides = [1, 1, 1]} : vector<6x40x22xf32> to vector<6x23x22xf32>
    %cst_12 = arith.constant 0.00102838036 : f32
    %22 = vector.broadcast %cst_12 : f32 to vector<6x23x22xf32>
    %23 = arith.mulf %22, %21 : vector<6x23x22xf32>
    %24 = vector.extract_strided_slice %11 {offsets = [0, 0, 0], sizes = [6, 23, 22], strides = [1, 1, 1]} : vector<6x40x22xf32> to vector<6x23x22xf32>
    %cst_13 = arith.constant 0.00102838036 : f32
    %25 = vector.broadcast %cst_13 : f32 to vector<6x23x22xf32>
    %26 = arith.mulf %25, %24 : vector<6x23x22xf32>
    %27 = vector.extract_strided_slice %14 {offsets = [0, 0, 0], sizes = [6, 23, 22], strides = [1, 1, 1]} : vector<6x40x22xf32> to vector<6x23x22xf32>
    %cst_14 = arith.constant 0.00102838036 : f32
    %28 = vector.broadcast %cst_14 : f32 to vector<6x23x22xf32>
    %29 = arith.mulf %28, %27 : vector<6x23x22xf32>
    %30 = vector.extract_strided_slice %17 {offsets = [0, 0, 0], sizes = [6, 23, 22], strides = [1, 1, 1]} : vector<6x40x22xf32> to vector<6x23x22xf32>
    %cst_15 = arith.constant 0.00102838036 : f32
    %31 = vector.broadcast %cst_15 : f32 to vector<6x23x22xf32>
    %32 = arith.mulf %31, %30 : vector<6x23x22xf32>
    %33 = vector.extract_strided_slice %6 {offsets = [0, 1, 0], sizes = [6, 23, 22], strides = [1, 1, 1]} : vector<6x40x22xf32> to vector<6x23x22xf32>
    %cst_16 = arith.constant 0.00759875868 : f32
    %34 = vector.broadcast %cst_16 : f32 to vector<6x23x22xf32>
    %35 = arith.mulf %34, %33 : vector<6x23x22xf32>
    %36 = arith.addf %20, %35 : vector<6x23x22xf32>
    %37 = vector.extract_strided_slice %8 {offsets = [0, 1, 0], sizes = [6, 23, 22], strides = [1, 1, 1]} : vector<6x40x22xf32> to vector<6x23x22xf32>
    %cst_17 = arith.constant 0.00759875868 : f32
    %38 = vector.broadcast %cst_17 : f32 to vector<6x23x22xf32>
    %39 = arith.mulf %38, %37 : vector<6x23x22xf32>
    %40 = arith.addf %23, %39 : vector<6x23x22xf32>
    %41 = vector.extract_strided_slice %11 {offsets = [0, 1, 0], sizes = [6, 23, 22], strides = [1, 1, 1]} : vector<6x40x22xf32> to vector<6x23x22xf32>
    %cst_18 = arith.constant 0.00759875868 : f32
    %42 = vector.broadcast %cst_18 : f32 to vector<6x23x22xf32>
    %43 = arith.mulf %42, %41 : vector<6x23x22xf32>
    %44 = arith.addf %26, %43 : vector<6x23x22xf32>
    %45 = vector.extract_strided_slice %14 {offsets = [0, 1, 0], sizes = [6, 23, 22], strides = [1, 1, 1]} : vector<6x40x22xf32> to vector<6x23x22xf32>
    %cst_19 = arith.constant 0.00759875868 : f32
    %46 = vector.broadcast %cst_19 : f32 to vector<6x23x22xf32>
    %47 = arith.mulf %46, %45 : vector<6x23x22xf32>
    %48 = arith.addf %29, %47 : vector<6x23x22xf32>
    %49 = vector.extract_strided_slice %17 {offsets = [0, 1, 0], sizes = [6, 23, 22], strides = [1, 1, 1]} : vector<6x40x22xf32> to vector<6x23x22xf32>
    %cst_20 = arith.constant 0.00759875868 : f32
    %50 = vector.broadcast %cst_20 : f32 to vector<6x23x22xf32>
    %51 = arith.mulf %50, %49 : vector<6x23x22xf32>
    %52 = arith.addf %32, %51 : vector<6x23x22xf32>
    %53 = vector.extract_strided_slice %6 {offsets = [0, 2, 0], sizes = [6, 23, 22], strides = [1, 1, 1]} : vector<6x40x22xf32> to vector<6x23x22xf32>
    %cst_21 = arith.constant 0.0360007733 : f32
    %54 = vector.broadcast %cst_21 : f32 to vector<6x23x22xf32>
    %55 = arith.mulf %54, %53 : vector<6x23x22xf32>
    %56 = arith.addf %36, %55 : vector<6x23x22xf32>
    %57 = vector.extract_strided_slice %8 {offsets = [0, 2, 0], sizes = [6, 23, 22], strides = [1, 1, 1]} : vector<6x40x22xf32> to vector<6x23x22xf32>
    %cst_22 = arith.constant 0.0360007733 : f32
    %58 = vector.broadcast %cst_22 : f32 to vector<6x23x22xf32>
    %59 = arith.mulf %58, %57 : vector<6x23x22xf32>
    %60 = arith.addf %40, %59 : vector<6x23x22xf32>
    %61 = vector.extract_strided_slice %11 {offsets = [0, 2, 0], sizes = [6, 23, 22], strides = [1, 1, 1]} : vector<6x40x22xf32> to vector<6x23x22xf32>
    %cst_23 = arith.constant 0.0360007733 : f32
    %62 = vector.broadcast %cst_23 : f32 to vector<6x23x22xf32>
    %63 = arith.mulf %62, %61 : vector<6x23x22xf32>
    %64 = arith.addf %44, %63 : vector<6x23x22xf32>
    %65 = vector.extract_strided_slice %14 {offsets = [0, 2, 0], sizes = [6, 23, 22], strides = [1, 1, 1]} : vector<6x40x22xf32> to vector<6x23x22xf32>
    %cst_24 = arith.constant 0.0360007733 : f32
    %66 = vector.broadcast %cst_24 : f32 to vector<6x23x22xf32>
    %67 = arith.mulf %66, %65 : vector<6x23x22xf32>
    %68 = arith.addf %48, %67 : vector<6x23x22xf32>
    %69 = vector.extract_strided_slice %17 {offsets = [0, 2, 0], sizes = [6, 23, 22], strides = [1, 1, 1]} : vector<6x40x22xf32> to vector<6x23x22xf32>
    %cst_25 = arith.constant 0.0360007733 : f32
    %70 = vector.broadcast %cst_25 : f32 to vector<6x23x22xf32>
    %71 = arith.mulf %70, %69 : vector<6x23x22xf32>
    %72 = arith.addf %52, %71 : vector<6x23x22xf32>
    %73 = vector.extract_strided_slice %6 {offsets = [0, 3, 0], sizes = [6, 23, 22], strides = [1, 1, 1]} : vector<6x40x22xf32> to vector<6x23x22xf32>
    %cst_26 = arith.constant 0.109360702 : f32
    %74 = vector.broadcast %cst_26 : f32 to vector<6x23x22xf32>
    %75 = arith.mulf %74, %73 : vector<6x23x22xf32>
    %76 = arith.addf %56, %75 : vector<6x23x22xf32>
    %77 = vector.extract_strided_slice %8 {offsets = [0, 3, 0], sizes = [6, 23, 22], strides = [1, 1, 1]} : vector<6x40x22xf32> to vector<6x23x22xf32>
    %cst_27 = arith.constant 0.109360702 : f32
    %78 = vector.broadcast %cst_27 : f32 to vector<6x23x22xf32>
    %79 = arith.mulf %78, %77 : vector<6x23x22xf32>
    %80 = arith.addf %60, %79 : vector<6x23x22xf32>
    %81 = vector.extract_strided_slice %11 {offsets = [0, 3, 0], sizes = [6, 23, 22], strides = [1, 1, 1]} : vector<6x40x22xf32> to vector<6x23x22xf32>
    %cst_28 = arith.constant 0.109360702 : f32
    %82 = vector.broadcast %cst_28 : f32 to vector<6x23x22xf32>
    %83 = arith.mulf %82, %81 : vector<6x23x22xf32>
    %84 = arith.addf %64, %83 : vector<6x23x22xf32>
    %85 = vector.extract_strided_slice %14 {offsets = [0, 3, 0], sizes = [6, 23, 22], strides = [1, 1, 1]} : vector<6x40x22xf32> to vector<6x23x22xf32>
    %cst_29 = arith.constant 0.109360702 : f32
    %86 = vector.broadcast %cst_29 : f32 to vector<6x23x22xf32>
    %87 = arith.mulf %86, %85 : vector<6x23x22xf32>
    %88 = arith.addf %68, %87 : vector<6x23x22xf32>
    %89 = vector.extract_strided_slice %17 {offsets = [0, 3, 0], sizes = [6, 23, 22], strides = [1, 1, 1]} : vector<6x40x22xf32> to vector<6x23x22xf32>
    %cst_30 = arith.constant 0.109360702 : f32
    %90 = vector.broadcast %cst_30 : f32 to vector<6x23x22xf32>
    %91 = arith.mulf %90, %89 : vector<6x23x22xf32>
    %92 = arith.addf %72, %91 : vector<6x23x22xf32>
    %93 = vector.extract_strided_slice %6 {offsets = [0, 4, 0], sizes = [6, 23, 22], strides = [1, 1, 1]} : vector<6x40x22xf32> to vector<6x23x22xf32>
    %cst_31 = arith.constant 0.213005543 : f32
    %94 = vector.broadcast %cst_31 : f32 to vector<6x23x22xf32>
    %95 = arith.mulf %94, %93 : vector<6x23x22xf32>
    %96 = arith.addf %76, %95 : vector<6x23x22xf32>
    %97 = vector.extract_strided_slice %8 {offsets = [0, 4, 0], sizes = [6, 23, 22], strides = [1, 1, 1]} : vector<6x40x22xf32> to vector<6x23x22xf32>
    %cst_32 = arith.constant 0.213005543 : f32
    %98 = vector.broadcast %cst_32 : f32 to vector<6x23x22xf32>
    %99 = arith.mulf %98, %97 : vector<6x23x22xf32>
    %100 = arith.addf %80, %99 : vector<6x23x22xf32>
    %101 = vector.extract_strided_slice %11 {offsets = [0, 4, 0], sizes = [6, 23, 22], strides = [1, 1, 1]} : vector<6x40x22xf32> to vector<6x23x22xf32>
    %cst_33 = arith.constant 0.213005543 : f32
    %102 = vector.broadcast %cst_33 : f32 to vector<6x23x22xf32>
    %103 = arith.mulf %102, %101 : vector<6x23x22xf32>
    %104 = arith.addf %84, %103 : vector<6x23x22xf32>
    %105 = vector.extract_strided_slice %14 {offsets = [0, 4, 0], sizes = [6, 23, 22], strides = [1, 1, 1]} : vector<6x40x22xf32> to vector<6x23x22xf32>
    %cst_34 = arith.constant 0.213005543 : f32
    %106 = vector.broadcast %cst_34 : f32 to vector<6x23x22xf32>
    %107 = arith.mulf %106, %105 : vector<6x23x22xf32>
    %108 = arith.addf %88, %107 : vector<6x23x22xf32>
    %109 = vector.extract_strided_slice %17 {offsets = [0, 4, 0], sizes = [6, 23, 22], strides = [1, 1, 1]} : vector<6x40x22xf32> to vector<6x23x22xf32>
    %cst_35 = arith.constant 0.213005543 : f32
    %110 = vector.broadcast %cst_35 : f32 to vector<6x23x22xf32>
    %111 = arith.mulf %110, %109 : vector<6x23x22xf32>
    %112 = arith.addf %92, %111 : vector<6x23x22xf32>
    %113 = vector.extract_strided_slice %6 {offsets = [0, 5, 0], sizes = [6, 23, 22], strides = [1, 1, 1]} : vector<6x40x22xf32> to vector<6x23x22xf32>
    %cst_36 = arith.constant 0.266011745 : f32
    %114 = vector.broadcast %cst_36 : f32 to vector<6x23x22xf32>
    %115 = arith.mulf %114, %113 : vector<6x23x22xf32>
    %116 = arith.addf %96, %115 : vector<6x23x22xf32>
    %117 = vector.extract_strided_slice %8 {offsets = [0, 5, 0], sizes = [6, 23, 22], strides = [1, 1, 1]} : vector<6x40x22xf32> to vector<6x23x22xf32>
    %cst_37 = arith.constant 0.266011745 : f32
    %118 = vector.broadcast %cst_37 : f32 to vector<6x23x22xf32>
    %119 = arith.mulf %118, %117 : vector<6x23x22xf32>
    %120 = arith.addf %100, %119 : vector<6x23x22xf32>
    %121 = vector.extract_strided_slice %11 {offsets = [0, 5, 0], sizes = [6, 23, 22], strides = [1, 1, 1]} : vector<6x40x22xf32> to vector<6x23x22xf32>
    %cst_38 = arith.constant 0.266011745 : f32
    %122 = vector.broadcast %cst_38 : f32 to vector<6x23x22xf32>
    %123 = arith.mulf %122, %121 : vector<6x23x22xf32>
    %124 = arith.addf %104, %123 : vector<6x23x22xf32>
    %125 = vector.extract_strided_slice %14 {offsets = [0, 5, 0], sizes = [6, 23, 22], strides = [1, 1, 1]} : vector<6x40x22xf32> to vector<6x23x22xf32>
    %cst_39 = arith.constant 0.266011745 : f32
    %126 = vector.broadcast %cst_39 : f32 to vector<6x23x22xf32>
    %127 = arith.mulf %126, %125 : vector<6x23x22xf32>
    %128 = arith.addf %108, %127 : vector<6x23x22xf32>
    %129 = vector.extract_strided_slice %17 {offsets = [0, 5, 0], sizes = [6, 23, 22], strides = [1, 1, 1]} : vector<6x40x22xf32> to vector<6x23x22xf32>
    %cst_40 = arith.constant 0.266011745 : f32
    %130 = vector.broadcast %cst_40 : f32 to vector<6x23x22xf32>
    %131 = arith.mulf %130, %129 : vector<6x23x22xf32>
    %132 = arith.addf %112, %131 : vector<6x23x22xf32>
    %133 = vector.extract_strided_slice %6 {offsets = [0, 6, 0], sizes = [6, 23, 22], strides = [1, 1, 1]} : vector<6x40x22xf32> to vector<6x23x22xf32>
    %cst_41 = arith.constant 0.213005543 : f32
    %134 = vector.broadcast %cst_41 : f32 to vector<6x23x22xf32>
    %135 = arith.mulf %134, %133 : vector<6x23x22xf32>
    %136 = arith.addf %116, %135 : vector<6x23x22xf32>
    %137 = vector.extract_strided_slice %8 {offsets = [0, 6, 0], sizes = [6, 23, 22], strides = [1, 1, 1]} : vector<6x40x22xf32> to vector<6x23x22xf32>
    %cst_42 = arith.constant 0.213005543 : f32
    %138 = vector.broadcast %cst_42 : f32 to vector<6x23x22xf32>
    %139 = arith.mulf %138, %137 : vector<6x23x22xf32>
    %140 = arith.addf %120, %139 : vector<6x23x22xf32>
    %141 = vector.extract_strided_slice %11 {offsets = [0, 6, 0], sizes = [6, 23, 22], strides = [1, 1, 1]} : vector<6x40x22xf32> to vector<6x23x22xf32>
    %cst_43 = arith.constant 0.213005543 : f32
    %142 = vector.broadcast %cst_43 : f32 to vector<6x23x22xf32>
    %143 = arith.mulf %142, %141 : vector<6x23x22xf32>
    %144 = arith.addf %124, %143 : vector<6x23x22xf32>
    %145 = vector.extract_strided_slice %14 {offsets = [0, 6, 0], sizes = [6, 23, 22], strides = [1, 1, 1]} : vector<6x40x22xf32> to vector<6x23x22xf32>
    %cst_44 = arith.constant 0.213005543 : f32
    %146 = vector.broadcast %cst_44 : f32 to vector<6x23x22xf32>
    %147 = arith.mulf %146, %145 : vector<6x23x22xf32>
    %148 = arith.addf %128, %147 : vector<6x23x22xf32>
    %149 = vector.extract_strided_slice %17 {offsets = [0, 6, 0], sizes = [6, 23, 22], strides = [1, 1, 1]} : vector<6x40x22xf32> to vector<6x23x22xf32>
    %cst_45 = arith.constant 0.213005543 : f32
    %150 = vector.broadcast %cst_45 : f32 to vector<6x23x22xf32>
    %151 = arith.mulf %150, %149 : vector<6x23x22xf32>
    %152 = arith.addf %132, %151 : vector<6x23x22xf32>
    %153 = vector.extract_strided_slice %6 {offsets = [0, 7, 0], sizes = [6, 23, 22], strides = [1, 1, 1]} : vector<6x40x22xf32> to vector<6x23x22xf32>
    %cst_46 = arith.constant 0.109360702 : f32
    %154 = vector.broadcast %cst_46 : f32 to vector<6x23x22xf32>
    %155 = arith.mulf %154, %153 : vector<6x23x22xf32>
    %156 = arith.addf %136, %155 : vector<6x23x22xf32>
    %157 = vector.extract_strided_slice %8 {offsets = [0, 7, 0], sizes = [6, 23, 22], strides = [1, 1, 1]} : vector<6x40x22xf32> to vector<6x23x22xf32>
    %cst_47 = arith.constant 0.109360702 : f32
    %158 = vector.broadcast %cst_47 : f32 to vector<6x23x22xf32>
    %159 = arith.mulf %158, %157 : vector<6x23x22xf32>
    %160 = arith.addf %140, %159 : vector<6x23x22xf32>
    %161 = vector.extract_strided_slice %11 {offsets = [0, 7, 0], sizes = [6, 23, 22], strides = [1, 1, 1]} : vector<6x40x22xf32> to vector<6x23x22xf32>
    %cst_48 = arith.constant 0.109360702 : f32
    %162 = vector.broadcast %cst_48 : f32 to vector<6x23x22xf32>
    %163 = arith.mulf %162, %161 : vector<6x23x22xf32>
    %164 = arith.addf %144, %163 : vector<6x23x22xf32>
    %165 = vector.extract_strided_slice %14 {offsets = [0, 7, 0], sizes = [6, 23, 22], strides = [1, 1, 1]} : vector<6x40x22xf32> to vector<6x23x22xf32>
    %cst_49 = arith.constant 0.109360702 : f32
    %166 = vector.broadcast %cst_49 : f32 to vector<6x23x22xf32>
    %167 = arith.mulf %166, %165 : vector<6x23x22xf32>
    %168 = arith.addf %148, %167 : vector<6x23x22xf32>
    %169 = vector.extract_strided_slice %17 {offsets = [0, 7, 0], sizes = [6, 23, 22], strides = [1, 1, 1]} : vector<6x40x22xf32> to vector<6x23x22xf32>
    %cst_50 = arith.constant 0.109360702 : f32
    %170 = vector.broadcast %cst_50 : f32 to vector<6x23x22xf32>
    %171 = arith.mulf %170, %169 : vector<6x23x22xf32>
    %172 = arith.addf %152, %171 : vector<6x23x22xf32>
    %173 = vector.extract_strided_slice %6 {offsets = [0, 8, 0], sizes = [6, 23, 22], strides = [1, 1, 1]} : vector<6x40x22xf32> to vector<6x23x22xf32>
    %cst_51 = arith.constant 0.0360007733 : f32
    %174 = vector.broadcast %cst_51 : f32 to vector<6x23x22xf32>
    %175 = arith.mulf %174, %173 : vector<6x23x22xf32>
    %176 = arith.addf %156, %175 : vector<6x23x22xf32>
    %177 = vector.extract_strided_slice %8 {offsets = [0, 8, 0], sizes = [6, 23, 22], strides = [1, 1, 1]} : vector<6x40x22xf32> to vector<6x23x22xf32>
    %cst_52 = arith.constant 0.0360007733 : f32
    %178 = vector.broadcast %cst_52 : f32 to vector<6x23x22xf32>
    %179 = arith.mulf %178, %177 : vector<6x23x22xf32>
    %180 = arith.addf %160, %179 : vector<6x23x22xf32>
    %181 = vector.extract_strided_slice %11 {offsets = [0, 8, 0], sizes = [6, 23, 22], strides = [1, 1, 1]} : vector<6x40x22xf32> to vector<6x23x22xf32>
    %cst_53 = arith.constant 0.0360007733 : f32
    %182 = vector.broadcast %cst_53 : f32 to vector<6x23x22xf32>
    %183 = arith.mulf %182, %181 : vector<6x23x22xf32>
    %184 = arith.addf %164, %183 : vector<6x23x22xf32>
    %185 = vector.extract_strided_slice %14 {offsets = [0, 8, 0], sizes = [6, 23, 22], strides = [1, 1, 1]} : vector<6x40x22xf32> to vector<6x23x22xf32>
    %cst_54 = arith.constant 0.0360007733 : f32
    %186 = vector.broadcast %cst_54 : f32 to vector<6x23x22xf32>
    %187 = arith.mulf %186, %185 : vector<6x23x22xf32>
    %188 = arith.addf %168, %187 : vector<6x23x22xf32>
    %189 = vector.extract_strided_slice %17 {offsets = [0, 8, 0], sizes = [6, 23, 22], strides = [1, 1, 1]} : vector<6x40x22xf32> to vector<6x23x22xf32>
    %cst_55 = arith.constant 0.0360007733 : f32
    %190 = vector.broadcast %cst_55 : f32 to vector<6x23x22xf32>
    %191 = arith.mulf %190, %189 : vector<6x23x22xf32>
    %192 = arith.addf %172, %191 : vector<6x23x22xf32>
    %193 = vector.extract_strided_slice %6 {offsets = [0, 9, 0], sizes = [6, 23, 22], strides = [1, 1, 1]} : vector<6x40x22xf32> to vector<6x23x22xf32>
    %cst_56 = arith.constant 0.00759875868 : f32
    %194 = vector.broadcast %cst_56 : f32 to vector<6x23x22xf32>
    %195 = arith.mulf %194, %193 : vector<6x23x22xf32>
    %196 = arith.addf %176, %195 : vector<6x23x22xf32>
    %197 = vector.extract_strided_slice %8 {offsets = [0, 9, 0], sizes = [6, 23, 22], strides = [1, 1, 1]} : vector<6x40x22xf32> to vector<6x23x22xf32>
    %cst_57 = arith.constant 0.00759875868 : f32
    %198 = vector.broadcast %cst_57 : f32 to vector<6x23x22xf32>
    %199 = arith.mulf %198, %197 : vector<6x23x22xf32>
    %200 = arith.addf %180, %199 : vector<6x23x22xf32>
    %201 = vector.extract_strided_slice %11 {offsets = [0, 9, 0], sizes = [6, 23, 22], strides = [1, 1, 1]} : vector<6x40x22xf32> to vector<6x23x22xf32>
    %cst_58 = arith.constant 0.00759875868 : f32
    %202 = vector.broadcast %cst_58 : f32 to vector<6x23x22xf32>
    %203 = arith.mulf %202, %201 : vector<6x23x22xf32>
    %204 = arith.addf %184, %203 : vector<6x23x22xf32>
    %205 = vector.extract_strided_slice %14 {offsets = [0, 9, 0], sizes = [6, 23, 22], strides = [1, 1, 1]} : vector<6x40x22xf32> to vector<6x23x22xf32>
    %cst_59 = arith.constant 0.00759875868 : f32
    %206 = vector.broadcast %cst_59 : f32 to vector<6x23x22xf32>
    %207 = arith.mulf %206, %205 : vector<6x23x22xf32>
    %208 = arith.addf %188, %207 : vector<6x23x22xf32>
    %209 = vector.extract_strided_slice %17 {offsets = [0, 9, 0], sizes = [6, 23, 22], strides = [1, 1, 1]} : vector<6x40x22xf32> to vector<6x23x22xf32>
    %cst_60 = arith.constant 0.00759875868 : f32
    %210 = vector.broadcast %cst_60 : f32 to vector<6x23x22xf32>
    %211 = arith.mulf %210, %209 : vector<6x23x22xf32>
    %212 = arith.addf %192, %211 : vector<6x23x22xf32>
    %213 = vector.extract_strided_slice %6 {offsets = [0, 10, 0], sizes = [6, 23, 22], strides = [1, 1, 1]} : vector<6x40x22xf32> to vector<6x23x22xf32>
    %cst_61 = arith.constant 0.00102838036 : f32
    %214 = vector.broadcast %cst_61 : f32 to vector<6x23x22xf32>
    %215 = arith.mulf %214, %213 : vector<6x23x22xf32>
    %216 = arith.addf %196, %215 : vector<6x23x22xf32>
    %217 = vector.extract_strided_slice %8 {offsets = [0, 10, 0], sizes = [6, 23, 22], strides = [1, 1, 1]} : vector<6x40x22xf32> to vector<6x23x22xf32>
    %cst_62 = arith.constant 0.00102838036 : f32
    %218 = vector.broadcast %cst_62 : f32 to vector<6x23x22xf32>
    %219 = arith.mulf %218, %217 : vector<6x23x22xf32>
    %220 = arith.addf %200, %219 : vector<6x23x22xf32>
    %221 = vector.extract_strided_slice %11 {offsets = [0, 10, 0], sizes = [6, 23, 22], strides = [1, 1, 1]} : vector<6x40x22xf32> to vector<6x23x22xf32>
    %cst_63 = arith.constant 0.00102838036 : f32
    %222 = vector.broadcast %cst_63 : f32 to vector<6x23x22xf32>
    %223 = arith.mulf %222, %221 : vector<6x23x22xf32>
    %224 = arith.addf %204, %223 : vector<6x23x22xf32>
    %225 = vector.extract_strided_slice %14 {offsets = [0, 10, 0], sizes = [6, 23, 22], strides = [1, 1, 1]} : vector<6x40x22xf32> to vector<6x23x22xf32>
    %cst_64 = arith.constant 0.00102838036 : f32
    %226 = vector.broadcast %cst_64 : f32 to vector<6x23x22xf32>
    %227 = arith.mulf %226, %225 : vector<6x23x22xf32>
    %228 = arith.addf %208, %227 : vector<6x23x22xf32>
    %229 = vector.extract_strided_slice %17 {offsets = [0, 10, 0], sizes = [6, 23, 22], strides = [1, 1, 1]} : vector<6x40x22xf32> to vector<6x23x22xf32>
    %cst_65 = arith.constant 0.00102838036 : f32
    %230 = vector.broadcast %cst_65 : f32 to vector<6x23x22xf32>
    %231 = arith.mulf %230, %229 : vector<6x23x22xf32>
    %232 = arith.addf %212, %231 : vector<6x23x22xf32>
    %233 = arith.mulf %216, %216 : vector<6x23x22xf32>
    %234 = arith.mulf %220, %220 : vector<6x23x22xf32>
    %235 = arith.mulf %216, %220 : vector<6x23x22xf32>
    %236 = arith.subf %224, %233 : vector<6x23x22xf32>
    %237 = arith.subf %228, %234 : vector<6x23x22xf32>
    %238 = arith.subf %232, %235 : vector<6x23x22xf32>
    %cst_66 = arith.constant 2.000000e+00 : f32
    %239 = vector.broadcast %cst_66 : f32 to vector<6x23x22xf32>
    %240 = arith.mulf %239, %238 : vector<6x23x22xf32>
    %cst_67 = arith.constant 5.852250e+01 : f32
    %241 = vector.broadcast %cst_67 : f32 to vector<6x23x22xf32>
    %242 = arith.addf %240, %241 : vector<6x23x22xf32>
    %243 = arith.addf %236, %237 : vector<6x23x22xf32>
    %cst_68 = arith.constant 5.852250e+01 : f32
    %244 = vector.broadcast %cst_68 : f32 to vector<6x23x22xf32>
    %245 = arith.addf %243, %244 : vector<6x23x22xf32>
    %246 = arith.divf %242, %245 : vector<6x23x22xf32>
    %cst_69 = arith.constant dense<0.000000e+00> : vector<6x23xf32>
    %247 = vector.multi_reduction <add>, %246, %cst_69 [2] : vector<6x23x22xf32> to vector<6x23xf32>
    %cst_70 = arith.constant dense<0.000000e+00> : vector<6xf32>
    %248 = vector.multi_reduction <add>, %247, %cst_70 [1] : vector<6x23xf32> to vector<6xf32>
    %cst_71 = arith.constant 0.00197628466 : f32
    %249 = vector.broadcast %cst_71 : f32 to vector<6xf32>
    %250 = arith.mulf %248, %249 : vector<6xf32>
    %251 = vector.shape_cast %250 : vector<6xf32> to vector<1x1x6xf32>
    %c0_72 = arith.constant 0 : index
    %c0_73 = arith.constant 0 : index
    %c0_74 = arith.constant 0 : index
    %252 = vector.load %arg4[%c0_72, %c0_73, %c0_74] : memref<1x1x6xf32, #tpu.memory_space<vmem>>, vector<1x1x6xf32>
    tpu.vector_store %arg4[%c0_72, %c0_73, %c0_74], %251 {strides = array<i32>} : memref<1x1x6xf32, #tpu.memory_space<vmem>>, vector<1x1x6xf32>,
    return
  }
  func.func @transform_0(%arg0: i32) -> (i32, i32, i32) {
    %c0_i32 = arith.constant 0 : i32
    %c0_i32_0 = arith.constant 0 : i32
    %c0_i32_1 = arith.constant 0 : i32
    return %arg0, %c0_i32, %c0_i32_0 : i32, i32, i32
  }
  func.func @transform_1(%arg0: i32) -> (i32, i32, i32) {
    %c0_i32 = arith.constant 0 : i32
    %c0_i32_0 = arith.constant 0 : i32
    %c0_i32_1 = arith.constant 0 : i32
    return %arg0, %c0_i32, %c0_i32_0 : i32, i32, i32
  }
  func.func @transform_2(%arg0: i32) -> (i32, i32) {
    %c0_i32 = arith.constant 0 : i32
    %c0_i32_0 = arith.constant 0 : i32
    %c0_i32_1 = arith.constant 0 : i32
    return %c0_i32, %c0_i32_0 : i32, i32
  }
  func.func @transform_3(%arg0: i32) -> (i32, i32, i32) {
    %c0_i32 = arith.constant 0 : i32
    %c0_i32_0 = arith.constant 0 : i32
    %c0_i32_1 = arith.constant 0 : i32
    return %arg0, %c0_i32, %c0_i32_0 : i32, i32, i32
  }
}

</mosaic_0001>

<llo_original>
// kernel: tpu_custom_call.1
$region0: #{tpu_custom_call.1}
  #allocation0 [shape = 'u32[]', space=smem, size = 0x4, offset = 0x4, fixed_abs, tag = 'smem constant byte address 0x4 - core index']
  #allocation1 [shape = 'u32[144,128]{1,0:T(1,128)}', space=vmem, size = 0x12000, scoped, tag = 'internal scratch']
  %s0 = inlined_call_operand.vmem [shape: f32[6,40,32], index: 0, kind: input, shape index: {}]
  %s1 = inlined_call_operand.vmem [shape: f32[6,40,32], index: 1, kind: input, shape index: {}]
  %s2 = inlined_call_operand.vmem [shape: f32[32,22], index: 2, kind: input, shape index: {}]
  %s3 = inlined_call_operand.hbm [shape: f32[1,1,6], index: 3, kind: output, shape index: {}]
  %s4 = sld [smem:[#allocation0]]
  $region22: #{tpu_custom_call.1} parent=0
    _
  %s6 = ssub.s32 1, %s4
  %s7 = scalar_select 0, %s6, %s4
  $region1: #{tpu_custom_call.1} parent=0
    #allocation2 [shape = 'u8[512]{0}', space=vmem, size = 0x400, scoped, tag = 'output window, operand 0, single buffered']
    #allocation3 [shape = 's32[1]{0}', space=sflag, size = 0x4, scoped, tag = 'scoped memory for tpu_custom_call.1']
    %8 = vsyncpa [#allocation3], 0
    // Predicated region
    $region2: #{tpu_custom_call.1} parent=1 // pred_check
      _
    $region3: #{tpu_custom_call.1} parent=1 // pred_check_branch
      %10 = sbr.rel (0) target = $region5
    $region4: #{tpu_custom_call.1} parent=1 // pred_region
      _
    $region5: #{tpu_custom_call.1} parent=1 // pred_fallthru
      _
    // Predicated region
    $region6: #{tpu_custom_call.1} parent=1 // pred_check
      _
    $region7: #{tpu_custom_call.1} parent=1 // pred_check_branch
      %12 = sbr.rel (0) target = $region9
    $region8: #{tpu_custom_call.1} parent=1 // pred_region
      _
    $region9: #{tpu_custom_call.1} parent=1 // pred_fallthru
      _
    // Predicated region
    $region10: #{tpu_custom_call.1} parent=1 // pred_check
      _
    $region11: #{tpu_custom_call.1} parent=1 // pred_check_branch
      %14 = sbr.rel (0) target = $region13
    $region12: #{tpu_custom_call.1} parent=1 // pred_region
      _
    $region13: #{tpu_custom_call.1} parent=1 // pred_fallthru
      _
    %v15 = vld [vmem:[%s0] sm:$0xff]
    %v16 = vld [vmem:[%s0 + $0x8] sm:$0xff]
    %v17 = vld [vmem:[%s0 + $0x10] sm:$0xff]
    %v18 = vld [vmem:[%s0 + $0x18] sm:$0xff]
    %v19 = vld [vmem:[%s0 + $0x20] sm:$0xff]
    %v20 = vld [vmem:[%s0 + $0x28] sm:$0xff]
    %v21 = vld [vmem:[%s0 + $0x30] sm:$0xff]
    %v22 = vld [vmem:[%s0 + $0x38] sm:$0xff]
    %v23 = vld [vmem:[%s0 + $0x40] sm:$0xff]
    %v24 = vld [vmem:[%s0 + $0x48] sm:$0xff]
    %v25 = vld [vmem:[%s0 + $0x50] sm:$0xff]
    %v26 = vld [vmem:[%s0 + $0x58] sm:$0xff]
    %v27 = vld [vmem:[%s0 + $0x60] sm:$0xff]
    %v28 = vld [vmem:[%s0 + $0x68] sm:$0xff]
    %v29 = vld [vmem:[%s0 + $0x70] sm:$0xff]
    %v30 = vld [vmem:[%s0 + $0x78] sm:$0xff]
    %v31 = vld [vmem:[%s0 + $0x80] sm:$0xff]
    %v32 = vld [vmem:[%s0 + $0x88] sm:$0xff]
    %v33 = vld [vmem:[%s0 + $0x90] sm:$0xff]
    %v34 = vld [vmem:[%s0 + $0x98] sm:$0xff]
    %v35 = vld [vmem:[%s0 + $0xa0] sm:$0xff]
    %v36 = vld [vmem:[%s0 + $0xa8] sm:$0xff]
    %v37 = vld [vmem:[%s0 + $0xb0] sm:$0xff]
    %v38 = vld [vmem:[%s0 + $0xb8] sm:$0xff]
    %v39 = vld [vmem:[%s0 + $0xc0] sm:$0xff]
    %v40 = vld [vmem:[%s0 + $0xc8] sm:$0xff]
    %v41 = vld [vmem:[%s0 + $0xd0] sm:$0xff]
    %v42 = vld [vmem:[%s0 + $0xd8] sm:$0xff]
    %v43 = vld [vmem:[%s0 + $0xe0] sm:$0xff]
    %v44 = vld [vmem:[%s0 + $0xe8] sm:$0xff]
    %v45 = vld [vmem:[%s1] sm:$0xff]
    %v46 = vld [vmem:[%s1 + $0x8] sm:$0xff]
    %v47 = vld [vmem:[%s1 + $0x10] sm:$0xff]
    %v48 = vld [vmem:[%s1 + $0x18] sm:$0xff]
    %v49 = vld [vmem:[%s1 + $0x20] sm:$0xff]
    %v50 = vld [vmem:[%s1 + $0x28] sm:$0xff]
    %v51 = vld [vmem:[%s1 + $0x30] sm:$0xff]
    %v52 = vld [vmem:[%s1 + $0x38] sm:$0xff]
    %v53 = vld [vmem:[%s1 + $0x40] sm:$0xff]
    %v54 = vld [vmem:[%s1 + $0x48] sm:$0xff]
    %v55 = vld [vmem:[%s1 + $0x50] sm:$0xff]
    %v56 = vld [vmem:[%s1 + $0x58] sm:$0xff]
    %v57 = vld [vmem:[%s1 + $0x60] sm:$0xff]
    %v58 = vld [vmem:[%s1 + $0x68] sm:$0xff]
    %v59 = vld [vmem:[%s1 + $0x70] sm:$0xff]
    %v60 = vld [vmem:[%s1 + $0x78] sm:$0xff]
    %v61 = vld [vmem:[%s1 + $0x80] sm:$0xff]
    %v62 = vld [vmem:[%s1 + $0x88] sm:$0xff]
    %v63 = vld [vmem:[%s1 + $0x90] sm:$0xff]
    %v64 = vld [vmem:[%s1 + $0x98] sm:$0xff]
    %v65 = vld [vmem:[%s1 + $0xa0] sm:$0xff]
    %v66 = vld [vmem:[%s1 + $0xa8] sm:$0xff]
    %v67 = vld [vmem:[%s1 + $0xb0] sm:$0xff]
    %v68 = vld [vmem:[%s1 + $0xb8] sm:$0xff]
    %v69 = vld [vmem:[%s1 + $0xc0] sm:$0xff]
    %v70 = vld [vmem:[%s1 + $0xc8] sm:$0xff]
    %v71 = vld [vmem:[%s1 + $0xd0] sm:$0xff]
    %v72 = vld [vmem:[%s1 + $0xd8] sm:$0xff]
    %v73 = vld [vmem:[%s1 + $0xe0] sm:$0xff]
    %v74 = vld [vmem:[%s1 + $0xe8] sm:$0xff]
    %v75 = vld [vmem:[%s2] sm:$0xff]
    %v76 = vld [vmem:[%s2 + $0x8] sm:$0xff]
    %v77 = vld [vmem:[%s2 + $0x10] sm:$0xff]
    %v78 = vld [vmem:[%s2 + $0x18] sm:$0xff]
    %vm79 = vcmask 261120
    %v81 = vsel %vm79, %v15, 0
    %v84 = vsel %vm79, %v16, 0
    %v87 = vsel %vm79, %v17, 0
    %v90 = vsel %vm79, %v18, 0
    %v93 = vsel %vm79, %v19, 0
    %v96 = vsel %vm79, %v20, 0
    %v99 = vsel %vm79, %v21, 0
    %v102 = vsel %vm79, %v22, 0
    %v105 = vsel %vm79, %v23, 0
    %v108 = vsel %vm79, %v24, 0
    %v111 = vsel %vm79, %v25, 0
    %v114 = vsel %vm79, %v26, 0
    %v117 = vsel %vm79, %v27, 0
    %v120 = vsel %vm79, %v28, 0
    %v123 = vsel %vm79, %v29, 0
    %v126 = vsel %vm79, %v30, 0
    %v129 = vsel %vm79, %v31, 0
    %v132 = vsel %vm79, %v32, 0
    %v135 = vsel %vm79, %v33, 0
    %v138 = vsel %vm79, %v34, 0
    %v141 = vsel %vm79, %v35, 0
    %v144 = vsel %vm79, %v36, 0
    %v147 = vsel %vm79, %v37, 0
    %v150 = vsel %vm79, %v38, 0
    %v153 = vsel %vm79, %v39, 0
    %v156 = vsel %vm79, %v40, 0
    %v159 = vsel %vm79, %v41, 0
    %v162 = vsel %vm79, %v42, 0
    %v165 = vsel %vm79, %v43, 0
    %v168 = vsel %vm79, %v44, 0
    %170 = vmatprep.subr.mxu0 0.0
    %171 = vmatpush1.msra.mxu0 %v75
    %172 = vmatprep.subr.mxu0 0.0
    %173 = vmatpush1.msra.mxu0 %v76
    %174 = vmatprep.subr.mxu0 0.0
    %175 = vmatpush1.msra.mxu0 %v77
    %176 = vmatprep.subr.mxu0 0.0
    %177 = vmatpush1.msra.mxu0 %v78
    %178 = vmatprep.subr.mxu0 0.0
    %179 = vmatpush1.msra.mxu0 0.0
    %180 = vmatprep.subr.mxu0 0.0
    %181 = vmatpush1.msra.mxu0 0.0
    %182 = vmatprep.subr.mxu0 0.0
    %183 = vmatpush1.msra.mxu0 0.0
    %184 = vmatprep.subr.mxu0 0.0
    %185 = vmatpush1.msra.mxu0 0.0
    %186 = vmatprep.subr.mxu0 0.0
    %187 = vmatpush1.msra.mxu0 0.0
    %188 = vmatprep.subr.mxu0 0.0
    %189 = vmatpush1.msra.mxu0 0.0
    %190 = vmatprep.subr.mxu0 0.0
    %191 = vmatpush1.msra.mxu0 0.0
    %192 = vmatprep.subr.mxu0 0.0
    %193 = vmatpush1.msra.mxu0 0.0
    %194 = vmatprep.subr.mxu0 0.0
    %195 = vmatpush1.msra.mxu0 0.0
    %196 = vmatprep.subr.mxu0 0.0
    %197 = vmatpush1.msra.mxu0 0.0
    %198 = vmatprep.subr.mxu0 0.0
    %199 = vmatpush1.msra.mxu0 0.0
    %200 = vmatprep.subr.mxu0 0.0
    %201 = vmatpush1.msra.mxu0 0.0
    %202 = vmatprep.subr.mxu0 0.0
    %203 = vmatpush1.msra.mxu0 0.0
    %204 = vmatprep.subr.mxu0 0.0
    %205 = vmatpush1.msra.mxu0 0.0
    %206 = vmatprep.subr.mxu0 0.0
    %207 = vmatpush1.msra.mxu0 0.0
    %208 = vmatprep.subr.mxu0 0.0
    %209 = vmatpush1.msra.mxu0 0.0
    %210 = vmatprep.subr.mxu0 0.0
    %211 = vmatpush1.msra.mxu0 0.0
    %212 = vmatprep.subr.mxu0 0.0
    %213 = vmatpush1.msra.mxu0 0.0
    %214 = vmatprep.subr.mxu0 0.0
    %215 = vmatpush1.msra.mxu0 0.0
    %216 = vmatprep.subr.mxu0 0.0
    %217 = vmatpush1.msra.mxu0 0.0
    %218 = vmatprep.subr.mxu0 0.0
    %219 = vmatpush1.msra.mxu0 0.0
    %220 = vmatprep.subr.mxu0 0.0
    %221 = vmatpush1.msra.mxu0 0.0
    %222 = vmatprep.subr.mxu0 0.0
    %223 = vmatpush1.msra.mxu0 0.0
    %224 = vmatprep.subr.mxu0 0.0
    %225 = vmatpush1.msra.mxu0 0.0
    %226 = vmatprep.subr.mxu0 0.0
    %227 = vmatpush1.msra.mxu0 0.0
    %228 = vmatprep.subr.mxu0 0.0
    %229 = vmatpush1.msra.mxu0 0.0
    %230 = vmatprep.subr.mxu0 0.0
    %231 = vmatpush1.msra.mxu0 0.0
    %232 = vmatprep.subr.mxu0 0.0
    %233 = vmatpush1.msra.mxu0 0.0
    %234 = vmatprep.mubr.f32.mxu0 0.0
    %235 = vmatmul.mubr.f32.gmra.mrb[0].mxu0 %v81
    %v236 = vpop.f32.mrb[0].mxu0
    %v237 = vadd.f32 0.0, %v236
    %v238 = vpop.f32.mrb[0].mxu0
    %239 = vmatprep.mubr.f32.mxu0 0.0
    %240 = vmatmul.mubr.f32.gmra.mrb[0].mxu0 %v84
    %v241 = vpop.f32.mrb[0].mxu0
    %v242 = vadd.f32 0.0, %v241
    %v243 = vpop.f32.mrb[0].mxu0
    %244 = vmatprep.mubr.f32.mxu0 0.0
    %245 = vmatmul.mubr.f32.gmra.mrb[0].mxu0 %v87
    %v246 = vpop.f32.mrb[0].mxu0
    %v247 = vadd.f32 0.0, %v246
    %v248 = vpop.f32.mrb[0].mxu0
    %249 = vmatprep.mubr.f32.mxu0 0.0
    %250 = vmatmul.mubr.f32.gmra.mrb[0].mxu0 %v90
    %v251 = vpop.f32.mrb[0].mxu0
    %v252 = vadd.f32 0.0, %v251
    %v253 = vpop.f32.mrb[0].mxu0
    %254 = vmatprep.mubr.f32.mxu0 0.0
    %255 = vmatmul.mubr.f32.gmra.mrb[0].mxu0 %v93
    %v256 = vpop.f32.mrb[0].mxu0
    %v257 = vadd.f32 0.0, %v256
    %v258 = vpop.f32.mrb[0].mxu0
    %259 = vmatprep.mubr.f32.mxu0 0.0
    %260 = vmatmul.mubr.f32.gmra.mrb[0].mxu0 %v96
    %v261 = vpop.f32.mrb[0].mxu0
    %v262 = vadd.f32 0.0, %v261
    %v263 = vpop.f32.mrb[0].mxu0
    %264 = vmatprep.mubr.f32.mxu0 0.0
    %265 = vmatmul.mubr.f32.gmra.mrb[0].mxu0 %v99
    %v266 = vpop.f32.mrb[0].mxu0
    %v267 = vadd.f32 0.0, %v266
    %v268 = vpop.f32.mrb[0].mxu0
    %269 = vmatprep.mubr.f32.mxu0 0.0
    %270 = vmatmul.mubr.f32.gmra.mrb[0].mxu0 %v102
    %v271 = vpop.f32.mrb[0].mxu0
    %v272 = vadd.f32 0.0, %v271
    %v273 = vpop.f32.mrb[0].mxu0
    %274 = vmatprep.mubr.f32.mxu0 0.0
    %275 = vmatmul.mubr.f32.gmra.mrb[0].mxu0 %v105
    %v276 = vpop.f32.mrb[0].mxu0
    %v277 = vadd.f32 0.0, %v276
    %v278 = vpop.f32.mrb[0].mxu0
    %279 = vmatprep.mubr.f32.mxu0 0.0
    %280 = vmatmul.mubr.f32.gmra.mrb[0].mxu0 %v108
    %v281 = vpop.f32.mrb[0].mxu0
    %v282 = vadd.f32 0.0, %v281
    %v283 = vpop.f32.mrb[0].mxu0
    %284 = vmatprep.mubr.f32.mxu0 0.0
    %285 = vmatmul.mubr.f32.gmra.mrb[0].mxu0 %v111
    %v286 = vpop.f32.mrb[0].mxu0
    %v287 = vadd.f32 0.0, %v286
    %v288 = vpop.f32.mrb[0].mxu0
    %289 = vmatprep.mubr.f32.mxu0 0.0
    %290 = vmatmul.mubr.f32.gmra.mrb[0].mxu0 %v114
    %v291 = vpop.f32.mrb[0].mxu0
    %v292 = vadd.f32 0.0, %v291
    %v293 = vpop.f32.mrb[0].mxu0
    %294 = vmatprep.mubr.f32.mxu0 0.0
    %295 = vmatmul.mubr.f32.gmra.mrb[0].mxu0 %v117
    %v296 = vpop.f32.mrb[0].mxu0
    %v297 = vadd.f32 0.0, %v296
    %v298 = vpop.f32.mrb[0].mxu0
    %299 = vmatprep.mubr.f32.mxu0 0.0
    %300 = vmatmul.mubr.f32.gmra.mrb[0].mxu0 %v120
    %v301 = vpop.f32.mrb[0].mxu0
    %v302 = vadd.f32 0.0, %v301
    %v303 = vpop.f32.mrb[0].mxu0
    %304 = vmatprep.mubr.f32.mxu0 0.0
    %305 = vmatmul.mubr.f32.gmra.mrb[0].mxu0 %v123
    %v306 = vpop.f32.mrb[0].mxu0
    %v307 = vadd.f32 0.0, %v306
    %v308 = vpop.f32.mrb[0].mxu0
    %309 = vmatprep.mubr.f32.mxu0 0.0
    %310 = vmatmul.mubr.f32.gmra.mrb[0].mxu0 %v126
    %v311 = vpop.f32.mrb[0].mxu0
    %v312 = vadd.f32 0.0, %v311
    %v313 = vpop.f32.mrb[0].mxu0
    %314 = vmatprep.mubr.f32.mxu0 0.0
    %315 = vmatmul.mubr.f32.gmra.mrb[0].mxu0 %v129
    %v316 = vpop.f32.mrb[0].mxu0
    %v317 = vadd.f32 0.0, %v316
    %v318 = vpop.f32.mrb[0].mxu0
    %319 = vmatprep.mubr.f32.mxu0 0.0
    %320 = vmatmul.mubr.f32.gmra.mrb[0].mxu0 %v132
    %v321 = vpop.f32.mrb[0].mxu0
    %v322 = vadd.f32 0.0, %v321
    %v323 = vpop.f32.mrb[0].mxu0
    %324 = vmatprep.mubr.f32.mxu0 0.0
    %325 = vmatmul.mubr.f32.gmra.mrb[0].mxu0 %v135
    %v326 = vpop.f32.mrb[0].mxu0
    %v327 = vadd.f32 0.0, %v326
    %v328 = vpop.f32.mrb[0].mxu0
    %329 = vmatprep.mubr.f32.mxu0 0.0
    %330 = vmatmul.mubr.f32.gmra.mrb[0].mxu0 %v138
    %v331 = vpop.f32.mrb[0].mxu0
    %v332 = vadd.f32 0.0, %v331
    %v333 = vpop.f32.mrb[0].mxu0
    %334 = vmatprep.mubr.f32.mxu0 0.0
    %335 = vmatmul.mubr.f32.gmra.mrb[0].mxu0 %v141
    %v336 = vpop.f32.mrb[0].mxu0
    %v337 = vadd.f32 0.0, %v336
    %v338 = vpop.f32.mrb[0].mxu0
    %339 = vmatprep.mubr.f32.mxu0 0.0
    %340 = vmatmul.mubr.f32.gmra.mrb[0].mxu0 %v144
    %v341 = vpop.f32.mrb[0].mxu0
    %v342 = vadd.f32 0.0, %v341
    %v343 = vpop.f32.mrb[0].mxu0
    %344 = vmatprep.mubr.f32.mxu0 0.0
    %345 = vmatmul.mubr.f32.gmra.mrb[0].mxu0 %v147
    %v346 = vpop.f32.mrb[0].mxu0
    %v347 = vadd.f32 0.0, %v346
    %v348 = vpop.f32.mrb[0].mxu0
    %349 = vmatprep.mubr.f32.mxu0 0.0
    %350 = vmatmul.mubr.f32.gmra.mrb[0].mxu0 %v150
    %v351 = vpop.f32.mrb[0].mxu0
    %v352 = vadd.f32 0.0, %v351
    %v353 = vpop.f32.mrb[0].mxu0
    %354 = vmatprep.mubr.f32.mxu0 0.0
    %355 = vmatmul.mubr.f32.gmra.mrb[0].mxu0 %v153
    %v356 = vpop.f32.mrb[0].mxu0
    %v357 = vadd.f32 0.0, %v356
    %v358 = vpop.f32.mrb[0].mxu0
    %359 = vmatprep.mubr.f32.mxu0 0.0
    %360 = vmatmul.mubr.f32.gmra.mrb[0].mxu0 %v156
    %v361 = vpop.f32.mrb[0].mxu0
    %v362 = vadd.f32 0.0, %v361
    %v363 = vpop.f32.mrb[0].mxu0
    %364 = vmatprep.mubr.f32.mxu0 0.0
    %365 = vmatmul.mubr.f32.gmra.mrb[0].mxu0 %v159
    %v366 = vpop.f32.mrb[0].mxu0
    %v367 = vadd.f32 0.0, %v366
    %v368 = vpop.f32.mrb[0].mxu0
    %369 = vmatprep.mubr.f32.mxu0 0.0
    %370 = vmatmul.mubr.f32.gmra.mrb[0].mxu0 %v162
    %v371 = vpop.f32.mrb[0].mxu0
    %v372 = vadd.f32 0.0, %v371
    %v373 = vpop.f32.mrb[0].mxu0
    %374 = vmatprep.mubr.f32.mxu0 0.0
    %375 = vmatmul.mubr.f32.gmra.mrb[0].mxu0 %v165
    %v376 = vpop.f32.mrb[0].mxu0
    %v377 = vadd.f32 0.0, %v376
    %v378 = vpop.f32.mrb[0].mxu0
    %379 = vmatprep.mubr.f32.mxu0 0.0
    %380 = vmatmul.mubr.f32.gmra.mrb[0].mxu0 %v168
    %v381 = vpop.f32.mrb[0].mxu0
    %v382 = vadd.f32 0.0, %v381
    %v383 = vpop.f32.mrb[0].mxu0
    %384 = vdwg.mxu0
    %v386 = vsel %vm79, %v45, 0
    %v389 = vsel %vm79, %v46, 0
    %v392 = vsel %vm79, %v47, 0
    %v395 = vsel %vm79, %v48, 0
    %v398 = vsel %vm79, %v49, 0
    %v401 = vsel %vm79, %v50, 0
    %v404 = vsel %vm79, %v51, 0
    %v407 = vsel %vm79, %v52, 0
    %v410 = vsel %vm79, %v53, 0
    %v413 = vsel %vm79, %v54, 0
    %v416 = vsel %vm79, %v55, 0
    %v419 = vsel %vm79, %v56, 0
    %v422 = vsel %vm79, %v57, 0
    %v425 = vsel %vm79, %v58, 0
    %v428 = vsel %vm79, %v59, 0
    %v431 = vsel %vm79, %v60, 0
    %v434 = vsel %vm79, %v61, 0
    %v437 = vsel %vm79, %v62, 0
    %v440 = vsel %vm79, %v63, 0
    %v443 = vsel %vm79, %v64, 0
    %v446 = vsel %vm79, %v65, 0
    %v449 = vsel %vm79, %v66, 0
    %v452 = vsel %vm79, %v67, 0
    %v455 = vsel %vm79, %v68, 0
    %v458 = vsel %vm79, %v69, 0
    %v461 = vsel %vm79, %v70, 0
    %v464 = vsel %vm79, %v71, 0
    %v467 = vsel %vm79, %v72, 0
    %v470 = vsel %vm79, %v73, 0
    %v473 = vsel %vm79, %v74, 0
    %475 = vmatprep.subr.mxu0 0.0
    %476 = vmatpush1.msra.mxu0 %v75
    %477 = vmatprep.subr.mxu0 0.0
    %478 = vmatpush1.msra.mxu0 %v76
    %479 = vmatprep.subr.mxu0 0.0
    %480 = vmatpush1.msra.mxu0 %v77
    %481 = vmatprep.subr.mxu0 0.0
    %482 = vmatpush1.msra.mxu0 %v78
    %483 = vmatprep.subr.mxu0 0.0
    %484 = vmatpush1.msra.mxu0 0.0
    %485 = vmatprep.subr.mxu0 0.0
    %486 = vmatpush1.msra.mxu0 0.0
    %487 = vmatprep.subr.mxu0 0.0
    %488 = vmatpush1.msra.mxu0 0.0
    %489 = vmatprep.subr.mxu0 0.0
    %490 = vmatpush1.msra.mxu0 0.0
    %491 = vmatprep.subr.mxu0 0.0
    %492 = vmatpush1.msra.mxu0 0.0
    %493 = vmatprep.subr.mxu0 0.0
    %494 = vmatpush1.msra.mxu0 0.0
    %495 = vmatprep.subr.mxu0 0.0
    %496 = vmatpush1.msra.mxu0 0.0
    %497 = vmatprep.subr.mxu0 0.0
    %498 = vmatpush1.msra.mxu0 0.0
    %499 = vmatprep.subr.mxu0 0.0
    %500 = vmatpush1.msra.mxu0 0.0
    %501 = vmatprep.subr.mxu0 0.0
    %502 = vmatpush1.msra.mxu0 0.0
    %503 = vmatprep.subr.mxu0 0.0
    %504 = vmatpush1.msra.mxu0 0.0
    %505 = vmatprep.subr.mxu0 0.0
    %506 = vmatpush1.msra.mxu0 0.0
    %507 = vmatprep.subr.mxu0 0.0
    %508 = vmatpush1.msra.mxu0 0.0
    %509 = vmatprep.subr.mxu0 0.0
    %510 = vmatpush1.msra.mxu0 0.0
    %511 = vmatprep.subr.mxu0 0.0
    %512 = vmatpush1.msra.mxu0 0.0
    %513 = vmatprep.subr.mxu0 0.0
    %514 = vmatpush1.msra.mxu0 0.0
    %515 = vmatprep.subr.mxu0 0.0
    %516 = vmatpush1.msra.mxu0 0.0
    %517 = vmatprep.subr.mxu0 0.0
    %518 = vmatpush1.msra.mxu0 0.0
    %519 = vmatprep.subr.mxu0 0.0
    %520 = vmatpush1.msra.mxu0 0.0
    %521 = vmatprep.subr.mxu0 0.0
    %522 = vmatpush1.msra.mxu0 0.0
    %523 = vmatprep.subr.mxu0 0.0
    %524 = vmatpush1.msra.mxu0 0.0
    %525 = vmatprep.subr.mxu0 0.0
    %526 = vmatpush1.msra.mxu0 0.0
    %527 = vmatprep.subr.mxu0 0.0
    %528 = vmatpush1.msra.mxu0 0.0
    %529 = vmatprep.subr.mxu0 0.0
    %530 = vmatpush1.msra.mxu0 0.0
    %531 = vmatprep.subr.mxu0 0.0
    %532 = vmatpush1.msra.mxu0 0.0
    %533 = vmatprep.subr.mxu0 0.0
    %534 = vmatpush1.msra.mxu0 0.0
    %535 = vmatprep.subr.mxu0 0.0
    %536 = vmatpush1.msra.mxu0 0.0
    %537 = vmatprep.subr.mxu0 0.0
    %538 = vmatpush1.msra.mxu0 0.0
    %539 = vmatprep.mubr.f32.mxu0 0.0
    %540 = vmatmul.mubr.f32.gmra.mrb[0].mxu0 %v386
    %v541 = vpop.f32.mrb[0].mxu0
    %v542 = vadd.f32 0.0, %v541
    %v543 = vpop.f32.mrb[0].mxu0
    %544 = vmatprep.mubr.f32.mxu0 0.0
    %545 = vmatmul.mubr.f32.gmra.mrb[0].mxu0 %v389
    %v546 = vpop.f32.mrb[0].mxu0
    %v547 = vadd.f32 0.0, %v546
    %v548 = vpop.f32.mrb[0].mxu0
    %549 = vmatprep.mubr.f32.mxu0 0.0
    %550 = vmatmul.mubr.f32.gmra.mrb[0].mxu0 %v392
    %v551 = vpop.f32.mrb[0].mxu0
    %v552 = vadd.f32 0.0, %v551
    %v553 = vpop.f32.mrb[0].mxu0
    %554 = vmatprep.mubr.f32.mxu0 0.0
    %555 = vmatmul.mubr.f32.gmra.mrb[0].mxu0 %v395
    %v556 = vpop.f32.mrb[0].mxu0
    %v557 = vadd.f32 0.0, %v556
    %v558 = vpop.f32.mrb[0].mxu0
    %559 = vmatprep.mubr.f32.mxu0 0.0
    %560 = vmatmul.mubr.f32.gmra.mrb[0].mxu0 %v398
    %v561 = vpop.f32.mrb[0].mxu0
    %v562 = vadd.f32 0.0, %v561
    %v563 = vpop.f32.mrb[0].mxu0
    %564 = vmatprep.mubr.f32.mxu0 0.0
    %565 = vmatmul.mubr.f32.gmra.mrb[0].mxu0 %v401
    %v566 = vpop.f32.mrb[0].mxu0
    %v567 = vadd.f32 0.0, %v566
    %v568 = vpop.f32.mrb[0].mxu0
    %569 = vmatprep.mubr.f32.mxu0 0.0
    %570 = vmatmul.mubr.f32.gmra.mrb[0].mxu0 %v404
    %v571 = vpop.f32.mrb[0].mxu0
    %v572 = vadd.f32 0.0, %v571
    %v573 = vpop.f32.mrb[0].mxu0
    %574 = vmatprep.mubr.f32.mxu0 0.0
    %575 = vmatmul.mubr.f32.gmra.mrb[0].mxu0 %v407
    %v576 = vpop.f32.mrb[0].mxu0
    %v577 = vadd.f32 0.0, %v576
    %v578 = vpop.f32.mrb[0].mxu0
    %579 = vmatprep.mubr.f32.mxu0 0.0
    %580 = vmatmul.mubr.f32.gmra.mrb[0].mxu0 %v410
    %v581 = vpop.f32.mrb[0].mxu0
    %v582 = vadd.f32 0.0, %v581
    %v583 = vpop.f32.mrb[0].mxu0
    %584 = vmatprep.mubr.f32.mxu0 0.0
    %585 = vmatmul.mubr.f32.gmra.mrb[0].mxu0 %v413
    %v586 = vpop.f32.mrb[0].mxu0
    %v587 = vadd.f32 0.0, %v586
    %v588 = vpop.f32.mrb[0].mxu0
    %589 = vmatprep.mubr.f32.mxu0 0.0
    %590 = vmatmul.mubr.f32.gmra.mrb[0].mxu0 %v416
    %v591 = vpop.f32.mrb[0].mxu0
    %v592 = vadd.f32 0.0, %v591
    %v593 = vpop.f32.mrb[0].mxu0
    %594 = vmatprep.mubr.f32.mxu0 0.0
    %595 = vmatmul.mubr.f32.gmra.mrb[0].mxu0 %v419
    %v596 = vpop.f32.mrb[0].mxu0
    %v597 = vadd.f32 0.0, %v596
    %v598 = vpop.f32.mrb[0].mxu0
    %599 = vmatprep.mubr.f32.mxu0 0.0
    %600 = vmatmul.mubr.f32.gmra.mrb[0].mxu0 %v422
    %v601 = vpop.f32.mrb[0].mxu0
    %v602 = vadd.f32 0.0, %v601
    %v603 = vpop.f32.mrb[0].mxu0
    %604 = vmatprep.mubr.f32.mxu0 0.0
    %605 = vmatmul.mubr.f32.gmra.mrb[0].mxu0 %v425
    %v606 = vpop.f32.mrb[0].mxu0
    %v607 = vadd.f32 0.0, %v606
    %v608 = vpop.f32.mrb[0].mxu0
    %609 = vmatprep.mubr.f32.mxu0 0.0
    %610 = vmatmul.mubr.f32.gmra.mrb[0].mxu0 %v428
    %v611 = vpop.f32.mrb[0].mxu0
    %v612 = vadd.f32 0.0, %v611
    %v613 = vpop.f32.mrb[0].mxu0
    %614 = vmatprep.mubr.f32.mxu0 0.0
    %615 = vmatmul.mubr.f32.gmra.mrb[0].mxu0 %v431
    %v616 = vpop.f32.mrb[0].mxu0
    %v617 = vadd.f32 0.0, %v616
    %v618 = vpop.f32.mrb[0].mxu0
    %619 = vmatprep.mubr.f32.mxu0 0.0
    %620 = vmatmul.mubr.f32.gmra.mrb[0].mxu0 %v434
    %v621 = vpop.f32.mrb[0].mxu0
    %v622 = vadd.f32 0.0, %v621
    %v623 = vpop.f32.mrb[0].mxu0
    %624 = vmatprep.mubr.f32.mxu0 0.0
    %625 = vmatmul.mubr.f32.gmra.mrb[0].mxu0 %v437
    %v626 = vpop.f32.mrb[0].mxu0
    %v627 = vadd.f32 0.0, %v626
    %v628 = vpop.f32.mrb[0].mxu0
    %629 = vmatprep.mubr.f32.mxu0 0.0
    %630 = vmatmul.mubr.f32.gmra.mrb[0].mxu0 %v440
    %v631 = vpop.f32.mrb[0].mxu0
    %v632 = vadd.f32 0.0, %v631
    %v633 = vpop.f32.mrb[0].mxu0
    %634 = vmatprep.mubr.f32.mxu0 0.0
    %635 = vmatmul.mubr.f32.gmra.mrb[0].mxu0 %v443
    %v636 = vpop.f32.mrb[0].mxu0
    %v637 = vadd.f32 0.0, %v636
    %v638 = vpop.f32.mrb[0].mxu0
    %639 = vmatprep.mubr.f32.mxu0 0.0
    %640 = vmatmul.mubr.f32.gmra.mrb[0].mxu0 %v446
    %v641 = vpop.f32.mrb[0].mxu0
    %v642 = vadd.f32 0.0, %v641
    %v643 = vpop.f32.mrb[0].mxu0
    %644 = vmatprep.mubr.f32.mxu0 0.0
    %645 = vmatmul.mubr.f32.gmra.mrb[0].mxu0 %v449
    %v646 = vpop.f32.mrb[0].mxu0
    %v647 = vadd.f32 0.0, %v646
    %v648 = vpop.f32.mrb[0].mxu0
    %649 = vmatprep.mubr.f32.mxu0 0.0
    %650 = vmatmul.mubr.f32.gmra.mrb[0].mxu0 %v452
    %v651 = vpop.f32.mrb[0].mxu0
    %v652 = vadd.f32 0.0, %v651
    %v653 = vpop.f32.mrb[0].mxu0
    %654 = vmatprep.mubr.f32.mxu0 0.0
    %655 = vmatmul.mubr.f32.gmra.mrb[0].mxu0 %v455
    %v656 = vpop.f32.mrb[0].mxu0
    %v657 = vadd.f32 0.0, %v656
    %v658 = vpop.f32.mrb[0].mxu0
    %659 = vmatprep.mubr.f32.mxu0 0.0
    %660 = vmatmul.mubr.f32.gmra.mrb[0].mxu0 %v458
    %v661 = vpop.f32.mrb[0].mxu0
    %v662 = vadd.f32 0.0, %v661
    %v663 = vpop.f32.mrb[0].mxu0
    %664 = vmatprep.mubr.f32.mxu0 0.0
    %665 = vmatmul.mubr.f32.gmra.mrb[0].mxu0 %v461
    %v666 = vpop.f32.mrb[0].mxu0
    %v667 = vadd.f32 0.0, %v666
    %v668 = vpop.f32.mrb[0].mxu0
    %669 = vmatprep.mubr.f32.mxu0 0.0
    %670 = vmatmul.mubr.f32.gmra.mrb[0].mxu0 %v464
    %v671 = vpop.f32.mrb[0].mxu0
    %v672 = vadd.f32 0.0, %v671
    %v673 = vpop.f32.mrb[0].mxu0
    %674 = vmatprep.mubr.f32.mxu0 0.0
    %675 = vmatmul.mubr.f32.gmra.mrb[0].mxu0 %v467
    %v676 = vpop.f32.mrb[0].mxu0
    %v677 = vadd.f32 0.0, %v676
    %v678 = vpop.f32.mrb[0].mxu0
    %679 = vmatprep.mubr.f32.mxu0 0.0
    %680 = vmatmul.mubr.f32.gmra.mrb[0].mxu0 %v470
    %v681 = vpop.f32.mrb[0].mxu0
    %v682 = vadd.f32 0.0, %v681
    %v683 = vpop.f32.mrb[0].mxu0
    %684 = vmatprep.mubr.f32.mxu0 0.0
    %685 = vmatmul.mubr.f32.gmra.mrb[0].mxu0 %v473
    %v686 = vpop.f32.mrb[0].mxu0
    %v687 = vadd.f32 0.0, %v686
    %v688 = vpop.f32.mrb[0].mxu0
    %689 = vdwg.mxu0
    %v690 = vmul.f32 %v15, %v15
    %v691 = vmul.f32 %v16, %v16
    %v692 = vmul.f32 %v17, %v17
    %v693 = vmul.f32 %v18, %v18
    %v694 = vmul.f32 %v19, %v19
    %v695 = vmul.f32 %v20, %v20
    %v696 = vmul.f32 %v21, %v21
    %v697 = vmul.f32 %v22, %v22
    %v698 = vmul.f32 %v23, %v23
    %v699 = vmul.f32 %v24, %v24
    %v700 = vmul.f32 %v25, %v25
    %v701 = vmul.f32 %v26, %v26
    %v702 = vmul.f32 %v27, %v27
    %v703 = vmul.f32 %v28, %v28
    %v704 = vmul.f32 %v29, %v29
    %v705 = vmul.f32 %v30, %v30
    %v706 = vmul.f32 %v31, %v31
    %v707 = vmul.f32 %v32, %v32
    %v708 = vmul.f32 %v33, %v33
    %v709 = vmul.f32 %v34, %v34
    %v710 = vmul.f32 %v35, %v35
    %v711 = vmul.f32 %v36, %v36
    %v712 = vmul.f32 %v37, %v37
    %v713 = vmul.f32 %v38, %v38
    %v714 = vmul.f32 %v39, %v39
    %v715 = vmul.f32 %v40, %v40
    %v716 = vmul.f32 %v41, %v41
    %v717 = vmul.f32 %v42, %v42
    %v718 = vmul.f32 %v43, %v43
    %v719 = vmul.f32 %v44, %v44
    %v721 = vsel %vm79, %v690, 0
    %v724 = vsel %vm79, %v691, 0
    %v727 = vsel %vm79, %v692, 0
    %v730 = vsel %vm79, %v693, 0
    %v733 = vsel %vm79, %v694, 0
    %v736 = vsel %vm79, %v695, 0
    %v739 = vsel %vm79, %v696, 0
    %v742 = vsel %vm79, %v697, 0
    %v745 = vsel %vm79, %v698, 0
    %v748 = vsel %vm79, %v699, 0
    %v751 = vsel %vm79, %v700, 0
    %v754 = vsel %vm79, %v701, 0
    %v757 = vsel %vm79, %v702, 0
    %v760 = vsel %vm79, %v703, 0
    %v763 = vsel %vm79, %v704, 0
    %v766 = vsel %vm79, %v705, 0
    %v769 = vsel %vm79, %v706, 0
    %v772 = vsel %vm79, %v707, 0
    %v775 = vsel %vm79, %v708, 0
    %v778 = vsel %vm79, %v709, 0
    %v781 = vsel %vm79, %v710, 0
    %v784 = vsel %vm79, %v711, 0
    %v787 = vsel %vm79, %v712, 0
    %v790 = vsel %vm79, %v713, 0
    %v793 = vsel %vm79, %v714, 0
    %v796 = vsel %vm79, %v715, 0
    %v799 = vsel %vm79, %v716, 0
    %v802 = vsel %vm79, %v717, 0
    %v805 = vsel %vm79, %v718, 0
    %v808 = vsel %vm79, %v719, 0
    %810 = vmatprep.subr.mxu0 0.0
    %811 = vmatpush1.msra.mxu0 %v75
    %812 = vmatprep.subr.mxu0 0.0
    %813 = vmatpush1.msra.mxu0 %v76
    %814 = vmatprep.subr.mxu0 0.0
    %815 = vmatpush1.msra.mxu0 %v77
    %816 = vmatprep.subr.mxu0 0.0
    %817 = vmatpush1.msra.mxu0 %v78
    %818 = vmatprep.subr.mxu0 0.0
    %819 = vmatpush1.msra.mxu0 0.0
    %820 = vmatprep.subr.mxu0 0.0
    %821 = vmatpush1.msra.mxu0 0.0
    %822 = vmatprep.subr.mxu0 0.0
    %823 = vmatpush1.msra.mxu0 0.0
    %824 = vmatprep.subr.mxu0 0.0
    %825 = vmatpush1.msra.mxu0 0.0
    %826 = vmatprep.subr.mxu0 0.0
    %827 = vmatpush1.msra.mxu0 0.0
    %828 = vmatprep.subr.mxu0 0.0
    %829 = vmatpush1.msra.mxu0 0.0
    %830 = vmatprep.subr.mxu0 0.0
    %831 = vmatpush1.msra.mxu0 0.0
    %832 = vmatprep.subr.mxu0 0.0
    %833 = vmatpush1.msra.mxu0 0.0
    %834 = vmatprep.subr.mxu0 0.0
    %835 = vmatpush1.msra.mxu0 0.0
    %836 = vmatprep.subr.mxu0 0.0
    %837 = vmatpush1.msra.mxu0 0.0
    %838 = vmatprep.subr.mxu0 0.0
    %839 = vmatpush1.msra.mxu0 0.0
    %840 = vmatprep.subr.mxu0 0.0
    %841 = vmatpush1.msra.mxu0 0.0
    %842 = vmatprep.subr.mxu0 0.0
    %843 = vmatpush1.msra.mxu0 0.0
    %844 = vmatprep.subr.mxu0 0.0
    %845 = vmatpush1.msra.mxu0 0.0
    %846 = vmatprep.subr.mxu0 0.0
    %847 = vmatpush1.msra.mxu0 0.0
    %848 = vmatprep.subr.mxu0 0.0
    %849 = vmatpush1.msra.mxu0 0.0
    %850 = vmatprep.subr.mxu0 0.0
    %851 = vmatpush1.msra.mxu0 0.0
    %852 = vmatprep.subr.mxu0 0.0
    %853 = vmatpush1.msra.mxu0 0.0
    %854 = vmatprep.subr.mxu0 0.0
    %855 = vmatpush1.msra.mxu0 0.0
    %856 = vmatprep.subr.mxu0 0.0
    %857 = vmatpush1.msra.mxu0 0.0
    %858 = vmatprep.subr.mxu0 0.0
    %859 = vmatpush1.msra.mxu0 0.0
    %860 = vmatprep.subr.mxu0 0.0
    %861 = vmatpush1.msra.mxu0 0.0
    %862 = vmatprep.subr.mxu0 0.0
    %863 = vmatpush1.msra.mxu0 0.0
    %864 = vmatprep.subr.mxu0 0.0
    %865 = vmatpush1.msra.mxu0 0.0
    %866 = vmatprep.subr.mxu0 0.0
    %867 = vmatpush1.msra.mxu0 0.0
    %868 = vmatprep.subr.mxu0 0.0
    %869 = vmatpush1.msra.mxu0 0.0
    %870 = vmatprep.subr.mxu0 0.0
    %871 = vmatpush1.msra.mxu0 0.0
    %872 = vmatprep.subr.mxu0 0.0
    %873 = vmatpush1.msra.mxu0 0.0
    %874 = vmatprep.mubr.f32.mxu0 0.0
    %875 = vmatmul.mubr.f32.gmra.mrb[0].mxu0 %v721
    %v876 = vpop.f32.mrb[0].mxu0
    %v877 = vadd.f32 0.0, %v876
    %v878 = vpop.f32.mrb[0].mxu0
    %879 = vmatprep.mubr.f32.mxu0 0.0
    %880 = vmatmul.mubr.f32.gmra.mrb[0].mxu0 %v724
    %v881 = vpop.f32.mrb[0].mxu0
    %v882 = vadd.f32 0.0, %v881
    %v883 = vpop.f32.mrb[0].mxu0
    %884 = vmatprep.mubr.f32.mxu0 0.0
    %885 = vmatmul.mubr.f32.gmra.mrb[0].mxu0 %v727
    %v886 = vpop.f32.mrb[0].mxu0
    %v887 = vadd.f32 0.0, %v886
    %v888 = vpop.f32.mrb[0].mxu0
    %889 = vmatprep.mubr.f32.mxu0 0.0
    %890 = vmatmul.mubr.f32.gmra.mrb[0].mxu0 %v730
    %v891 = vpop.f32.mrb[0].mxu0
    %v892 = vadd.f32 0.0, %v891
    %v893 = vpop.f32.mrb[0].mxu0
    %894 = vmatprep.mubr.f32.mxu0 0.0
    %895 = vmatmul.mubr.f32.gmra.mrb[0].mxu0 %v733
    %v896 = vpop.f32.mrb[0].mxu0
    %v897 = vadd.f32 0.0, %v896
    %v898 = vpop.f32.mrb[0].mxu0
    %899 = vmatprep.mubr.f32.mxu0 0.0
    %900 = vmatmul.mubr.f32.gmra.mrb[0].mxu0 %v736
    %v901 = vpop.f32.mrb[0].mxu0
    %v902 = vadd.f32 0.0, %v901
    %v903 = vpop.f32.mrb[0].mxu0
    %904 = vmatprep.mubr.f32.mxu0 0.0
    %905 = vmatmul.mubr.f32.gmra.mrb[0].mxu0 %v739
    %v906 = vpop.f32.mrb[0].mxu0
    %v907 = vadd.f32 0.0, %v906
    %v908 = vpop.f32.mrb[0].mxu0
    %909 = vmatprep.mubr.f32.mxu0 0.0
    %910 = vmatmul.mubr.f32.gmra.mrb[0].mxu0 %v742
    %v911 = vpop.f32.mrb[0].mxu0
    %v912 = vadd.f32 0.0, %v911
    %v913 = vpop.f32.mrb[0].mxu0
    %914 = vmatprep.mubr.f32.mxu0 0.0
    %915 = vmatmul.mubr.f32.gmra.mrb[0].mxu0 %v745
    %v916 = vpop.f32.mrb[0].mxu0
    %v917 = vadd.f32 0.0, %v916
    %v918 = vpop.f32.mrb[0].mxu0
    %919 = vmatprep.mubr.f32.mxu0 0.0
    %920 = vmatmul.mubr.f32.gmra.mrb[0].mxu0 %v748
    %v921 = vpop.f32.mrb[0].mxu0
    %v922 = vadd.f32 0.0, %v921
    %v923 = vpop.f32.mrb[0].mxu0
    %924 = vmatprep.mubr.f32.mxu0 0.0
    %925 = vmatmul.mubr.f32.gmra.mrb[0].mxu0 %v751
    %v926 = vpop.f32.mrb[0].mxu0
    %v927 = vadd.f32 0.0, %v926
    %v928 = vpop.f32.mrb[0].mxu0
    %929 = vmatprep.mubr.f32.mxu0 0.0
    %930 = vmatmul.mubr.f32.gmra.mrb[0].mxu0 %v754
    %v931 = vpop.f32.mrb[0].mxu0
    %v932 = vadd.f32 0.0, %v931
    %v933 = vpop.f32.mrb[0].mxu0
    %934 = vmatprep.mubr.f32.mxu0 0.0
    %935 = vmatmul.mubr.f32.gmra.mrb[0].mxu0 %v757
    %v936 = vpop.f32.mrb[0].mxu0
    %v937 = vadd.f32 0.0, %v936
    %v938 = vpop.f32.mrb[0].mxu0
    %939 = vmatprep.mubr.f32.mxu0 0.0
    %940 = vmatmul.mubr.f32.gmra.mrb[0].mxu0 %v760
    %v941 = vpop.f32.mrb[0].mxu0
    %v942 = vadd.f32 0.0, %v941
    %v943 = vpop.f32.mrb[0].mxu0
    %944 = vmatprep.mubr.f32.mxu0 0.0
    %945 = vmatmul.mubr.f32.gmra.mrb[0].mxu0 %v763
    %v946 = vpop.f32.mrb[0].mxu0
    %v947 = vadd.f32 0.0, %v946
    %v948 = vpop.f32.mrb[0].mxu0
    %949 = vmatprep.mubr.f32.mxu0 0.0
    %950 = vmatmul.mubr.f32.gmra.mrb[0].mxu0 %v766
    %v951 = vpop.f32.mrb[0].mxu0
    %v952 = vadd.f32 0.0, %v951
    %v953 = vpop.f32.mrb[0].mxu0
    %954 = vmatprep.mubr.f32.mxu0 0.0
    %955 = vmatmul.mubr.f32.gmra.mrb[0].mxu0 %v769
    %v956 = vpop.f32.mrb[0].mxu0
    %v957 = vadd.f32 0.0, %v956
    %v958 = vpop.f32.mrb[0].mxu0
    %959 = vmatprep.mubr.f32.mxu0 0.0
    %960 = vmatmul.mubr.f32.gmra.mrb[0].mxu0 %v772
    %v961 = vpop.f32.mrb[0].mxu0
    %v962 = vadd.f32 0.0, %v961
    %v963 = vpop.f32.mrb[0].mxu0
    %964 = vmatprep.mubr.f32.mxu0 0.0
    %965 = vmatmul.mubr.f32.gmra.mrb[0].mxu0 %v775
    %v966 = vpop.f32.mrb[0].mxu0
    %v967 = vadd.f32 0.0, %v966
    %v968 = vpop.f32.mrb[0].mxu0
    %969 = vmatprep.mubr.f32.mxu0 0.0
    %970 = vmatmul.mubr.f32.gmra.mrb[0].mxu0 %v778
    %v971 = vpop.f32.mrb[0].mxu0
    %v972 = vadd.f32 0.0, %v971
    %v973 = vpop.f32.mrb[0].mxu0
    %974 = vmatprep.mubr.f32.mxu0 0.0
    %975 = vmatmul.mubr.f32.gmra.mrb[0].mxu0 %v781
    %v976 = vpop.f32.mrb[0].mxu0
    %v977 = vadd.f32 0.0, %v976
    %v978 = vpop.f32.mrb[0].mxu0
    %979 = vmatprep.mubr.f32.mxu0 0.0
    %980 = vmatmul.mubr.f32.gmra.mrb[0].mxu0 %v784
    %v981 = vpop.f32.mrb[0].mxu0
    %v982 = vadd.f32 0.0, %v981
    %v983 = vpop.f32.mrb[0].mxu0
    %984 = vmatprep.mubr.f32.mxu0 0.0
    %985 = vmatmul.mubr.f32.gmra.mrb[0].mxu0 %v787
    %v986 = vpop.f32.mrb[0].mxu0
    %v987 = vadd.f32 0.0, %v986
    %v988 = vpop.f32.mrb[0].mxu0
    %989 = vmatprep.mubr.f32.mxu0 0.0
    %990 = vmatmul.mubr.f32.gmra.mrb[0].mxu0 %v790
    %v991 = vpop.f32.mrb[0].mxu0
    %v992 = vadd.f32 0.0, %v991
    %v993 = vpop.f32.mrb[0].mxu0
    %994 = vmatprep.mubr.f32.mxu0 0.0
    %995 = vmatmul.mubr.f32.gmra.mrb[0].mxu0 %v793
    %v996 = vpop.f32.mrb[0].mxu0
    %v997 = vadd.f32 0.0, %v996
    %v998 = vpop.f32.mrb[0].mxu0
    %999 = vmatprep.mubr.f32.mxu0 0.0
    %1000 = vmatmul.mubr.f32.gmra.mrb[0].mxu0 %v796
    %v1001 = vpop.f32.mrb[0].mxu0
    %v1002 = vadd.f32 0.0, %v1001
    %v1003 = vpop.f32.mrb[0].mxu0
    %1004 = vmatprep.mubr.f32.mxu0 0.0
    %1005 = vmatmul.mubr.f32.gmra.mrb[0].mxu0 %v799
    %v1006 = vpop.f32.mrb[0].mxu0
    %v1007 = vadd.f32 0.0, %v1006
    %v1008 = vpop.f32.mrb[0].mxu0
    %1009 = vmatprep.mubr.f32.mxu0 0.0
    %1010 = vmatmul.mubr.f32.gmra.mrb[0].mxu0 %v802
    %v1011 = vpop.f32.mrb[0].mxu0
    %v1012 = vadd.f32 0.0, %v1011
    %v1013 = vpop.f32.mrb[0].mxu0
    %1014 = vmatprep.mubr.f32.mxu0 0.0
    %1015 = vmatmul.mubr.f32.gmra.mrb[0].mxu0 %v805
    %v1016 = vpop.f32.mrb[0].mxu0
    %v1017 = vadd.f32 0.0, %v1016
    %v1018 = vpop.f32.mrb[0].mxu0
    %1019 = vmatprep.mubr.f32.mxu0 0.0
    %1020 = vmatmul.mubr.f32.gmra.mrb[0].mxu0 %v808
    %v1021 = vpop.f32.mrb[0].mxu0
    %v1022 = vadd.f32 0.0, %v1021
    %v1023 = vpop.f32.mrb[0].mxu0
    %1024 = vdwg.mxu0
    %v1025 = vmul.f32 %v45, %v45
    %v1026 = vmul.f32 %v46, %v46
    %v1027 = vmul.f32 %v47, %v47
    %v1028 = vmul.f32 %v48, %v48
    %v1029 = vmul.f32 %v49, %v49
    %v1030 = vmul.f32 %v50, %v50
    %v1031 = vmul.f32 %v51, %v51
    %v1032 = vmul.f32 %v52, %v52
    %v1033 = vmul.f32 %v53, %v53
    %v1034 = vmul.f32 %v54, %v54
    %v1035 = vmul.f32 %v55, %v55
    %v1036 = vmul.f32 %v56, %v56
    %v1037 = vmul.f32 %v57, %v57
    %v1038 = vmul.f32 %v58, %v58
    %v1039 = vmul.f32 %v59, %v59
    %v1040 = vmul.f32 %v60, %v60
    %v1041 = vmul.f32 %v61, %v61
    %v1042 = vmul.f32 %v62, %v62
    %v1043 = vmul.f32 %v63, %v63
    %v1044 = vmul.f32 %v64, %v64
    %v1045 = vmul.f32 %v65, %v65
    %v1046 = vmul.f32 %v66, %v66
    %v1047 = vmul.f32 %v67, %v67
    %v1048 = vmul.f32 %v68, %v68
    %v1049 = vmul.f32 %v69, %v69
    %v1050 = vmul.f32 %v70, %v70
    %v1051 = vmul.f32 %v71, %v71
    %v1052 = vmul.f32 %v72, %v72
    %v1053 = vmul.f32 %v73, %v73
    %v1054 = vmul.f32 %v74, %v74
    %v1056 = vsel %vm79, %v1025, 0
    %v1059 = vsel %vm79, %v1026, 0
    %v1062 = vsel %vm79, %v1027, 0
    %v1065 = vsel %vm79, %v1028, 0
    %v1068 = vsel %vm79, %v1029, 0
    %v1071 = vsel %vm79, %v1030, 0
    %v1074 = vsel %vm79, %v1031, 0
    %v1077 = vsel %vm79, %v1032, 0
    %v1080 = vsel %vm79, %v1033, 0
    %v1083 = vsel %vm79, %v1034, 0
    %v1086 = vsel %vm79, %v1035, 0
    %v1089 = vsel %vm79, %v1036, 0
    %v1092 = vsel %vm79, %v1037, 0
    %v1095 = vsel %vm79, %v1038, 0
    %v1098 = vsel %vm79, %v1039, 0
    %v1101 = vsel %vm79, %v1040, 0
    %v1104 = vsel %vm79, %v1041, 0
    %v1107 = vsel %vm79, %v1042, 0
    %v1110 = vsel %vm79, %v1043, 0
    %v1113 = vsel %vm79, %v1044, 0
    %v1116 = vsel %vm79, %v1045, 0
    %v1119 = vsel %vm79, %v1046, 0
    %v1122 = vsel %vm79, %v1047, 0
    %v1125 = vsel %vm79, %v1048, 0
    %v1128 = vsel %vm79, %v1049, 0
    %v1131 = vsel %vm79, %v1050, 0
    %v1134 = vsel %vm79, %v1051, 0
    %v1137 = vsel %vm79, %v1052, 0
    %v1140 = vsel %vm79, %v1053, 0
    %v1143 = vsel %vm79, %v1054, 0
    %1145 = vmatprep.subr.mxu0 0.0
    %1146 = vmatpush1.msra.mxu0 %v75
    %1147 = vmatprep.subr.mxu0 0.0
    %1148 = vmatpush1.msra.mxu0 %v76
    %1149 = vmatprep.subr.mxu0 0.0
    %1150 = vmatpush1.msra.mxu0 %v77
    %1151 = vmatprep.subr.mxu0 0.0
    %1152 = vmatpush1.msra.mxu0 %v78
    %1153 = vmatprep.subr.mxu0 0.0
    %1154 = vmatpush1.msra.mxu0 0.0
    %1155 = vmatprep.subr.mxu0 0.0
    %1156 = vmatpush1.msra.mxu0 0.0
    %1157 = vmatprep.subr.mxu0 0.0
    %1158 = vmatpush1.msra.mxu0 0.0
    %1159 = vmatprep.subr.mxu0 0.0
    %1160 = vmatpush1.msra.mxu0 0.0
    %1161 = vmatprep.subr.mxu0 0.0
    %1162 = vmatpush1.msra.mxu0 0.0
    %1163 = vmatprep.subr.mxu0 0.0
    %1164 = vmatpush1.msra.mxu0 0.0
    %1165 = vmatprep.subr.mxu0 0.0
    %1166 = vmatpush1.msra.mxu0 0.0
    %1167 = vmatprep.subr.mxu0 0.0
    %1168 = vmatpush1.msra.mxu0 0.0
    %1169 = vmatprep.subr.mxu0 0.0
    %1170 = vmatpush1.msra.mxu0 0.0
    %1171 = vmatprep.subr.mxu0 0.0
    %1172 = vmatpush1.msra.mxu0 0.0
    %1173 = vmatprep.subr.mxu0 0.0
    %1174 = vmatpush1.msra.mxu0 0.0
    %1175 = vmatprep.subr.mxu0 0.0
    %1176 = vmatpush1.msra.mxu0 0.0
    %1177 = vmatprep.subr.mxu0 0.0
    %1178 = vmatpush1.msra.mxu0 0.0
    %1179 = vmatprep.subr.mxu0 0.0
    %1180 = vmatpush1.msra.mxu0 0.0
    %1181 = vmatprep.subr.mxu0 0.0
    %1182 = vmatpush1.msra.mxu0 0.0
    %1183 = vmatprep.subr.mxu0 0.0
    %1184 = vmatpush1.msra.mxu0 0.0
    %1185 = vmatprep.subr.mxu0 0.0
    %1186 = vmatpush1.msra.mxu0 0.0
    %1187 = vmatprep.subr.mxu0 0.0
    %1188 = vmatpush1.msra.mxu0 0.0
    %1189 = vmatprep.subr.mxu0 0.0
    %1190 = vmatpush1.msra.mxu0 0.0
    %1191 = vmatprep.subr.mxu0 0.0
    %1192 = vmatpush1.msra.mxu0 0.0
    %1193 = vmatprep.subr.mxu0 0.0
    %1194 = vmatpush1.msra.mxu0 0.0
    %1195 = vmatprep.subr.mxu0 0.0
    %1196 = vmatpush1.msra.mxu0 0.0
    %1197 = vmatprep.subr.mxu0 0.0
    %1198 = vmatpush1.msra.mxu0 0.0
    %1199 = vmatprep.subr.mxu0 0.0
    %1200 = vmatpush1.msra.mxu0 0.0
    %1201 = vmatprep.subr.mxu0 0.0
    %1202 = vmatpush1.msra.mxu0 0.0
    %1203 = vmatprep.subr.mxu0 0.0
    %1204 = vmatpush1.msra.mxu0 0.0
    %1205 = vmatprep.subr.mxu0 0.0
    %1206 = vmatpush1.msra.mxu0 0.0
    %1207 = vmatprep.subr.mxu0 0.0
    %1208 = vmatpush1.msra.mxu0 0.0
    %1209 = vmatprep.mubr.f32.mxu0 0.0
    %1210 = vmatmul.mubr.f32.gmra.mrb[0].mxu0 %v1056
    %v1211 = vpop.f32.mrb[0].mxu0
    %v1212 = vadd.f32 0.0, %v1211
    %v1213 = vpop.f32.mrb[0].mxu0
    %1214 = vmatprep.mubr.f32.mxu0 0.0
    %1215 = vmatmul.mubr.f32.gmra.mrb[0].mxu0 %v1059
    %v1216 = vpop.f32.mrb[0].mxu0
    %v1217 = vadd.f32 0.0, %v1216
    %v1218 = vpop.f32.mrb[0].mxu0
    %1219 = vmatprep.mubr.f32.mxu0 0.0
    %1220 = vmatmul.mubr.f32.gmra.mrb[0].mxu0 %v1062
    %v1221 = vpop.f32.mrb[0].mxu0
    %v1222 = vadd.f32 0.0, %v1221
    %v1223 = vpop.f32.mrb[0].mxu0
    %1224 = vmatprep.mubr.f32.mxu0 0.0
    %1225 = vmatmul.mubr.f32.gmra.mrb[0].mxu0 %v1065
    %v1226 = vpop.f32.mrb[0].mxu0
    %v1227 = vadd.f32 0.0, %v1226
    %v1228 = vpop.f32.mrb[0].mxu0
    %1229 = vmatprep.mubr.f32.mxu0 0.0
    %1230 = vmatmul.mubr.f32.gmra.mrb[0].mxu0 %v1068
    %v1231 = vpop.f32.mrb[0].mxu0
    %v1232 = vadd.f32 0.0, %v1231
    %v1233 = vpop.f32.mrb[0].mxu0
    %1234 = vmatprep.mubr.f32.mxu0 0.0
    %1235 = vmatmul.mubr.f32.gmra.mrb[0].mxu0 %v1071
    %v1236 = vpop.f32.mrb[0].mxu0
    %v1237 = vadd.f32 0.0, %v1236
    %v1238 = vpop.f32.mrb[0].mxu0
    %1239 = vmatprep.mubr.f32.mxu0 0.0
    %1240 = vmatmul.mubr.f32.gmra.mrb[0].mxu0 %v1074
    %v1241 = vpop.f32.mrb[0].mxu0
    %v1242 = vadd.f32 0.0, %v1241
    %v1243 = vpop.f32.mrb[0].mxu0
    %1244 = vmatprep.mubr.f32.mxu0 0.0
    %1245 = vmatmul.mubr.f32.gmra.mrb[0].mxu0 %v1077
    %v1246 = vpop.f32.mrb[0].mxu0
    %v1247 = vadd.f32 0.0, %v1246
    %v1248 = vpop.f32.mrb[0].mxu0
    %1249 = vmatprep.mubr.f32.mxu0 0.0
    %1250 = vmatmul.mubr.f32.gmra.mrb[0].mxu0 %v1080
    %v1251 = vpop.f32.mrb[0].mxu0
    %v1252 = vadd.f32 0.0, %v1251
    %v1253 = vpop.f32.mrb[0].mxu0
    %1254 = vmatprep.mubr.f32.mxu0 0.0
    %1255 = vmatmul.mubr.f32.gmra.mrb[0].mxu0 %v1083
    %v1256 = vpop.f32.mrb[0].mxu0
    %v1257 = vadd.f32 0.0, %v1256
    %v1258 = vpop.f32.mrb[0].mxu0
    %1259 = vmatprep.mubr.f32.mxu0 0.0
    %1260 = vmatmul.mubr.f32.gmra.mrb[0].mxu0 %v1086
    %v1261 = vpop.f32.mrb[0].mxu0
    %v1262 = vadd.f32 0.0, %v1261
    %v1263 = vpop.f32.mrb[0].mxu0
    %1264 = vmatprep.mubr.f32.mxu0 0.0
    %1265 = vmatmul.mubr.f32.gmra.mrb[0].mxu0 %v1089
    %v1266 = vpop.f32.mrb[0].mxu0
    %v1267 = vadd.f32 0.0, %v1266
    %v1268 = vpop.f32.mrb[0].mxu0
    %1269 = vmatprep.mubr.f32.mxu0 0.0
    %1270 = vmatmul.mubr.f32.gmra.mrb[0].mxu0 %v1092
    %v1271 = vpop.f32.mrb[0].mxu0
    %v1272 = vadd.f32 0.0, %v1271
    %v1273 = vpop.f32.mrb[0].mxu0
    %1274 = vmatprep.mubr.f32.mxu0 0.0
    %1275 = vmatmul.mubr.f32.gmra.mrb[0].mxu0 %v1095
    %v1276 = vpop.f32.mrb[0].mxu0
    %v1277 = vadd.f32 0.0, %v1276
    %v1278 = vpop.f32.mrb[0].mxu0
    %1279 = vmatprep.mubr.f32.mxu0 0.0
    %1280 = vmatmul.mubr.f32.gmra.mrb[0].mxu0 %v1098
    %v1281 = vpop.f32.mrb[0].mxu0
    %v1282 = vadd.f32 0.0, %v1281
    %v1283 = vpop.f32.mrb[0].mxu0
    %1284 = vmatprep.mubr.f32.mxu0 0.0
    %1285 = vmatmul.mubr.f32.gmra.mrb[0].mxu0 %v1101
    %v1286 = vpop.f32.mrb[0].mxu0
    %v1287 = vadd.f32 0.0, %v1286
    %v1288 = vpop.f32.mrb[0].mxu0
    %1289 = vmatprep.mubr.f32.mxu0 0.0
    %1290 = vmatmul.mubr.f32.gmra.mrb[0].mxu0 %v1104
    %v1291 = vpop.f32.mrb[0].mxu0
    %v1292 = vadd.f32 0.0, %v1291
    %v1293 = vpop.f32.mrb[0].mxu0
    %1294 = vmatprep.mubr.f32.mxu0 0.0
    %1295 = vmatmul.mubr.f32.gmra.mrb[0].mxu0 %v1107
    %v1296 = vpop.f32.mrb[0].mxu0
    %v1297 = vadd.f32 0.0, %v1296
    %v1298 = vpop.f32.mrb[0].mxu0
    %1299 = vmatprep.mubr.f32.mxu0 0.0
    %1300 = vmatmul.mubr.f32.gmra.mrb[0].mxu0 %v1110
    %v1301 = vpop.f32.mrb[0].mxu0
    %v1302 = vadd.f32 0.0, %v1301
    %v1303 = vpop.f32.mrb[0].mxu0
    %1304 = vmatprep.mubr.f32.mxu0 0.0
    %1305 = vmatmul.mubr.f32.gmra.mrb[0].mxu0 %v1113
    %v1306 = vpop.f32.mrb[0].mxu0
    %v1307 = vadd.f32 0.0, %v1306
    %v1308 = vpop.f32.mrb[0].mxu0
    %1309 = vmatprep.mubr.f32.mxu0 0.0
    %1310 = vmatmul.mubr.f32.gmra.mrb[0].mxu0 %v1116
    %v1311 = vpop.f32.mrb[0].mxu0
    %v1312 = vadd.f32 0.0, %v1311
    %v1313 = vpop.f32.mrb[0].mxu0
    %1314 = vmatprep.mubr.f32.mxu0 0.0
    %1315 = vmatmul.mubr.f32.gmra.mrb[0].mxu0 %v1119
    %v1316 = vpop.f32.mrb[0].mxu0
    %v1317 = vadd.f32 0.0, %v1316
    %v1318 = vpop.f32.mrb[0].mxu0
    %1319 = vmatprep.mubr.f32.mxu0 0.0
    %1320 = vmatmul.mubr.f32.gmra.mrb[0].mxu0 %v1122
    %v1321 = vpop.f32.mrb[0].mxu0
    %v1322 = vadd.f32 0.0, %v1321
    %v1323 = vpop.f32.mrb[0].mxu0
    %1324 = vmatprep.mubr.f32.mxu0 0.0
    %1325 = vmatmul.mubr.f32.gmra.mrb[0].mxu0 %v1125
    %v1326 = vpop.f32.mrb[0].mxu0
    %v1327 = vadd.f32 0.0, %v1326
    %v1328 = vpop.f32.mrb[0].mxu0
    %1329 = vmatprep.mubr.f32.mxu0 0.0
    %1330 = vmatmul.mubr.f32.gmra.mrb[0].mxu0 %v1128
    %v1331 = vpop.f32.mrb[0].mxu0
    %v1332 = vadd.f32 0.0, %v1331
    %v1333 = vpop.f32.mrb[0].mxu0
    %1334 = vmatprep.mubr.f32.mxu0 0.0
    %1335 = vmatmul.mubr.f32.gmra.mrb[0].mxu0 %v1131
    %v1336 = vpop.f32.mrb[0].mxu0
    %v1337 = vadd.f32 0.0, %v1336
    %v1338 = vpop.f32.mrb[0].mxu0
    %1339 = vmatprep.mubr.f32.mxu0 0.0
    %1340 = vmatmul.mubr.f32.gmra.mrb[0].mxu0 %v1134
    %v1341 = vpop.f32.mrb[0].mxu0
    %v1342 = vadd.f32 0.0, %v1341
    %v1343 = vpop.f32.mrb[0].mxu0
    %1344 = vmatprep.mubr.f32.mxu0 0.0
    %1345 = vmatmul.mubr.f32.gmra.mrb[0].mxu0 %v1137
    %v1346 = vpop.f32.mrb[0].mxu0
    %v1347 = vadd.f32 0.0, %v1346
    %v1348 = vpop.f32.mrb[0].mxu0
    %1349 = vmatprep.mubr.f32.mxu0 0.0
    %1350 = vmatmul.mubr.f32.gmra.mrb[0].mxu0 %v1140
    %v1351 = vpop.f32.mrb[0].mxu0
    %v1352 = vadd.f32 0.0, %v1351
    %v1353 = vpop.f32.mrb[0].mxu0
    %1354 = vmatprep.mubr.f32.mxu0 0.0
    %1355 = vmatmul.mubr.f32.gmra.mrb[0].mxu0 %v1143
    %v1356 = vpop.f32.mrb[0].mxu0
    %v1357 = vadd.f32 0.0, %v1356
    %v1358 = vpop.f32.mrb[0].mxu0
    %1359 = vdwg.mxu0
    %v1360 = vmul.f32 %v15, %v45
    %v1361 = vmul.f32 %v16, %v46
    %v1362 = vmul.f32 %v17, %v47
    %v1363 = vmul.f32 %v18, %v48
    %v1364 = vmul.f32 %v19, %v49
    %v1365 = vmul.f32 %v20, %v50
    %v1366 = vmul.f32 %v21, %v51
    %v1367 = vmul.f32 %v22, %v52
    %v1368 = vmul.f32 %v23, %v53
    %v1369 = vmul.f32 %v24, %v54
    %v1370 = vmul.f32 %v25, %v55
    %v1371 = vmul.f32 %v26, %v56
    %v1372 = vmul.f32 %v27, %v57
    %v1373 = vmul.f32 %v28, %v58
    %v1374 = vmul.f32 %v29, %v59
    %v1375 = vmul.f32 %v30, %v60
    %v1376 = vmul.f32 %v31, %v61
    %v1377 = vmul.f32 %v32, %v62
    %v1378 = vmul.f32 %v33, %v63
    %v1379 = vmul.f32 %v34, %v64
    %v1380 = vmul.f32 %v35, %v65
    %v1381 = vmul.f32 %v36, %v66
    %v1382 = vmul.f32 %v37, %v67
    %v1383 = vmul.f32 %v38, %v68
    %v1384 = vmul.f32 %v39, %v69
    %v1385 = vmul.f32 %v40, %v70
    %v1386 = vmul.f32 %v41, %v71
    %v1387 = vmul.f32 %v42, %v72
    %v1388 = vmul.f32 %v43, %v73
    %v1389 = vmul.f32 %v44, %v74
    %v1391 = vsel %vm79, %v1360, 0
    %v1394 = vsel %vm79, %v1361, 0
    %v1397 = vsel %vm79, %v1362, 0
    %v1400 = vsel %vm79, %v1363, 0
    %v1403 = vsel %vm79, %v1364, 0
    %v1406 = vsel %vm79, %v1365, 0
    %v1409 = vsel %vm79, %v1366, 0
    %v1412 = vsel %vm79, %v1367, 0
    %v1415 = vsel %vm79, %v1368, 0
    %v1418 = vsel %vm79, %v1369, 0
    %v1421 = vsel %vm79, %v1370, 0
    %v1424 = vsel %vm79, %v1371, 0
    %v1427 = vsel %vm79, %v1372, 0
    %v1430 = vsel %vm79, %v1373, 0
    %v1433 = vsel %vm79, %v1374, 0
    %v1436 = vsel %vm79, %v1375, 0
    %v1439 = vsel %vm79, %v1376, 0
    %v1442 = vsel %vm79, %v1377, 0
    %v1445 = vsel %vm79, %v1378, 0
    %v1448 = vsel %vm79, %v1379, 0
    %v1451 = vsel %vm79, %v1380, 0
    %v1454 = vsel %vm79, %v1381, 0
    %v1457 = vsel %vm79, %v1382, 0
    %v1460 = vsel %vm79, %v1383, 0
    %v1463 = vsel %vm79, %v1384, 0
    %v1466 = vsel %vm79, %v1385, 0
    %v1469 = vsel %vm79, %v1386, 0
    %v1472 = vsel %vm79, %v1387, 0
    %v1475 = vsel %vm79, %v1388, 0
    %v1478 = vsel %vm79, %v1389, 0
    %1480 = vmatprep.subr.mxu0 0.0
    %1481 = vmatpush1.msra.mxu0 %v75
    %1482 = vmatprep.subr.mxu0 0.0
    %1483 = vmatpush1.msra.mxu0 %v76
    %1484 = vmatprep.subr.mxu0 0.0
    %1485 = vmatpush1.msra.mxu0 %v77
    %1486 = vmatprep.subr.mxu0 0.0
    %1487 = vmatpush1.msra.mxu0 %v78
    %1488 = vmatprep.subr.mxu0 0.0
    %1489 = vmatpush1.msra.mxu0 0.0
    %1490 = vmatprep.subr.mxu0 0.0
    %1491 = vmatpush1.msra.mxu0 0.0
    %1492 = vmatprep.subr.mxu0 0.0
    %1493 = vmatpush1.msra.mxu0 0.0
    %1494 = vmatprep.subr.mxu0 0.0
    %1495 = vmatpush1.msra.mxu0 0.0
    %1496 = vmatprep.subr.mxu0 0.0
    %1497 = vmatpush1.msra.mxu0 0.0
    %1498 = vmatprep.subr.mxu0 0.0
    %1499 = vmatpush1.msra.mxu0 0.0
    %1500 = vmatprep.subr.mxu0 0.0
    %1501 = vmatpush1.msra.mxu0 0.0
    %1502 = vmatprep.subr.mxu0 0.0
    %1503 = vmatpush1.msra.mxu0 0.0
    %1504 = vmatprep.subr.mxu0 0.0
    %1505 = vmatpush1.msra.mxu0 0.0
    %1506 = vmatprep.subr.mxu0 0.0
    %1507 = vmatpush1.msra.mxu0 0.0
    %1508 = vmatprep.subr.mxu0 0.0
    %1509 = vmatpush1.msra.mxu0 0.0
    %1510 = vmatprep.subr.mxu0 0.0
    %1511 = vmatpush1.msra.mxu0 0.0
    %1512 = vmatprep.subr.mxu0 0.0
    %1513 = vmatpush1.msra.mxu0 0.0
    %1514 = vmatprep.subr.mxu0 0.0
    %1515 = vmatpush1.msra.mxu0 0.0
    %1516 = vmatprep.subr.mxu0 0.0
    %1517 = vmatpush1.msra.mxu0 0.0
    %1518 = vmatprep.subr.mxu0 0.0
    %1519 = vmatpush1.msra.mxu0 0.0
    %1520 = vmatprep.subr.mxu0 0.0
    %1521 = vmatpush1.msra.mxu0 0.0
    %1522 = vmatprep.subr.mxu0 0.0
    %1523 = vmatpush1.msra.mxu0 0.0
    %1524 = vmatprep.subr.mxu0 0.0
    %1525 = vmatpush1.msra.mxu0 0.0
    %1526 = vmatprep.subr.mxu0 0.0
    %1527 = vmatpush1.msra.mxu0 0.0
    %1528 = vmatprep.subr.mxu0 0.0
    %1529 = vmatpush1.msra.mxu0 0.0
    %1530 = vmatprep.subr.mxu0 0.0
    %1531 = vmatpush1.msra.mxu0 0.0
    %1532 = vmatprep.subr.mxu0 0.0
    %1533 = vmatpush1.msra.mxu0 0.0
    %1534 = vmatprep.subr.mxu0 0.0
    %1535 = vmatpush1.msra.mxu0 0.0
    %1536 = vmatprep.subr.mxu0 0.0
    %1537 = vmatpush1.msra.mxu0 0.0
    %1538 = vmatprep.subr.mxu0 0.0
    %1539 = vmatpush1.msra.mxu0 0.0
    %1540 = vmatprep.subr.mxu0 0.0
    %1541 = vmatpush1.msra.mxu0 0.0
    %1542 = vmatprep.subr.mxu0 0.0
    %1543 = vmatpush1.msra.mxu0 0.0
    %1544 = vmatprep.mubr.f32.mxu0 0.0
    %1545 = vmatmul.mubr.f32.gmra.mrb[0].mxu0 %v1391
    %v1546 = vpop.f32.mrb[0].mxu0
    %v1547 = vadd.f32 0.0, %v1546
    %v1548 = vpop.f32.mrb[0].mxu0
    %1549 = vmatprep.mubr.f32.mxu0 0.0
    %1550 = vmatmul.mubr.f32.gmra.mrb[0].mxu0 %v1394
    %v1551 = vpop.f32.mrb[0].mxu0
    %v1552 = vadd.f32 0.0, %v1551
    %v1553 = vpop.f32.mrb[0].mxu0
    %1554 = vmatprep.mubr.f32.mxu0 0.0
    %1555 = vmatmul.mubr.f32.gmra.mrb[0].mxu0 %v1397
    %v1556 = vpop.f32.mrb[0].mxu0
    %v1557 = vadd.f32 0.0, %v1556
    %v1558 = vpop.f32.mrb[0].mxu0
    %1559 = vmatprep.mubr.f32.mxu0 0.0
    %1560 = vmatmul.mubr.f32.gmra.mrb[0].mxu0 %v1400
    %v1561 = vpop.f32.mrb[0].mxu0
    %v1562 = vadd.f32 0.0, %v1561
    %v1563 = vpop.f32.mrb[0].mxu0
    %1564 = vmatprep.mubr.f32.mxu0 0.0
    %1565 = vmatmul.mubr.f32.gmra.mrb[0].mxu0 %v1403
    %v1566 = vpop.f32.mrb[0].mxu0
    %v1567 = vadd.f32 0.0, %v1566
    %v1568 = vpop.f32.mrb[0].mxu0
    %1569 = vmatprep.mubr.f32.mxu0 0.0
    %1570 = vmatmul.mubr.f32.gmra.mrb[0].mxu0 %v1406
    %v1571 = vpop.f32.mrb[0].mxu0
    %v1572 = vadd.f32 0.0, %v1571
    %v1573 = vpop.f32.mrb[0].mxu0
    %1574 = vmatprep.mubr.f32.mxu0 0.0
    %1575 = vmatmul.mubr.f32.gmra.mrb[0].mxu0 %v1409
    %v1576 = vpop.f32.mrb[0].mxu0
    %v1577 = vadd.f32 0.0, %v1576
    %v1578 = vpop.f32.mrb[0].mxu0
    %1579 = vmatprep.mubr.f32.mxu0 0.0
    %1580 = vmatmul.mubr.f32.gmra.mrb[0].mxu0 %v1412
    %v1581 = vpop.f32.mrb[0].mxu0
    %v1582 = vadd.f32 0.0, %v1581
    %v1583 = vpop.f32.mrb[0].mxu0
    %1584 = vmatprep.mubr.f32.mxu0 0.0
    %1585 = vmatmul.mubr.f32.gmra.mrb[0].mxu0 %v1415
    %v1586 = vpop.f32.mrb[0].mxu0
    %v1587 = vadd.f32 0.0, %v1586
    %v1588 = vpop.f32.mrb[0].mxu0
    %1589 = vmatprep.mubr.f32.mxu0 0.0
    %1590 = vmatmul.mubr.f32.gmra.mrb[0].mxu0 %v1418
    %v1591 = vpop.f32.mrb[0].mxu0
    %v1592 = vadd.f32 0.0, %v1591
    %v1593 = vpop.f32.mrb[0].mxu0
    %1594 = vmatprep.mubr.f32.mxu0 0.0
    %1595 = vmatmul.mubr.f32.gmra.mrb[0].mxu0 %v1421
    %v1596 = vpop.f32.mrb[0].mxu0
    %v1597 = vadd.f32 0.0, %v1596
    %v1598 = vpop.f32.mrb[0].mxu0
    %1599 = vmatprep.mubr.f32.mxu0 0.0
    %1600 = vmatmul.mubr.f32.gmra.mrb[0].mxu0 %v1424
    %v1601 = vpop.f32.mrb[0].mxu0
    %v1602 = vadd.f32 0.0, %v1601
    %v1603 = vpop.f32.mrb[0].mxu0
    %1604 = vmatprep.mubr.f32.mxu0 0.0
    %1605 = vmatmul.mubr.f32.gmra.mrb[0].mxu0 %v1427
    %v1606 = vpop.f32.mrb[0].mxu0
    %v1607 = vadd.f32 0.0, %v1606
    %v1608 = vpop.f32.mrb[0].mxu0
    %1609 = vmatprep.mubr.f32.mxu0 0.0
    %1610 = vmatmul.mubr.f32.gmra.mrb[0].mxu0 %v1430
    %v1611 = vpop.f32.mrb[0].mxu0
    %v1612 = vadd.f32 0.0, %v1611
    %v1613 = vpop.f32.mrb[0].mxu0
    %1614 = vmatprep.mubr.f32.mxu0 0.0
    %1615 = vmatmul.mubr.f32.gmra.mrb[0].mxu0 %v1433
    %v1616 = vpop.f32.mrb[0].mxu0
    %v1617 = vadd.f32 0.0, %v1616
    %v1618 = vpop.f32.mrb[0].mxu0
    %1619 = vmatprep.mubr.f32.mxu0 0.0
    %1620 = vmatmul.mubr.f32.gmra.mrb[0].mxu0 %v1436
    %v1621 = vpop.f32.mrb[0].mxu0
    %v1622 = vadd.f32 0.0, %v1621
    %v1623 = vpop.f32.mrb[0].mxu0
    %1624 = vmatprep.mubr.f32.mxu0 0.0
    %1625 = vmatmul.mubr.f32.gmra.mrb[0].mxu0 %v1439
    %v1626 = vpop.f32.mrb[0].mxu0
    %v1627 = vadd.f32 0.0, %v1626
    %v1628 = vpop.f32.mrb[0].mxu0
    %1629 = vmatprep.mubr.f32.mxu0 0.0
    %1630 = vmatmul.mubr.f32.gmra.mrb[0].mxu0 %v1442
    %v1631 = vpop.f32.mrb[0].mxu0
    %v1632 = vadd.f32 0.0, %v1631
    %v1633 = vpop.f32.mrb[0].mxu0
    %1634 = vmatprep.mubr.f32.mxu0 0.0
    %1635 = vmatmul.mubr.f32.gmra.mrb[0].mxu0 %v1445
    %v1636 = vpop.f32.mrb[0].mxu0
    %v1637 = vadd.f32 0.0, %v1636
    %v1638 = vpop.f32.mrb[0].mxu0
    %1639 = vmatprep.mubr.f32.mxu0 0.0
    %1640 = vmatmul.mubr.f32.gmra.mrb[0].mxu0 %v1448
    %v1641 = vpop.f32.mrb[0].mxu0
    %v1642 = vadd.f32 0.0, %v1641
    %v1643 = vpop.f32.mrb[0].mxu0
    %1644 = vmatprep.mubr.f32.mxu0 0.0
    %1645 = vmatmul.mubr.f32.gmra.mrb[0].mxu0 %v1451
    %v1646 = vpop.f32.mrb[0].mxu0
    %v1647 = vadd.f32 0.0, %v1646
    %v1648 = vpop.f32.mrb[0].mxu0
    %1649 = vmatprep.mubr.f32.mxu0 0.0
    %1650 = vmatmul.mubr.f32.gmra.mrb[0].mxu0 %v1454
    %v1651 = vpop.f32.mrb[0].mxu0
    %v1652 = vadd.f32 0.0, %v1651
    %v1653 = vpop.f32.mrb[0].mxu0
    %1654 = vmatprep.mubr.f32.mxu0 0.0
    %1655 = vmatmul.mubr.f32.gmra.mrb[0].mxu0 %v1457
    %v1656 = vpop.f32.mrb[0].mxu0
    %v1657 = vadd.f32 0.0, %v1656
    %v1658 = vpop.f32.mrb[0].mxu0
    %1659 = vmatprep.mubr.f32.mxu0 0.0
    %1660 = vmatmul.mubr.f32.gmra.mrb[0].mxu0 %v1460
    %v1661 = vpop.f32.mrb[0].mxu0
    %v1662 = vadd.f32 0.0, %v1661
    %v1663 = vpop.f32.mrb[0].mxu0
    %1664 = vmatprep.mubr.f32.mxu0 0.0
    %1665 = vmatmul.mubr.f32.gmra.mrb[0].mxu0 %v1463
    %v1666 = vpop.f32.mrb[0].mxu0
    %v1667 = vadd.f32 0.0, %v1666
    %v1668 = vpop.f32.mrb[0].mxu0
    %1669 = vmatprep.mubr.f32.mxu0 0.0
    %1670 = vmatmul.mubr.f32.gmra.mrb[0].mxu0 %v1466
    %v1671 = vpop.f32.mrb[0].mxu0
    %v1672 = vadd.f32 0.0, %v1671
    %v1673 = vpop.f32.mrb[0].mxu0
    %1674 = vmatprep.mubr.f32.mxu0 0.0
    %1675 = vmatmul.mubr.f32.gmra.mrb[0].mxu0 %v1469
    %v1676 = vpop.f32.mrb[0].mxu0
    %v1677 = vadd.f32 0.0, %v1676
    %v1678 = vpop.f32.mrb[0].mxu0
    %1679 = vmatprep.mubr.f32.mxu0 0.0
    %1680 = vmatmul.mubr.f32.gmra.mrb[0].mxu0 %v1472
    %v1681 = vpop.f32.mrb[0].mxu0
    %v1682 = vadd.f32 0.0, %v1681
    %v1683 = vpop.f32.mrb[0].mxu0
    %1684 = vmatprep.mubr.f32.mxu0 0.0
    %1685 = vmatmul.mubr.f32.gmra.mrb[0].mxu0 %v1475
    %v1686 = vpop.f32.mrb[0].mxu0
    %v1687 = vadd.f32 0.0, %v1686
    %v1688 = vpop.f32.mrb[0].mxu0
    %1689 = vmatprep.mubr.f32.mxu0 0.0
    %1690 = vmatmul.mubr.f32.gmra.mrb[0].mxu0 %v1478
    %v1691 = vpop.f32.mrb[0].mxu0
    %v1692 = vadd.f32 0.0, %v1691
    %v1693 = vpop.f32.mrb[0].mxu0
    %1694 = vdwg.mxu0
    %v1695 = vmul.f32 %v237, 0.0010283804
    %v1696 = vmul.f32 %v242, 0.0010283804
    %v1697 = vmul.f32 %v247, 0.0010283804
    %v1698 = vmul.f32 %v262, 0.0010283804
    %v1699 = vmul.f32 %v267, 0.0010283804
    %v1700 = vmul.f32 %v272, 0.0010283804
    %v1701 = vmul.f32 %v287, 0.0010283804
    %v1702 = vmul.f32 %v292, 0.0010283804
    %v1703 = vmul.f32 %v297, 0.0010283804
    %v1704 = vmul.f32 %v312, 0.0010283804
    %v1705 = vmul.f32 %v317, 0.0010283804
    %v1706 = vmul.f32 %v322, 0.0010283804
    %v1707 = vmul.f32 %v337, 0.0010283804
    %v1708 = vmul.f32 %v342, 0.0010283804
    %v1709 = vmul.f32 %v347, 0.0010283804
    %v1710 = vmul.f32 %v362, 0.0010283804
    %v1711 = vmul.f32 %v367, 0.0010283804
    %v1712 = vmul.f32 %v372, 0.0010283804
    %v1713 = vmul.f32 %v542, 0.0010283804
    %v1714 = vmul.f32 %v547, 0.0010283804
    %v1715 = vmul.f32 %v552, 0.0010283804
    %v1716 = vmul.f32 %v567, 0.0010283804
    %v1717 = vmul.f32 %v572, 0.0010283804
    %v1718 = vmul.f32 %v577, 0.0010283804
    %v1719 = vmul.f32 %v592, 0.0010283804
    %v1720 = vmul.f32 %v597, 0.0010283804
    %v1721 = vmul.f32 %v602, 0.0010283804
    %v1722 = vmul.f32 %v617, 0.0010283804
    %v1723 = vmul.f32 %v622, 0.0010283804
    %v1724 = vmul.f32 %v627, 0.0010283804
    %v1725 = vmul.f32 %v642, 0.0010283804
    %v1726 = vmul.f32 %v647, 0.0010283804
    %v1727 = vmul.f32 %v652, 0.0010283804
    %v1728 = vmul.f32 %v667, 0.0010283804
    %v1729 = vmul.f32 %v672, 0.0010283804
    %v1730 = vmul.f32 %v677, 0.0010283804
    %v1731 = vmul.f32 %v877, 0.0010283804
    %v1732 = vmul.f32 %v882, 0.0010283804
    %v1733 = vmul.f32 %v887, 0.0010283804
    %v1734 = vmul.f32 %v902, 0.0010283804
    %v1735 = vmul.f32 %v907, 0.0010283804
    %v1736 = vmul.f32 %v912, 0.0010283804
    %v1737 = vmul.f32 %v927, 0.0010283804
    %v1738 = vmul.f32 %v932, 0.0010283804
    %v1739 = vmul.f32 %v937, 0.0010283804
    %v1740 = vmul.f32 %v952, 0.0010283804
    %v1741 = vmul.f32 %v957, 0.0010283804
    %v1742 = vmul.f32 %v962, 0.0010283804
    %v1743 = vmul.f32 %v977, 0.0010283804
    %v1744 = vmul.f32 %v982, 0.0010283804
    %v1745 = vmul.f32 %v987, 0.0010283804
    %v1746 = vmul.f32 %v1002, 0.0010283804
    %v1747 = vmul.f32 %v1007, 0.0010283804
    %v1748 = vmul.f32 %v1012, 0.0010283804
    %v1749 = vmul.f32 %v1212, 0.0010283804
    %v1750 = vmul.f32 %v1217, 0.0010283804
    %v1751 = vmul.f32 %v1222, 0.0010283804
    %v1752 = vmul.f32 %v1237, 0.0010283804
    %v1753 = vmul.f32 %v1242, 0.0010283804
    %v1754 = vmul.f32 %v1247, 0.0010283804
    %v1755 = vmul.f32 %v1262, 0.0010283804
    %v1756 = vmul.f32 %v1267, 0.0010283804
    %v1757 = vmul.f32 %v1272, 0.0010283804
    %v1758 = vmul.f32 %v1287, 0.0010283804
    %v1759 = vmul.f32 %v1292, 0.0010283804
    %v1760 = vmul.f32 %v1297, 0.0010283804
    %v1761 = vmul.f32 %v1312, 0.0010283804
    %v1762 = vmul.f32 %v1317, 0.0010283804
    %v1763 = vmul.f32 %v1322, 0.0010283804
    %v1764 = vmul.f32 %v1337, 0.0010283804
    %v1765 = vmul.f32 %v1342, 0.0010283804
    %v1766 = vmul.f32 %v1347, 0.0010283804
    %v1767 = vmul.f32 %v1547, 0.0010283804
    %v1768 = vmul.f32 %v1552, 0.0010283804
    %v1769 = vmul.f32 %v1557, 0.0010283804
    %v1770 = vmul.f32 %v1572, 0.0010283804
    %v1771 = vmul.f32 %v1577, 0.0010283804
    %v1772 = vmul.f32 %v1582, 0.0010283804
    %v1773 = vmul.f32 %v1597, 0.0010283804
    %v1774 = vmul.f32 %v1602, 0.0010283804
    %v1775 = vmul.f32 %v1607, 0.0010283804
    %v1776 = vmul.f32 %v1622, 0.0010283804
    %v1777 = vmul.f32 %v1627, 0.0010283804
    %v1778 = vmul.f32 %v1632, 0.0010283804
    %v1779 = vmul.f32 %v1647, 0.0010283804
    %v1780 = vmul.f32 %v1652, 0.0010283804
    %v1781 = vmul.f32 %v1657, 0.0010283804
    %v1782 = vmul.f32 %v1672, 0.0010283804
    %v1783 = vmul.f32 %v1677, 0.0010283804
    %v1784 = vmul.f32 %v1682, 0.0010283804
    %v1785 = vmul.f32 %v237, 0.0075987587
    %v1786 = vmul.f32 %v242, 0.0075987587
    %v1787 = vmul.f32 %v247, 0.0075987587
    %v1788 = vmul.f32 %v262, 0.0075987587
    %v1789 = vmul.f32 %v267, 0.0075987587
    %v1790 = vmul.f32 %v272, 0.0075987587
    %v1791 = vmul.f32 %v287, 0.0075987587
    %v1792 = vmul.f32 %v292, 0.0075987587
    %v1793 = vmul.f32 %v297, 0.0075987587
    %v1794 = vmul.f32 %v312, 0.0075987587
    %v1795 = vmul.f32 %v317, 0.0075987587
    %v1796 = vmul.f32 %v322, 0.0075987587
    %v1797 = vmul.f32 %v337, 0.0075987587
    %v1798 = vmul.f32 %v342, 0.0075987587
    %v1799 = vmul.f32 %v347, 0.0075987587
    %v1800 = vmul.f32 %v362, 0.0075987587
    %v1801 = vmul.f32 %v367, 0.0075987587
    %v1802 = vmul.f32 %v372, 0.0075987587
    %vm1821 = vcmask 1046528
    %v1822 = vrot.slane %v1785, 1
    %v1823 = vrot.slane %v1786, 1
    %v1824 = vsel %vm1821, %v1822, %v1823
    %v1825 = vrot.slane %v1787, 1
    %v1826 = vsel %vm1821, %v1823, %v1825
    %v1827 = vrot.slane %v1788, 1
    %v1828 = vrot.slane %v1789, 1
    %v1829 = vsel %vm1821, %v1827, %v1828
    %v1830 = vrot.slane %v1790, 1
    %v1831 = vsel %vm1821, %v1828, %v1830
    %v1832 = vrot.slane %v1791, 1
    %v1833 = vrot.slane %v1792, 1
    %v1834 = vsel %vm1821, %v1832, %v1833
    %v1835 = vrot.slane %v1793, 1
    %v1836 = vsel %vm1821, %v1833, %v1835
    %v1837 = vrot.slane %v1794, 1
    %v1838 = vrot.slane %v1795, 1
    %v1839 = vsel %vm1821, %v1837, %v1838
    %v1840 = vrot.slane %v1796, 1
    %v1841 = vsel %vm1821, %v1838, %v1840
    %v1842 = vrot.slane %v1797, 1
    %v1843 = vrot.slane %v1798, 1
    %v1844 = vsel %vm1821, %v1842, %v1843
    %v1845 = vrot.slane %v1799, 1
    %v1846 = vsel %vm1821, %v1843, %v1845
    %v1847 = vrot.slane %v1800, 1
    %v1848 = vrot.slane %v1801, 1
    %v1849 = vsel %vm1821, %v1847, %v1848
    %v1850 = vrot.slane %v1802, 1
    %v1851 = vsel %vm1821, %v1848, %v1850
    %v1870 = vadd.f32 %v1695, %v1824
    %v1871 = vadd.f32 %v1696, %v1826
    %v1872 = vadd.f32 %v1697, %v1825
    %v1873 = vadd.f32 %v1698, %v1829
    %v1874 = vadd.f32 %v1699, %v1831
    %v1875 = vadd.f32 %v1700, %v1830
    %v1876 = vadd.f32 %v1701, %v1834
    %v1877 = vadd.f32 %v1702, %v1836
    %v1878 = vadd.f32 %v1703, %v1835
    %v1879 = vadd.f32 %v1704, %v1839
    %v1880 = vadd.f32 %v1705, %v1841
    %v1881 = vadd.f32 %v1706, %v1840
    %v1882 = vadd.f32 %v1707, %v1844
    %v1883 = vadd.f32 %v1708, %v1846
    %v1884 = vadd.f32 %v1709, %v1845
    %v1885 = vadd.f32 %v1710, %v1849
    %v1886 = vadd.f32 %v1711, %v1851
    %v1887 = vadd.f32 %v1712, %v1850
    %v1888 = vmul.f32 %v542, 0.0075987587
    %v1889 = vmul.f32 %v547, 0.0075987587
    %v1890 = vmul.f32 %v552, 0.0075987587
    %v1891 = vmul.f32 %v567, 0.0075987587
    %v1892 = vmul.f32 %v572, 0.0075987587
    %v1893 = vmul.f32 %v577, 0.0075987587
    %v1894 = vmul.f32 %v592, 0.0075987587
    %v1895 = vmul.f32 %v597, 0.0075987587
    %v1896 = vmul.f32 %v602, 0.0075987587
    %v1897 = vmul.f32 %v617, 0.0075987587
    %v1898 = vmul.f32 %v622, 0.0075987587
    %v1899 = vmul.f32 %v627, 0.0075987587
    %v1900 = vmul.f32 %v642, 0.0075987587
    %v1901 = vmul.f32 %v647, 0.0075987587
    %v1902 = vmul.f32 %v652, 0.0075987587
    %v1903 = vmul.f32 %v667, 0.0075987587
    %v1904 = vmul.f32 %v672, 0.0075987587
    %v1905 = vmul.f32 %v677, 0.0075987587
    %v1924 = vrot.slane %v1888, 1
    %v1925 = vrot.slane %v1889, 1
    %v1926 = vsel %vm1821, %v1924, %v1925
    %v1927 = vrot.slane %v1890, 1
    %v1928 = vsel %vm1821, %v1925, %v1927
    %v1929 = vrot.slane %v1891, 1
    %v1930 = vrot.slane %v1892, 1
    %v1931 = vsel %vm1821, %v1929, %v1930
    %v1932 = vrot.slane %v1893, 1
    %v1933 = vsel %vm1821, %v1930, %v1932
    %v1934 = vrot.slane %v1894, 1
    %v1935 = vrot.slane %v1895, 1
    %v1936 = vsel %vm1821, %v1934, %v1935
    %v1937 = vrot.slane %v1896, 1
    %v1938 = vsel %vm1821, %v1935, %v1937
    %v1939 = vrot.slane %v1897, 1
    %v1940 = vrot.slane %v1898, 1
    %v1941 = vsel %vm1821, %v1939, %v1940
    %v1942 = vrot.slane %v1899, 1
    %v1943 = vsel %vm1821, %v1940, %v1942
    %v1944 = vrot.slane %v1900, 1
    %v1945 = vrot.slane %v1901, 1
    %v1946 = vsel %vm1821, %v1944, %v1945
    %v1947 = vrot.slane %v1902, 1
    %v1948 = vsel %vm1821, %v1945, %v1947
    %v1949 = vrot.slane %v1903, 1
    %v1950 = vrot.slane %v1904, 1
    %v1951 = vsel %vm1821, %v1949, %v1950
    %v1952 = vrot.slane %v1905, 1
    %v1953 = vsel %vm1821, %v1950, %v1952
    %v1972 = vadd.f32 %v1713, %v1926
    %v1973 = vadd.f32 %v1714, %v1928
    %v1974 = vadd.f32 %v1715, %v1927
    %v1975 = vadd.f32 %v1716, %v1931
    %v1976 = vadd.f32 %v1717, %v1933
    %v1977 = vadd.f32 %v1718, %v1932
    %v1978 = vadd.f32 %v1719, %v1936
    %v1979 = vadd.f32 %v1720, %v1938
    %v1980 = vadd.f32 %v1721, %v1937
    %v1981 = vadd.f32 %v1722, %v1941
    %v1982 = vadd.f32 %v1723, %v1943
    %v1983 = vadd.f32 %v1724, %v1942
    %v1984 = vadd.f32 %v1725, %v1946
    %v1985 = vadd.f32 %v1726, %v1948
    %v1986 = vadd.f32 %v1727, %v1947
    %v1987 = vadd.f32 %v1728, %v1951
    %v1988 = vadd.f32 %v1729, %v1953
    %v1989 = vadd.f32 %v1730, %v1952
    %v1990 = vmul.f32 %v877, 0.0075987587
    %v1991 = vmul.f32 %v882, 0.0075987587
    %v1992 = vmul.f32 %v887, 0.0075987587
    %v1993 = vmul.f32 %v902, 0.0075987587
    %v1994 = vmul.f32 %v907, 0.0075987587
    %v1995 = vmul.f32 %v912, 0.0075987587
    %v1996 = vmul.f32 %v927, 0.0075987587
    %v1997 = vmul.f32 %v932, 0.0075987587
    %v1998 = vmul.f32 %v937, 0.0075987587
    %v1999 = vmul.f32 %v952, 0.0075987587
    %v2000 = vmul.f32 %v957, 0.0075987587
    %v2001 = vmul.f32 %v962, 0.0075987587
    %v2002 = vmul.f32 %v977, 0.0075987587
    %v2003 = vmul.f32 %v982, 0.0075987587
    %v2004 = vmul.f32 %v987, 0.0075987587
    %v2005 = vmul.f32 %v1002, 0.0075987587
    %v2006 = vmul.f32 %v1007, 0.0075987587
    %v2007 = vmul.f32 %v1012, 0.0075987587
    %v2026 = vrot.slane %v1990, 1
    %v2027 = vrot.slane %v1991, 1
    %v2028 = vsel %vm1821, %v2026, %v2027
    %v2029 = vrot.slane %v1992, 1
    %v2030 = vsel %vm1821, %v2027, %v2029
    %v2031 = vrot.slane %v1993, 1
    %v2032 = vrot.slane %v1994, 1
    %v2033 = vsel %vm1821, %v2031, %v2032
    %v2034 = vrot.slane %v1995, 1
    %v2035 = vsel %vm1821, %v2032, %v2034
    %v2036 = vrot.slane %v1996, 1
    %v2037 = vrot.slane %v1997, 1
    %v2038 = vsel %vm1821, %v2036, %v2037
    %v2039 = vrot.slane %v1998, 1
    %v2040 = vsel %vm1821, %v2037, %v2039
    %v2041 = vrot.slane %v1999, 1
    %v2042 = vrot.slane %v2000, 1
    %v2043 = vsel %vm1821, %v2041, %v2042
    %v2044 = vrot.slane %v2001, 1
    %v2045 = vsel %vm1821, %v2042, %v2044
    %v2046 = vrot.slane %v2002, 1
    %v2047 = vrot.slane %v2003, 1
    %v2048 = vsel %vm1821, %v2046, %v2047
    %v2049 = vrot.slane %v2004, 1
    %v2050 = vsel %vm1821, %v2047, %v2049
    %v2051 = vrot.slane %v2005, 1
    %v2052 = vrot.slane %v2006, 1
    %v2053 = vsel %vm1821, %v2051, %v2052
    %v2054 = vrot.slane %v2007, 1
    %v2055 = vsel %vm1821, %v2052, %v2054
    %v2074 = vadd.f32 %v1731, %v2028
    %v2075 = vadd.f32 %v1732, %v2030
    %v2076 = vadd.f32 %v1733, %v2029
    %v2077 = vadd.f32 %v1734, %v2033
    %v2078 = vadd.f32 %v1735, %v2035
    %v2079 = vadd.f32 %v1736, %v2034
    %v2080 = vadd.f32 %v1737, %v2038
    %v2081 = vadd.f32 %v1738, %v2040
    %v2082 = vadd.f32 %v1739, %v2039
    %v2083 = vadd.f32 %v1740, %v2043
    %v2084 = vadd.f32 %v1741, %v2045
    %v2085 = vadd.f32 %v1742, %v2044
    %v2086 = vadd.f32 %v1743, %v2048
    %v2087 = vadd.f32 %v1744, %v2050
    %v2088 = vadd.f32 %v1745, %v2049
    %v2089 = vadd.f32 %v1746, %v2053
    %v2090 = vadd.f32 %v1747, %v2055
    %v2091 = vadd.f32 %v1748, %v2054
    %v2092 = vmul.f32 %v1212, 0.0075987587
    %v2093 = vmul.f32 %v1217, 0.0075987587
    %v2094 = vmul.f32 %v1222, 0.0075987587
    %v2095 = vmul.f32 %v1237, 0.0075987587
    %v2096 = vmul.f32 %v1242, 0.0075987587
    %v2097 = vmul.f32 %v1247, 0.0075987587
    %v2098 = vmul.f32 %v1262, 0.0075987587
    %v2099 = vmul.f32 %v1267, 0.0075987587
    %v2100 = vmul.f32 %v1272, 0.0075987587
    %v2101 = vmul.f32 %v1287, 0.0075987587
    %v2102 = vmul.f32 %v1292, 0.0075987587
    %v2103 = vmul.f32 %v1297, 0.0075987587
    %v2104 = vmul.f32 %v1312, 0.0075987587
    %v2105 = vmul.f32 %v1317, 0.0075987587
    %v2106 = vmul.f32 %v1322, 0.0075987587
    %v2107 = vmul.f32 %v1337, 0.0075987587
    %v2108 = vmul.f32 %v1342, 0.0075987587
    %v2109 = vmul.f32 %v1347, 0.0075987587
    %v2128 = vrot.slane %v2092, 1
    %v2129 = vrot.slane %v2093, 1
    %v2130 = vsel %vm1821, %v2128, %v2129
    %v2131 = vrot.slane %v2094, 1
    %v2132 = vsel %vm1821, %v2129, %v2131
    %v2133 = vrot.slane %v2095, 1
    %v2134 = vrot.slane %v2096, 1
    %v2135 = vsel %vm1821, %v2133, %v2134
    %v2136 = vrot.slane %v2097, 1
    %v2137 = vsel %vm1821, %v2134, %v2136
    %v2138 = vrot.slane %v2098, 1
    %v2139 = vrot.slane %v2099, 1
    %v2140 = vsel %vm1821, %v2138, %v2139
    %v2141 = vrot.slane %v2100, 1
    %v2142 = vsel %vm1821, %v2139, %v2141
    %v2143 = vrot.slane %v2101, 1
    %v2144 = vrot.slane %v2102, 1
    %v2145 = vsel %vm1821, %v2143, %v2144
    %v2146 = vrot.slane %v2103, 1
    %v2147 = vsel %vm1821, %v2144, %v2146
    %v2148 = vrot.slane %v2104, 1
    %v2149 = vrot.slane %v2105, 1
    %v2150 = vsel %vm1821, %v2148, %v2149
    %v2151 = vrot.slane %v2106, 1
    %v2152 = vsel %vm1821, %v2149, %v2151
    %v2153 = vrot.slane %v2107, 1
    %v2154 = vrot.slane %v2108, 1
    %v2155 = vsel %vm1821, %v2153, %v2154
    %v2156 = vrot.slane %v2109, 1
    %v2157 = vsel %vm1821, %v2154, %v2156
    %v2176 = vadd.f32 %v1749, %v2130
    %v2177 = vadd.f32 %v1750, %v2132
    %v2178 = vadd.f32 %v1751, %v2131
    %v2179 = vadd.f32 %v1752, %v2135
    %v2180 = vadd.f32 %v1753, %v2137
    %v2181 = vadd.f32 %v1754, %v2136
    %v2182 = vadd.f32 %v1755, %v2140
    %v2183 = vadd.f32 %v1756, %v2142
    %v2184 = vadd.f32 %v1757, %v2141
    %v2185 = vadd.f32 %v1758, %v2145
    %v2186 = vadd.f32 %v1759, %v2147
    %v2187 = vadd.f32 %v1760, %v2146
    %v2188 = vadd.f32 %v1761, %v2150
    %v2189 = vadd.f32 %v1762, %v2152
    %v2190 = vadd.f32 %v1763, %v2151
    %v2191 = vadd.f32 %v1764, %v2155
    %v2192 = vadd.f32 %v1765, %v2157
    %v2193 = vadd.f32 %v1766, %v2156
    %v2194 = vmul.f32 %v1547, 0.0075987587
    %v2195 = vmul.f32 %v1552, 0.0075987587
    %v2196 = vmul.f32 %v1557, 0.0075987587
    %v2197 = vmul.f32 %v1572, 0.0075987587
    %v2198 = vmul.f32 %v1577, 0.0075987587
    %v2199 = vmul.f32 %v1582, 0.0075987587
    %v2200 = vmul.f32 %v1597, 0.0075987587
    %v2201 = vmul.f32 %v1602, 0.0075987587
    %v2202 = vmul.f32 %v1607, 0.0075987587
    %v2203 = vmul.f32 %v1622, 0.0075987587
    %v2204 = vmul.f32 %v1627, 0.0075987587
    %v2205 = vmul.f32 %v1632, 0.0075987587
    %v2206 = vmul.f32 %v1647, 0.0075987587
    %v2207 = vmul.f32 %v1652, 0.0075987587
    %v2208 = vmul.f32 %v1657, 0.0075987587
    %v2209 = vmul.f32 %v1672, 0.0075987587
    %v2210 = vmul.f32 %v1677, 0.0075987587
    %v2211 = vmul.f32 %v1682, 0.0075987587
    %v2230 = vrot.slane %v2194, 1
    %v2231 = vrot.slane %v2195, 1
    %v2232 = vsel %vm1821, %v2230, %v2231
    %v2233 = vrot.slane %v2196, 1
    %v2234 = vsel %vm1821, %v2231, %v2233
    %v2235 = vrot.slane %v2197, 1
    %v2236 = vrot.slane %v2198, 1
    %v2237 = vsel %vm1821, %v2235, %v2236
    %v2238 = vrot.slane %v2199, 1
    %v2239 = vsel %vm1821, %v2236, %v2238
    %v2240 = vrot.slane %v2200, 1
    %v2241 = vrot.slane %v2201, 1
    %v2242 = vsel %vm1821, %v2240, %v2241
    %v2243 = vrot.slane %v2202, 1
    %v2244 = vsel %vm1821, %v2241, %v2243
    %v2245 = vrot.slane %v2203, 1
    %v2246 = vrot.slane %v2204, 1
    %v2247 = vsel %vm1821, %v2245, %v2246
    %v2248 = vrot.slane %v2205, 1
    %v2249 = vsel %vm1821, %v2246, %v2248
    %v2250 = vrot.slane %v2206, 1
    %v2251 = vrot.slane %v2207, 1
    %v2252 = vsel %vm1821, %v2250, %v2251
    %v2253 = vrot.slane %v2208, 1
    %v2254 = vsel %vm1821, %v2251, %v2253
    %v2255 = vrot.slane %v2209, 1
    %v2256 = vrot.slane %v2210, 1
    %v2257 = vsel %vm1821, %v2255, %v2256
    %v2258 = vrot.slane %v2211, 1
    %v2259 = vsel %vm1821, %v2256, %v2258
    %v2278 = vadd.f32 %v1767, %v2232
    %v2279 = vadd.f32 %v1768, %v2234
    %v2280 = vadd.f32 %v1769, %v2233
    %v2281 = vadd.f32 %v1770, %v2237
    %v2282 = vadd.f32 %v1771, %v2239
    %v2283 = vadd.f32 %v1772, %v2238
    %v2284 = vadd.f32 %v1773, %v2242
    %v2285 = vadd.f32 %v1774, %v2244
    %v2286 = vadd.f32 %v1775, %v2243
    %v2287 = vadd.f32 %v1776, %v2247
    %v2288 = vadd.f32 %v1777, %v2249
    %v2289 = vadd.f32 %v1778, %v2248
    %v2290 = vadd.f32 %v1779, %v2252
    %v2291 = vadd.f32 %v1780, %v2254
    %v2292 = vadd.f32 %v1781, %v2253
    %v2293 = vadd.f32 %v1782, %v2257
    %v2294 = vadd.f32 %v1783, %v2259
    %v2295 = vadd.f32 %v1784, %v2258
    %v2296 = vmul.f32 %v237, 0.036000773
    %v2297 = vmul.f32 %v242, 0.036000773
    %v2298 = vmul.f32 %v247, 0.036000773
    %v2299 = vmul.f32 %v252, 0.036000773
    %v2300 = vmul.f32 %v262, 0.036000773
    %v2301 = vmul.f32 %v267, 0.036000773
    %v2302 = vmul.f32 %v272, 0.036000773
    %v2303 = vmul.f32 %v277, 0.036000773
    %v2304 = vmul.f32 %v287, 0.036000773
    %v2305 = vmul.f32 %v292, 0.036000773
    %v2306 = vmul.f32 %v297, 0.036000773
    %v2307 = vmul.f32 %v302, 0.036000773
    %v2308 = vmul.f32 %v312, 0.036000773
    %v2309 = vmul.f32 %v317, 0.036000773
    %v2310 = vmul.f32 %v322, 0.036000773
    %v2311 = vmul.f32 %v327, 0.036000773
    %v2312 = vmul.f32 %v337, 0.036000773
    %v2313 = vmul.f32 %v342, 0.036000773
    %v2314 = vmul.f32 %v347, 0.036000773
    %v2315 = vmul.f32 %v352, 0.036000773
    %v2316 = vmul.f32 %v362, 0.036000773
    %v2317 = vmul.f32 %v367, 0.036000773
    %v2318 = vmul.f32 %v372, 0.036000773
    %v2319 = vmul.f32 %v377, 0.036000773
    %vm2344 = vcmask 1045504
    %v2345 = vrot.slane %v2296, 2
    %v2346 = vrot.slane %v2297, 2
    %v2347 = vsel %vm2344, %v2345, %v2346
    %v2348 = vrot.slane %v2298, 2
    %v2349 = vsel %vm2344, %v2346, %v2348
    %v2350 = vrot.slane %v2299, 2
    %v2351 = vsel %vm2344, %v2348, %v2350
    %v2352 = vrot.slane %v2300, 2
    %v2353 = vrot.slane %v2301, 2
    %v2354 = vsel %vm2344, %v2352, %v2353
    %v2355 = vrot.slane %v2302, 2
    %v2356 = vsel %vm2344, %v2353, %v2355
    %v2357 = vrot.slane %v2303, 2
    %v2358 = vsel %vm2344, %v2355, %v2357
    %v2359 = vrot.slane %v2304, 2
    %v2360 = vrot.slane %v2305, 2
    %v2361 = vsel %vm2344, %v2359, %v2360
    %v2362 = vrot.slane %v2306, 2
    %v2363 = vsel %vm2344, %v2360, %v2362
    %v2364 = vrot.slane %v2307, 2
    %v2365 = vsel %vm2344, %v2362, %v2364
    %v2366 = vrot.slane %v2308, 2
    %v2367 = vrot.slane %v2309, 2
    %v2368 = vsel %vm2344, %v2366, %v2367
    %v2369 = vrot.slane %v2310, 2
    %v2370 = vsel %vm2344, %v2367, %v2369
    %v2371 = vrot.slane %v2311, 2
    %v2372 = vsel %vm2344, %v2369, %v2371
    %v2373 = vrot.slane %v2312, 2
    %v2374 = vrot.slane %v2313, 2
    %v2375 = vsel %vm2344, %v2373, %v2374
    %v2376 = vrot.slane %v2314, 2
    %v2377 = vsel %vm2344, %v2374, %v2376
    %v2378 = vrot.slane %v2315, 2
    %v2379 = vsel %vm2344, %v2376, %v2378
    %v2380 = vrot.slane %v2316, 2
    %v2381 = vrot.slane %v2317, 2
    %v2382 = vsel %vm2344, %v2380, %v2381
    %v2383 = vrot.slane %v2318, 2
    %v2384 = vsel %vm2344, %v2381, %v2383
    %v2385 = vrot.slane %v2319, 2
    %v2386 = vsel %vm2344, %v2383, %v2385
    %v2405 = vadd.f32 %v1870, %v2347
    %v2406 = vadd.f32 %v1871, %v2349
    %v2407 = vadd.f32 %v1872, %v2351
    %v2408 = vadd.f32 %v1873, %v2354
    %v2409 = vadd.f32 %v1874, %v2356
    %v2410 = vadd.f32 %v1875, %v2358
    %v2411 = vadd.f32 %v1876, %v2361
    %v2412 = vadd.f32 %v1877, %v2363
    %v2413 = vadd.f32 %v1878, %v2365
    %v2414 = vadd.f32 %v1879, %v2368
    %v2415 = vadd.f32 %v1880, %v2370
    %v2416 = vadd.f32 %v1881, %v2372
    %v2417 = vadd.f32 %v1882, %v2375
    %v2418 = vadd.f32 %v1883, %v2377
    %v2419 = vadd.f32 %v1884, %v2379
    %v2420 = vadd.f32 %v1885, %v2382
    %v2421 = vadd.f32 %v1886, %v2384
    %v2422 = vadd.f32 %v1887, %v2386
    %v2423 = vmul.f32 %v542, 0.036000773
    %v2424 = vmul.f32 %v547, 0.036000773
    %v2425 = vmul.f32 %v552, 0.036000773
    %v2426 = vmul.f32 %v557, 0.036000773
    %v2427 = vmul.f32 %v567, 0.036000773
    %v2428 = vmul.f32 %v572, 0.036000773
    %v2429 = vmul.f32 %v577, 0.036000773
    %v2430 = vmul.f32 %v582, 0.036000773
    %v2431 = vmul.f32 %v592, 0.036000773
    %v2432 = vmul.f32 %v597, 0.036000773
    %v2433 = vmul.f32 %v602, 0.036000773
    %v2434 = vmul.f32 %v607, 0.036000773
    %v2435 = vmul.f32 %v617, 0.036000773
    %v2436 = vmul.f32 %v622, 0.036000773
    %v2437 = vmul.f32 %v627, 0.036000773
    %v2438 = vmul.f32 %v632, 0.036000773
    %v2439 = vmul.f32 %v642, 0.036000773
    %v2440 = vmul.f32 %v647, 0.036000773
    %v2441 = vmul.f32 %v652, 0.036000773
    %v2442 = vmul.f32 %v657, 0.036000773
    %v2443 = vmul.f32 %v667, 0.036000773
    %v2444 = vmul.f32 %v672, 0.036000773
    %v2445 = vmul.f32 %v677, 0.036000773
    %v2446 = vmul.f32 %v682, 0.036000773
    %v2471 = vrot.slane %v2423, 2
    %v2472 = vrot.slane %v2424, 2
    %v2473 = vsel %vm2344, %v2471, %v2472
    %v2474 = vrot.slane %v2425, 2
    %v2475 = vsel %vm2344, %v2472, %v2474
    %v2476 = vrot.slane %v2426, 2
    %v2477 = vsel %vm2344, %v2474, %v2476
    %v2478 = vrot.slane %v2427, 2
    %v2479 = vrot.slane %v2428, 2
    %v2480 = vsel %vm2344, %v2478, %v2479
    %v2481 = vrot.slane %v2429, 2
    %v2482 = vsel %vm2344, %v2479, %v2481
    %v2483 = vrot.slane %v2430, 2
    %v2484 = vsel %vm2344, %v2481, %v2483
    %v2485 = vrot.slane %v2431, 2
    %v2486 = vrot.slane %v2432, 2
    %v2487 = vsel %vm2344, %v2485, %v2486
    %v2488 = vrot.slane %v2433, 2
    %v2489 = vsel %vm2344, %v2486, %v2488
    %v2490 = vrot.slane %v2434, 2
    %v2491 = vsel %vm2344, %v2488, %v2490
    %v2492 = vrot.slane %v2435, 2
    %v2493 = vrot.slane %v2436, 2
    %v2494 = vsel %vm2344, %v2492, %v2493
    %v2495 = vrot.slane %v2437, 2
    %v2496 = vsel %vm2344, %v2493, %v2495
    %v2497 = vrot.slane %v2438, 2
    %v2498 = vsel %vm2344, %v2495, %v2497
    %v2499 = vrot.slane %v2439, 2
    %v2500 = vrot.slane %v2440, 2
    %v2501 = vsel %vm2344, %v2499, %v2500
    %v2502 = vrot.slane %v2441, 2
    %v2503 = vsel %vm2344, %v2500, %v2502
    %v2504 = vrot.slane %v2442, 2
    %v2505 = vsel %vm2344, %v2502, %v2504
    %v2506 = vrot.slane %v2443, 2
    %v2507 = vrot.slane %v2444, 2
    %v2508 = vsel %vm2344, %v2506, %v2507
    %v2509 = vrot.slane %v2445, 2
    %v2510 = vsel %vm2344, %v2507, %v2509
    %v2511 = vrot.slane %v2446, 2
    %v2512 = vsel %vm2344, %v2509, %v2511
    %v2531 = vadd.f32 %v1972, %v2473
    %v2532 = vadd.f32 %v1973, %v2475
    %v2533 = vadd.f32 %v1974, %v2477
    %v2534 = vadd.f32 %v1975, %v2480
    %v2535 = vadd.f32 %v1976, %v2482
    %v2536 = vadd.f32 %v1977, %v2484
    %v2537 = vadd.f32 %v1978, %v2487
    %v2538 = vadd.f32 %v1979, %v2489
    %v2539 = vadd.f32 %v1980, %v2491
    %v2540 = vadd.f32 %v1981, %v2494
    %v2541 = vadd.f32 %v1982, %v2496
    %v2542 = vadd.f32 %v1983, %v2498
    %v2543 = vadd.f32 %v1984, %v2501
    %v2544 = vadd.f32 %v1985, %v2503
    %v2545 = vadd.f32 %v1986, %v2505
    %v2546 = vadd.f32 %v1987, %v2508
    %v2547 = vadd.f32 %v1988, %v2510
    %v2548 = vadd.f32 %v1989, %v2512
    %v2549 = vmul.f32 %v877, 0.036000773
    %v2550 = vmul.f32 %v882, 0.036000773
    %v2551 = vmul.f32 %v887, 0.036000773
    %v2552 = vmul.f32 %v892, 0.036000773
    %v2553 = vmul.f32 %v902, 0.036000773
    %v2554 = vmul.f32 %v907, 0.036000773
    %v2555 = vmul.f32 %v912, 0.036000773
    %v2556 = vmul.f32 %v917, 0.036000773
    %v2557 = vmul.f32 %v927, 0.036000773
    %v2558 = vmul.f32 %v932, 0.036000773
    %v2559 = vmul.f32 %v937, 0.036000773
    %v2560 = vmul.f32 %v942, 0.036000773
    %v2561 = vmul.f32 %v952, 0.036000773
    %v2562 = vmul.f32 %v957, 0.036000773
    %v2563 = vmul.f32 %v962, 0.036000773
    %v2564 = vmul.f32 %v967, 0.036000773
    %v2565 = vmul.f32 %v977, 0.036000773
    %v2566 = vmul.f32 %v982, 0.036000773
    %v2567 = vmul.f32 %v987, 0.036000773
    %v2568 = vmul.f32 %v992, 0.036000773
    %v2569 = vmul.f32 %v1002, 0.036000773
    %v2570 = vmul.f32 %v1007, 0.036000773
    %v2571 = vmul.f32 %v1012, 0.036000773
    %v2572 = vmul.f32 %v1017, 0.036000773
    %v2597 = vrot.slane %v2549, 2
    %v2598 = vrot.slane %v2550, 2
    %v2599 = vsel %vm2344, %v2597, %v2598
    %v2600 = vrot.slane %v2551, 2
    %v2601 = vsel %vm2344, %v2598, %v2600
    %v2602 = vrot.slane %v2552, 2
    %v2603 = vsel %vm2344, %v2600, %v2602
    %v2604 = vrot.slane %v2553, 2
    %v2605 = vrot.slane %v2554, 2
    %v2606 = vsel %vm2344, %v2604, %v2605
    %v2607 = vrot.slane %v2555, 2
    %v2608 = vsel %vm2344, %v2605, %v2607
    %v2609 = vrot.slane %v2556, 2
    %v2610 = vsel %vm2344, %v2607, %v2609
    %v2611 = vrot.slane %v2557, 2
    %v2612 = vrot.slane %v2558, 2
    %v2613 = vsel %vm2344, %v2611, %v2612
    %v2614 = vrot.slane %v2559, 2
    %v2615 = vsel %vm2344, %v2612, %v2614
    %v2616 = vrot.slane %v2560, 2
    %v2617 = vsel %vm2344, %v2614, %v2616
    %v2618 = vrot.slane %v2561, 2
    %v2619 = vrot.slane %v2562, 2
    %v2620 = vsel %vm2344, %v2618, %v2619
    %v2621 = vrot.slane %v2563, 2
    %v2622 = vsel %vm2344, %v2619, %v2621
    %v2623 = vrot.slane %v2564, 2
    %v2624 = vsel %vm2344, %v2621, %v2623
    %v2625 = vrot.slane %v2565, 2
    %v2626 = vrot.slane %v2566, 2
    %v2627 = vsel %vm2344, %v2625, %v2626
    %v2628 = vrot.slane %v2567, 2
    %v2629 = vsel %vm2344, %v2626, %v2628
    %v2630 = vrot.slane %v2568, 2
    %v2631 = vsel %vm2344, %v2628, %v2630
    %v2632 = vrot.slane %v2569, 2
    %v2633 = vrot.slane %v2570, 2
    %v2634 = vsel %vm2344, %v2632, %v2633
    %v2635 = vrot.slane %v2571, 2
    %v2636 = vsel %vm2344, %v2633, %v2635
    %v2637 = vrot.slane %v2572, 2
    %v2638 = vsel %vm2344, %v2635, %v2637
    %v2657 = vadd.f32 %v2074, %v2599
    %v2658 = vadd.f32 %v2075, %v2601
    %v2659 = vadd.f32 %v2076, %v2603
    %v2660 = vadd.f32 %v2077, %v2606
    %v2661 = vadd.f32 %v2078, %v2608
    %v2662 = vadd.f32 %v2079, %v2610
    %v2663 = vadd.f32 %v2080, %v2613
    %v2664 = vadd.f32 %v2081, %v2615
    %v2665 = vadd.f32 %v2082, %v2617
    %v2666 = vadd.f32 %v2083, %v2620
    %v2667 = vadd.f32 %v2084, %v2622
    %v2668 = vadd.f32 %v2085, %v2624
    %v2669 = vadd.f32 %v2086, %v2627
    %v2670 = vadd.f32 %v2087, %v2629
    %v2671 = vadd.f32 %v2088, %v2631
    %v2672 = vadd.f32 %v2089, %v2634
    %v2673 = vadd.f32 %v2090, %v2636
    %v2674 = vadd.f32 %v2091, %v2638
    %v2675 = vmul.f32 %v1212, 0.036000773
    %v2676 = vmul.f32 %v1217, 0.036000773
    %v2677 = vmul.f32 %v1222, 0.036000773
    %v2678 = vmul.f32 %v1227, 0.036000773
    %v2679 = vmul.f32 %v1237, 0.036000773
    %v2680 = vmul.f32 %v1242, 0.036000773
    %v2681 = vmul.f32 %v1247, 0.036000773
    %v2682 = vmul.f32 %v1252, 0.036000773
    %v2683 = vmul.f32 %v1262, 0.036000773
    %v2684 = vmul.f32 %v1267, 0.036000773
    %v2685 = vmul.f32 %v1272, 0.036000773
    %v2686 = vmul.f32 %v1277, 0.036000773
    %v2687 = vmul.f32 %v1287, 0.036000773
    %v2688 = vmul.f32 %v1292, 0.036000773
    %v2689 = vmul.f32 %v1297, 0.036000773
    %v2690 = vmul.f32 %v1302, 0.036000773
    %v2691 = vmul.f32 %v1312, 0.036000773
    %v2692 = vmul.f32 %v1317, 0.036000773
    %v2693 = vmul.f32 %v1322, 0.036000773
    %v2694 = vmul.f32 %v1327, 0.036000773
    %v2695 = vmul.f32 %v1337, 0.036000773
    %v2696 = vmul.f32 %v1342, 0.036000773
    %v2697 = vmul.f32 %v1347, 0.036000773
    %v2698 = vmul.f32 %v1352, 0.036000773
    %v2723 = vrot.slane %v2675, 2
    %v2724 = vrot.slane %v2676, 2
    %v2725 = vsel %vm2344, %v2723, %v2724
    %v2726 = vrot.slane %v2677, 2
    %v2727 = vsel %vm2344, %v2724, %v2726
    %v2728 = vrot.slane %v2678, 2
    %v2729 = vsel %vm2344, %v2726, %v2728
    %v2730 = vrot.slane %v2679, 2
    %v2731 = vrot.slane %v2680, 2
    %v2732 = vsel %vm2344, %v2730, %v2731
    %v2733 = vrot.slane %v2681, 2
    %v2734 = vsel %vm2344, %v2731, %v2733
    %v2735 = vrot.slane %v2682, 2
    %v2736 = vsel %vm2344, %v2733, %v2735
    %v2737 = vrot.slane %v2683, 2
    %v2738 = vrot.slane %v2684, 2
    %v2739 = vsel %vm2344, %v2737, %v2738
    %v2740 = vrot.slane %v2685, 2
    %v2741 = vsel %vm2344, %v2738, %v2740
    %v2742 = vrot.slane %v2686, 2
    %v2743 = vsel %vm2344, %v2740, %v2742
    %v2744 = vrot.slane %v2687, 2
    %v2745 = vrot.slane %v2688, 2
    %v2746 = vsel %vm2344, %v2744, %v2745
    %v2747 = vrot.slane %v2689, 2
    %v2748 = vsel %vm2344, %v2745, %v2747
    %v2749 = vrot.slane %v2690, 2
    %v2750 = vsel %vm2344, %v2747, %v2749
    %v2751 = vrot.slane %v2691, 2
    %v2752 = vrot.slane %v2692, 2
    %v2753 = vsel %vm2344, %v2751, %v2752
    %v2754 = vrot.slane %v2693, 2
    %v2755 = vsel %vm2344, %v2752, %v2754
    %v2756 = vrot.slane %v2694, 2
    %v2757 = vsel %vm2344, %v2754, %v2756
    %v2758 = vrot.slane %v2695, 2
    %v2759 = vrot.slane %v2696, 2
    %v2760 = vsel %vm2344, %v2758, %v2759
    %v2761 = vrot.slane %v2697, 2
    %v2762 = vsel %vm2344, %v2759, %v2761
    %v2763 = vrot.slane %v2698, 2
    %v2764 = vsel %vm2344, %v2761, %v2763
    %v2783 = vadd.f32 %v2176, %v2725
    %v2784 = vadd.f32 %v2177, %v2727
    %v2785 = vadd.f32 %v2178, %v2729
    %v2786 = vadd.f32 %v2179, %v2732
    %v2787 = vadd.f32 %v2180, %v2734
    %v2788 = vadd.f32 %v2181, %v2736
    %v2789 = vadd.f32 %v2182, %v2739
    %v2790 = vadd.f32 %v2183, %v2741
    %v2791 = vadd.f32 %v2184, %v2743
    %v2792 = vadd.f32 %v2185, %v2746
    %v2793 = vadd.f32 %v2186, %v2748
    %v2794 = vadd.f32 %v2187, %v2750
    %v2795 = vadd.f32 %v2188, %v2753
    %v2796 = vadd.f32 %v2189, %v2755
    %v2797 = vadd.f32 %v2190, %v2757
    %v2798 = vadd.f32 %v2191, %v2760
    %v2799 = vadd.f32 %v2192, %v2762
    %v2800 = vadd.f32 %v2193, %v2764
    %v2801 = vmul.f32 %v1547, 0.036000773
    %v2802 = vmul.f32 %v1552, 0.036000773
    %v2803 = vmul.f32 %v1557, 0.036000773
    %v2804 = vmul.f32 %v1562, 0.036000773
    %v2805 = vmul.f32 %v1572, 0.036000773
    %v2806 = vmul.f32 %v1577, 0.036000773
    %v2807 = vmul.f32 %v1582, 0.036000773
    %v2808 = vmul.f32 %v1587, 0.036000773
    %v2809 = vmul.f32 %v1597, 0.036000773
    %v2810 = vmul.f32 %v1602, 0.036000773
    %v2811 = vmul.f32 %v1607, 0.036000773
    %v2812 = vmul.f32 %v1612, 0.036000773
    %v2813 = vmul.f32 %v1622, 0.036000773
    %v2814 = vmul.f32 %v1627, 0.036000773
    %v2815 = vmul.f32 %v1632, 0.036000773
    %v2816 = vmul.f32 %v1637, 0.036000773
    %v2817 = vmul.f32 %v1647, 0.036000773
    %v2818 = vmul.f32 %v1652, 0.036000773
    %v2819 = vmul.f32 %v1657, 0.036000773
    %v2820 = vmul.f32 %v1662, 0.036000773
    %v2821 = vmul.f32 %v1672, 0.036000773
    %v2822 = vmul.f32 %v1677, 0.036000773
    %v2823 = vmul.f32 %v1682, 0.036000773
    %v2824 = vmul.f32 %v1687, 0.036000773
    %v2849 = vrot.slane %v2801, 2
    %v2850 = vrot.slane %v2802, 2
    %v2851 = vsel %vm2344, %v2849, %v2850
    %v2852 = vrot.slane %v2803, 2
    %v2853 = vsel %vm2344, %v2850, %v2852
    %v2854 = vrot.slane %v2804, 2
    %v2855 = vsel %vm2344, %v2852, %v2854
    %v2856 = vrot.slane %v2805, 2
    %v2857 = vrot.slane %v2806, 2
    %v2858 = vsel %vm2344, %v2856, %v2857
    %v2859 = vrot.slane %v2807, 2
    %v2860 = vsel %vm2344, %v2857, %v2859
    %v2861 = vrot.slane %v2808, 2
    %v2862 = vsel %vm2344, %v2859, %v2861
    %v2863 = vrot.slane %v2809, 2
    %v2864 = vrot.slane %v2810, 2
    %v2865 = vsel %vm2344, %v2863, %v2864
    %v2866 = vrot.slane %v2811, 2
    %v2867 = vsel %vm2344, %v2864, %v2866
    %v2868 = vrot.slane %v2812, 2
    %v2869 = vsel %vm2344, %v2866, %v2868
    %v2870 = vrot.slane %v2813, 2
    %v2871 = vrot.slane %v2814, 2
    %v2872 = vsel %vm2344, %v2870, %v2871
    %v2873 = vrot.slane %v2815, 2
    %v2874 = vsel %vm2344, %v2871, %v2873
    %v2875 = vrot.slane %v2816, 2
    %v2876 = vsel %vm2344, %v2873, %v2875
    %v2877 = vrot.slane %v2817, 2
    %v2878 = vrot.slane %v2818, 2
    %v2879 = vsel %vm2344, %v2877, %v2878
    %v2880 = vrot.slane %v2819, 2
    %v2881 = vsel %vm2344, %v2878, %v2880
    %v2882 = vrot.slane %v2820, 2
    %v2883 = vsel %vm2344, %v2880, %v2882
    %v2884 = vrot.slane %v2821, 2
    %v2885 = vrot.slane %v2822, 2
    %v2886 = vsel %vm2344, %v2884, %v2885
    %v2887 = vrot.slane %v2823, 2
    %v2888 = vsel %vm2344, %v2885, %v2887
    %v2889 = vrot.slane %v2824, 2
    %v2890 = vsel %vm2344, %v2887, %v2889
    %v2909 = vadd.f32 %v2278, %v2851
    %v2910 = vadd.f32 %v2279, %v2853
    %v2911 = vadd.f32 %v2280, %v2855
    %v2912 = vadd.f32 %v2281, %v2858
    %v2913 = vadd.f32 %v2282, %v2860
    %v2914 = vadd.f32 %v2283, %v2862
    %v2915 = vadd.f32 %v2284, %v2865
    %v2916 = vadd.f32 %v2285, %v2867
    %v2917 = vadd.f32 %v2286, %v2869
    %v2918 = vadd.f32 %v2287, %v2872
    %v2919 = vadd.f32 %v2288, %v2874
    %v2920 = vadd.f32 %v2289, %v2876
    %v2921 = vadd.f32 %v2290, %v2879
    %v2922 = vadd.f32 %v2291, %v2881
    %v2923 = vadd.f32 %v2292, %v2883
    %v2924 = vadd.f32 %v2293, %v2886
    %v2925 = vadd.f32 %v2294, %v2888
    %v2926 = vadd.f32 %v2295, %v2890
    %v2927 = vmul.f32 %v237, 0.1093607
    %v2928 = vmul.f32 %v242, 0.1093607
    %v2929 = vmul.f32 %v247, 0.1093607
    %v2930 = vmul.f32 %v252, 0.1093607
    %v2931 = vmul.f32 %v262, 0.1093607
    %v2932 = vmul.f32 %v267, 0.1093607
    %v2933 = vmul.f32 %v272, 0.1093607
    %v2934 = vmul.f32 %v277, 0.1093607
    %v2935 = vmul.f32 %v287, 0.1093607
    %v2936 = vmul.f32 %v292, 0.1093607
    %v2937 = vmul.f32 %v297, 0.1093607
    %v2938 = vmul.f32 %v302, 0.1093607
    %v2939 = vmul.f32 %v312, 0.1093607
    %v2940 = vmul.f32 %v317, 0.1093607
    %v2941 = vmul.f32 %v322, 0.1093607
    %v2942 = vmul.f32 %v327, 0.1093607
    %v2943 = vmul.f32 %v337, 0.1093607
    %v2944 = vmul.f32 %v342, 0.1093607
    %v2945 = vmul.f32 %v347, 0.1093607
    %v2946 = vmul.f32 %v352, 0.1093607
    %v2947 = vmul.f32 %v362, 0.1093607
    %v2948 = vmul.f32 %v367, 0.1093607
    %v2949 = vmul.f32 %v372, 0.1093607
    %v2950 = vmul.f32 %v377, 0.1093607
    %vm2975 = vcmask 1044480
    %v2976 = vrot.slane %v2927, 3
    %v2977 = vrot.slane %v2928, 3
    %v2978 = vsel %vm2975, %v2976, %v2977
    %v2979 = vrot.slane %v2929, 3
    %v2980 = vsel %vm2975, %v2977, %v2979
    %v2981 = vrot.slane %v2930, 3
    %v2982 = vsel %vm2975, %v2979, %v2981
    %v2983 = vrot.slane %v2931, 3
    %v2984 = vrot.slane %v2932, 3
    %v2985 = vsel %vm2975, %v2983, %v2984
    %v2986 = vrot.slane %v2933, 3
    %v2987 = vsel %vm2975, %v2984, %v2986
    %v2988 = vrot.slane %v2934, 3
    %v2989 = vsel %vm2975, %v2986, %v2988
    %v2990 = vrot.slane %v2935, 3
    %v2991 = vrot.slane %v2936, 3
    %v2992 = vsel %vm2975, %v2990, %v2991
    %v2993 = vrot.slane %v2937, 3
    %v2994 = vsel %vm2975, %v2991, %v2993
    %v2995 = vrot.slane %v2938, 3
    %v2996 = vsel %vm2975, %v2993, %v2995
    %v2997 = vrot.slane %v2939, 3
    %v2998 = vrot.slane %v2940, 3
    %v2999 = vsel %vm2975, %v2997, %v2998
    %v3000 = vrot.slane %v2941, 3
    %v3001 = vsel %vm2975, %v2998, %v3000
    %v3002 = vrot.slane %v2942, 3
    %v3003 = vsel %vm2975, %v3000, %v3002
    %v3004 = vrot.slane %v2943, 3
    %v3005 = vrot.slane %v2944, 3
    %v3006 = vsel %vm2975, %v3004, %v3005
    %v3007 = vrot.slane %v2945, 3
    %v3008 = vsel %vm2975, %v3005, %v3007
    %v3009 = vrot.slane %v2946, 3
    %v3010 = vsel %vm2975, %v3007, %v3009
    %v3011 = vrot.slane %v2947, 3
    %v3012 = vrot.slane %v2948, 3
    %v3013 = vsel %vm2975, %v3011, %v3012
    %v3014 = vrot.slane %v2949, 3
    %v3015 = vsel %vm2975, %v3012, %v3014
    %v3016 = vrot.slane %v2950, 3
    %v3017 = vsel %vm2975, %v3014, %v3016
    %v3036 = vadd.f32 %v2405, %v2978
    %v3037 = vadd.f32 %v2406, %v2980
    %v3038 = vadd.f32 %v2407, %v2982
    %v3039 = vadd.f32 %v2408, %v2985
    %v3040 = vadd.f32 %v2409, %v2987
    %v3041 = vadd.f32 %v2410, %v2989
    %v3042 = vadd.f32 %v2411, %v2992
    %v3043 = vadd.f32 %v2412, %v2994
    %v3044 = vadd.f32 %v2413, %v2996
    %v3045 = vadd.f32 %v2414, %v2999
    %v3046 = vadd.f32 %v2415, %v3001
    %v3047 = vadd.f32 %v2416, %v3003
    %v3048 = vadd.f32 %v2417, %v3006
    %v3049 = vadd.f32 %v2418, %v3008
    %v3050 = vadd.f32 %v2419, %v3010
    %v3051 = vadd.f32 %v2420, %v3013
    %v3052 = vadd.f32 %v2421, %v3015
    %v3053 = vadd.f32 %v2422, %v3017
    %v3054 = vmul.f32 %v542, 0.1093607
    %v3055 = vmul.f32 %v547, 0.1093607
    %v3056 = vmul.f32 %v552, 0.1093607
    %v3057 = vmul.f32 %v557, 0.1093607
    %v3058 = vmul.f32 %v567, 0.1093607
    %v3059 = vmul.f32 %v572, 0.1093607
    %v3060 = vmul.f32 %v577, 0.1093607
    %v3061 = vmul.f32 %v582, 0.1093607
    %v3062 = vmul.f32 %v592, 0.1093607
    %v3063 = vmul.f32 %v597, 0.1093607
    %v3064 = vmul.f32 %v602, 0.1093607
    %v3065 = vmul.f32 %v607, 0.1093607
    %v3066 = vmul.f32 %v617, 0.1093607
    %v3067 = vmul.f32 %v622, 0.1093607
    %v3068 = vmul.f32 %v627, 0.1093607
    %v3069 = vmul.f32 %v632, 0.1093607
    %v3070 = vmul.f32 %v642, 0.1093607
    %v3071 = vmul.f32 %v647, 0.1093607
    %v3072 = vmul.f32 %v652, 0.1093607
    %v3073 = vmul.f32 %v657, 0.1093607
    %v3074 = vmul.f32 %v667, 0.1093607
    %v3075 = vmul.f32 %v672, 0.1093607
    %v3076 = vmul.f32 %v677, 0.1093607
    %v3077 = vmul.f32 %v682, 0.1093607
    %v3102 = vrot.slane %v3054, 3
    %v3103 = vrot.slane %v3055, 3
    %v3104 = vsel %vm2975, %v3102, %v3103
    %v3105 = vrot.slane %v3056, 3
    %v3106 = vsel %vm2975, %v3103, %v3105
    %v3107 = vrot.slane %v3057, 3
    %v3108 = vsel %vm2975, %v3105, %v3107
    %v3109 = vrot.slane %v3058, 3
    %v3110 = vrot.slane %v3059, 3
    %v3111 = vsel %vm2975, %v3109, %v3110
    %v3112 = vrot.slane %v3060, 3
    %v3113 = vsel %vm2975, %v3110, %v3112
    %v3114 = vrot.slane %v3061, 3
    %v3115 = vsel %vm2975, %v3112, %v3114
    %v3116 = vrot.slane %v3062, 3
    %v3117 = vrot.slane %v3063, 3
    %v3118 = vsel %vm2975, %v3116, %v3117
    %v3119 = vrot.slane %v3064, 3
    %v3120 = vsel %vm2975, %v3117, %v3119
    %v3121 = vrot.slane %v3065, 3
    %v3122 = vsel %vm2975, %v3119, %v3121
    %v3123 = vrot.slane %v3066, 3
    %v3124 = vrot.slane %v3067, 3
    %v3125 = vsel %vm2975, %v3123, %v3124
    %v3126 = vrot.slane %v3068, 3
    %v3127 = vsel %vm2975, %v3124, %v3126
    %v3128 = vrot.slane %v3069, 3
    %v3129 = vsel %vm2975, %v3126, %v3128
    %v3130 = vrot.slane %v3070, 3
    %v3131 = vrot.slane %v3071, 3
    %v3132 = vsel %vm2975, %v3130, %v3131
    %v3133 = vrot.slane %v3072, 3
    %v3134 = vsel %vm2975, %v3131, %v3133
    %v3135 = vrot.slane %v3073, 3
    %v3136 = vsel %vm2975, %v3133, %v3135
    %v3137 = vrot.slane %v3074, 3
    %v3138 = vrot.slane %v3075, 3
    %v3139 = vsel %vm2975, %v3137, %v3138
    %v3140 = vrot.slane %v3076, 3
    %v3141 = vsel %vm2975, %v3138, %v3140
    %v3142 = vrot.slane %v3077, 3
    %v3143 = vsel %vm2975, %v3140, %v3142
    %v3162 = vadd.f32 %v2531, %v3104
    %v3163 = vadd.f32 %v2532, %v3106
    %v3164 = vadd.f32 %v2533, %v3108
    %v3165 = vadd.f32 %v2534, %v3111
    %v3166 = vadd.f32 %v2535, %v3113
    %v3167 = vadd.f32 %v2536, %v3115
    %v3168 = vadd.f32 %v2537, %v3118
    %v3169 = vadd.f32 %v2538, %v3120
    %v3170 = vadd.f32 %v2539, %v3122
    %v3171 = vadd.f32 %v2540, %v3125
    %v3172 = vadd.f32 %v2541, %v3127
    %v3173 = vadd.f32 %v2542, %v3129
    %v3174 = vadd.f32 %v2543, %v3132
    %v3175 = vadd.f32 %v2544, %v3134
    %v3176 = vadd.f32 %v2545, %v3136
    %v3177 = vadd.f32 %v2546, %v3139
    %v3178 = vadd.f32 %v2547, %v3141
    %v3179 = vadd.f32 %v2548, %v3143
    %v3180 = vmul.f32 %v877, 0.1093607
    %v3181 = vmul.f32 %v882, 0.1093607
    %v3182 = vmul.f32 %v887, 0.1093607
    %v3183 = vmul.f32 %v892, 0.1093607
    %v3184 = vmul.f32 %v902, 0.1093607
    %v3185 = vmul.f32 %v907, 0.1093607
    %v3186 = vmul.f32 %v912, 0.1093607
    %v3187 = vmul.f32 %v917, 0.1093607
    %v3188 = vmul.f32 %v927, 0.1093607
    %v3189 = vmul.f32 %v932, 0.1093607
    %v3190 = vmul.f32 %v937, 0.1093607
    %v3191 = vmul.f32 %v942, 0.1093607
    %v3192 = vmul.f32 %v952, 0.1093607
    %v3193 = vmul.f32 %v957, 0.1093607
    %v3194 = vmul.f32 %v962, 0.1093607
    %v3195 = vmul.f32 %v967, 0.1093607
    %v3196 = vmul.f32 %v977, 0.1093607
    %v3197 = vmul.f32 %v982, 0.1093607
    %v3198 = vmul.f32 %v987, 0.1093607
    %v3199 = vmul.f32 %v992, 0.1093607
    %v3200 = vmul.f32 %v1002, 0.1093607
    %v3201 = vmul.f32 %v1007, 0.1093607
    %v3202 = vmul.f32 %v1012, 0.1093607
    %v3203 = vmul.f32 %v1017, 0.1093607
    %v3228 = vrot.slane %v3180, 3
    %v3229 = vrot.slane %v3181, 3
    %v3230 = vsel %vm2975, %v3228, %v3229
    %v3231 = vrot.slane %v3182, 3
    %v3232 = vsel %vm2975, %v3229, %v3231
    %v3233 = vrot.slane %v3183, 3
    %v3234 = vsel %vm2975, %v3231, %v3233
    %v3235 = vrot.slane %v3184, 3
    %v3236 = vrot.slane %v3185, 3
    %v3237 = vsel %vm2975, %v3235, %v3236
    %v3238 = vrot.slane %v3186, 3
    %v3239 = vsel %vm2975, %v3236, %v3238
    %v3240 = vrot.slane %v3187, 3
    %v3241 = vsel %vm2975, %v3238, %v3240
    %v3242 = vrot.slane %v3188, 3
    %v3243 = vrot.slane %v3189, 3
    %v3244 = vsel %vm2975, %v3242, %v3243
    %v3245 = vrot.slane %v3190, 3
    %v3246 = vsel %vm2975, %v3243, %v3245
    %v3247 = vrot.slane %v3191, 3
    %v3248 = vsel %vm2975, %v3245, %v3247
    %v3249 = vrot.slane %v3192, 3
    %v3250 = vrot.slane %v3193, 3
    %v3251 = vsel %vm2975, %v3249, %v3250
    %v3252 = vrot.slane %v3194, 3
    %v3253 = vsel %vm2975, %v3250, %v3252
    %v3254 = vrot.slane %v3195, 3
    %v3255 = vsel %vm2975, %v3252, %v3254
    %v3256 = vrot.slane %v3196, 3
    %v3257 = vrot.slane %v3197, 3
    %v3258 = vsel %vm2975, %v3256, %v3257
    %v3259 = vrot.slane %v3198, 3
    %v3260 = vsel %vm2975, %v3257, %v3259
    %v3261 = vrot.slane %v3199, 3
    %v3262 = vsel %vm2975, %v3259, %v3261
    %v3263 = vrot.slane %v3200, 3
    %v3264 = vrot.slane %v3201, 3
    %v3265 = vsel %vm2975, %v3263, %v3264
    %v3266 = vrot.slane %v3202, 3
    %v3267 = vsel %vm2975, %v3264, %v3266
    %v3268 = vrot.slane %v3203, 3
    %v3269 = vsel %vm2975, %v3266, %v3268
    %v3288 = vadd.f32 %v2657, %v3230
    %v3289 = vadd.f32 %v2658, %v3232
    %v3290 = vadd.f32 %v2659, %v3234
    %v3291 = vadd.f32 %v2660, %v3237
    %v3292 = vadd.f32 %v2661, %v3239
    %v3293 = vadd.f32 %v2662, %v3241
    %v3294 = vadd.f32 %v2663, %v3244
    %v3295 = vadd.f32 %v2664, %v3246
    %v3296 = vadd.f32 %v2665, %v3248
    %v3297 = vadd.f32 %v2666, %v3251
    %v3298 = vadd.f32 %v2667, %v3253
    %v3299 = vadd.f32 %v2668, %v3255
    %v3300 = vadd.f32 %v2669, %v3258
    %v3301 = vadd.f32 %v2670, %v3260
    %v3302 = vadd.f32 %v2671, %v3262
    %v3303 = vadd.f32 %v2672, %v3265
    %v3304 = vadd.f32 %v2673, %v3267
    %v3305 = vadd.f32 %v2674, %v3269
    %v3306 = vmul.f32 %v1212, 0.1093607
    %v3307 = vmul.f32 %v1217, 0.1093607
    %v3308 = vmul.f32 %v1222, 0.1093607
    %v3309 = vmul.f32 %v1227, 0.1093607
    %v3310 = vmul.f32 %v1237, 0.1093607
    %v3311 = vmul.f32 %v1242, 0.1093607
    %v3312 = vmul.f32 %v1247, 0.1093607
    %v3313 = vmul.f32 %v1252, 0.1093607
    %v3314 = vmul.f32 %v1262, 0.1093607
    %v3315 = vmul.f32 %v1267, 0.1093607
    %v3316 = vmul.f32 %v1272, 0.1093607
    %v3317 = vmul.f32 %v1277, 0.1093607
    %v3318 = vmul.f32 %v1287, 0.1093607
    %v3319 = vmul.f32 %v1292, 0.1093607
    %v3320 = vmul.f32 %v1297, 0.1093607
    %v3321 = vmul.f32 %v1302, 0.1093607
    %v3322 = vmul.f32 %v1312, 0.1093607
    %v3323 = vmul.f32 %v1317, 0.1093607
    %v3324 = vmul.f32 %v1322, 0.1093607
    %v3325 = vmul.f32 %v1327, 0.1093607
    %v3326 = vmul.f32 %v1337, 0.1093607
    %v3327 = vmul.f32 %v1342, 0.1093607
    %v3328 = vmul.f32 %v1347, 0.1093607
    %v3329 = vmul.f32 %v1352, 0.1093607
    %v3354 = vrot.slane %v3306, 3
    %v3355 = vrot.slane %v3307, 3
    %v3356 = vsel %vm2975, %v3354, %v3355
    %v3357 = vrot.slane %v3308, 3
    %v3358 = vsel %vm2975, %v3355, %v3357
    %v3359 = vrot.slane %v3309, 3
    %v3360 = vsel %vm2975, %v3357, %v3359
    %v3361 = vrot.slane %v3310, 3
    %v3362 = vrot.slane %v3311, 3
    %v3363 = vsel %vm2975, %v3361, %v3362
    %v3364 = vrot.slane %v3312, 3
    %v3365 = vsel %vm2975, %v3362, %v3364
    %v3366 = vrot.slane %v3313, 3
    %v3367 = vsel %vm2975, %v3364, %v3366
    %v3368 = vrot.slane %v3314, 3
    %v3369 = vrot.slane %v3315, 3
    %v3370 = vsel %vm2975, %v3368, %v3369
    %v3371 = vrot.slane %v3316, 3
    %v3372 = vsel %vm2975, %v3369, %v3371
    %v3373 = vrot.slane %v3317, 3
    %v3374 = vsel %vm2975, %v3371, %v3373
    %v3375 = vrot.slane %v3318, 3
    %v3376 = vrot.slane %v3319, 3
    %v3377 = vsel %vm2975, %v3375, %v3376
    %v3378 = vrot.slane %v3320, 3
    %v3379 = vsel %vm2975, %v3376, %v3378
    %v3380 = vrot.slane %v3321, 3
    %v3381 = vsel %vm2975, %v3378, %v3380
    %v3382 = vrot.slane %v3322, 3
    %v3383 = vrot.slane %v3323, 3
    %v3384 = vsel %vm2975, %v3382, %v3383
    %v3385 = vrot.slane %v3324, 3
    %v3386 = vsel %vm2975, %v3383, %v3385
    %v3387 = vrot.slane %v3325, 3
    %v3388 = vsel %vm2975, %v3385, %v3387
    %v3389 = vrot.slane %v3326, 3
    %v3390 = vrot.slane %v3327, 3
    %v3391 = vsel %vm2975, %v3389, %v3390
    %v3392 = vrot.slane %v3328, 3
    %v3393 = vsel %vm2975, %v3390, %v3392
    %v3394 = vrot.slane %v3329, 3
    %v3395 = vsel %vm2975, %v3392, %v3394
    %v3414 = vadd.f32 %v2783, %v3356
    %v3415 = vadd.f32 %v2784, %v3358
    %v3416 = vadd.f32 %v2785, %v3360
    %v3417 = vadd.f32 %v2786, %v3363
    %v3418 = vadd.f32 %v2787, %v3365
    %v3419 = vadd.f32 %v2788, %v3367
    %v3420 = vadd.f32 %v2789, %v3370
    %v3421 = vadd.f32 %v2790, %v3372
    %v3422 = vadd.f32 %v2791, %v3374
    %v3423 = vadd.f32 %v2792, %v3377
    %v3424 = vadd.f32 %v2793, %v3379
    %v3425 = vadd.f32 %v2794, %v3381
    %v3426 = vadd.f32 %v2795, %v3384
    %v3427 = vadd.f32 %v2796, %v3386
    %v3428 = vadd.f32 %v2797, %v3388
    %v3429 = vadd.f32 %v2798, %v3391
    %v3430 = vadd.f32 %v2799, %v3393
    %v3431 = vadd.f32 %v2800, %v3395
    %v3432 = vmul.f32 %v1547, 0.1093607
    %v3433 = vmul.f32 %v1552, 0.1093607
    %v3434 = vmul.f32 %v1557, 0.1093607
    %v3435 = vmul.f32 %v1562, 0.1093607
    %v3436 = vmul.f32 %v1572, 0.1093607
    %v3437 = vmul.f32 %v1577, 0.1093607
    %v3438 = vmul.f32 %v1582, 0.1093607
    %v3439 = vmul.f32 %v1587, 0.1093607
    %v3440 = vmul.f32 %v1597, 0.1093607
    %v3441 = vmul.f32 %v1602, 0.1093607
    %v3442 = vmul.f32 %v1607, 0.1093607
    %v3443 = vmul.f32 %v1612, 0.1093607
    %v3444 = vmul.f32 %v1622, 0.1093607
    %v3445 = vmul.f32 %v1627, 0.1093607
    %v3446 = vmul.f32 %v1632, 0.1093607
    %v3447 = vmul.f32 %v1637, 0.1093607
    %v3448 = vmul.f32 %v1647, 0.1093607
    %v3449 = vmul.f32 %v1652, 0.1093607
    %v3450 = vmul.f32 %v1657, 0.1093607
    %v3451 = vmul.f32 %v1662, 0.1093607
    %v3452 = vmul.f32 %v1672, 0.1093607
    %v3453 = vmul.f32 %v1677, 0.1093607
    %v3454 = vmul.f32 %v1682, 0.1093607
    %v3455 = vmul.f32 %v1687, 0.1093607
    %v3480 = vrot.slane %v3432, 3
    %v3481 = vrot.slane %v3433, 3
    %v3482 = vsel %vm2975, %v3480, %v3481
    %v3483 = vrot.slane %v3434, 3
    %v3484 = vsel %vm2975, %v3481, %v3483
    %v3485 = vrot.slane %v3435, 3
    %v3486 = vsel %vm2975, %v3483, %v3485
    %v3487 = vrot.slane %v3436, 3
    %v3488 = vrot.slane %v3437, 3
    %v3489 = vsel %vm2975, %v3487, %v3488
    %v3490 = vrot.slane %v3438, 3
    %v3491 = vsel %vm2975, %v3488, %v3490
    %v3492 = vrot.slane %v3439, 3
    %v3493 = vsel %vm2975, %v3490, %v3492
    %v3494 = vrot.slane %v3440, 3
    %v3495 = vrot.slane %v3441, 3
    %v3496 = vsel %vm2975, %v3494, %v3495
    %v3497 = vrot.slane %v3442, 3
    %v3498 = vsel %vm2975, %v3495, %v3497
    %v3499 = vrot.slane %v3443, 3
    %v3500 = vsel %vm2975, %v3497, %v3499
    %v3501 = vrot.slane %v3444, 3
    %v3502 = vrot.slane %v3445, 3
    %v3503 = vsel %vm2975, %v3501, %v3502
    %v3504 = vrot.slane %v3446, 3
    %v3505 = vsel %vm2975, %v3502, %v3504
    %v3506 = vrot.slane %v3447, 3
    %v3507 = vsel %vm2975, %v3504, %v3506
    %v3508 = vrot.slane %v3448, 3
    %v3509 = vrot.slane %v3449, 3
    %v3510 = vsel %vm2975, %v3508, %v3509
    %v3511 = vrot.slane %v3450, 3
    %v3512 = vsel %vm2975, %v3509, %v3511
    %v3513 = vrot.slane %v3451, 3
    %v3514 = vsel %vm2975, %v3511, %v3513
    %v3515 = vrot.slane %v3452, 3
    %v3516 = vrot.slane %v3453, 3
    %v3517 = vsel %vm2975, %v3515, %v3516
    %v3518 = vrot.slane %v3454, 3
    %v3519 = vsel %vm2975, %v3516, %v3518
    %v3520 = vrot.slane %v3455, 3
    %v3521 = vsel %vm2975, %v3518, %v3520
    %v3540 = vadd.f32 %v2909, %v3482
    %v3541 = vadd.f32 %v2910, %v3484
    %v3542 = vadd.f32 %v2911, %v3486
    %v3543 = vadd.f32 %v2912, %v3489
    %v3544 = vadd.f32 %v2913, %v3491
    %v3545 = vadd.f32 %v2914, %v3493
    %v3546 = vadd.f32 %v2915, %v3496
    %v3547 = vadd.f32 %v2916, %v3498
    %v3548 = vadd.f32 %v2917, %v3500
    %v3549 = vadd.f32 %v2918, %v3503
    %v3550 = vadd.f32 %v2919, %v3505
    %v3551 = vadd.f32 %v2920, %v3507
    %v3552 = vadd.f32 %v2921, %v3510
    %v3553 = vadd.f32 %v2922, %v3512
    %v3554 = vadd.f32 %v2923, %v3514
    %v3555 = vadd.f32 %v2924, %v3517
    %v3556 = vadd.f32 %v2925, %v3519
    %v3557 = vadd.f32 %v2926, %v3521
    %v3558 = vmul.f32 %v237, 0.21300554
    %v3559 = vmul.f32 %v242, 0.21300554
    %v3560 = vmul.f32 %v247, 0.21300554
    %v3561 = vmul.f32 %v252, 0.21300554
    %v3562 = vmul.f32 %v262, 0.21300554
    %v3563 = vmul.f32 %v267, 0.21300554
    %v3564 = vmul.f32 %v272, 0.21300554
    %v3565 = vmul.f32 %v277, 0.21300554
    %v3566 = vmul.f32 %v287, 0.21300554
    %v3567 = vmul.f32 %v292, 0.21300554
    %v3568 = vmul.f32 %v297, 0.21300554
    %v3569 = vmul.f32 %v302, 0.21300554
    %v3570 = vmul.f32 %v312, 0.21300554
    %v3571 = vmul.f32 %v317, 0.21300554
    %v3572 = vmul.f32 %v322, 0.21300554
    %v3573 = vmul.f32 %v327, 0.21300554
    %v3574 = vmul.f32 %v337, 0.21300554
    %v3575 = vmul.f32 %v342, 0.21300554
    %v3576 = vmul.f32 %v347, 0.21300554
    %v3577 = vmul.f32 %v352, 0.21300554
    %v3578 = vmul.f32 %v362, 0.21300554
    %v3579 = vmul.f32 %v367, 0.21300554
    %v3580 = vmul.f32 %v372, 0.21300554
    %v3581 = vmul.f32 %v377, 0.21300554
    %vm3606 = vcmask 1043456
    %v3607 = vrot.slane %v3558, 4
    %v3608 = vrot.slane %v3559, 4
    %v3609 = vsel %vm3606, %v3607, %v3608
    %v3610 = vrot.slane %v3560, 4
    %v3611 = vsel %vm3606, %v3608, %v3610
    %v3612 = vrot.slane %v3561, 4
    %v3613 = vsel %vm3606, %v3610, %v3612
    %v3614 = vrot.slane %v3562, 4
    %v3615 = vrot.slane %v3563, 4
    %v3616 = vsel %vm3606, %v3614, %v3615
    %v3617 = vrot.slane %v3564, 4
    %v3618 = vsel %vm3606, %v3615, %v3617
    %v3619 = vrot.slane %v3565, 4
    %v3620 = vsel %vm3606, %v3617, %v3619
    %v3621 = vrot.slane %v3566, 4
    %v3622 = vrot.slane %v3567, 4
    %v3623 = vsel %vm3606, %v3621, %v3622
    %v3624 = vrot.slane %v3568, 4
    %v3625 = vsel %vm3606, %v3622, %v3624
    %v3626 = vrot.slane %v3569, 4
    %v3627 = vsel %vm3606, %v3624, %v3626
    %v3628 = vrot.slane %v3570, 4
    %v3629 = vrot.slane %v3571, 4
    %v3630 = vsel %vm3606, %v3628, %v3629
    %v3631 = vrot.slane %v3572, 4
    %v3632 = vsel %vm3606, %v3629, %v3631
    %v3633 = vrot.slane %v3573, 4
    %v3634 = vsel %vm3606, %v3631, %v3633
    %v3635 = vrot.slane %v3574, 4
    %v3636 = vrot.slane %v3575, 4
    %v3637 = vsel %vm3606, %v3635, %v3636
    %v3638 = vrot.slane %v3576, 4
    %v3639 = vsel %vm3606, %v3636, %v3638
    %v3640 = vrot.slane %v3577, 4
    %v3641 = vsel %vm3606, %v3638, %v3640
    %v3642 = vrot.slane %v3578, 4
    %v3643 = vrot.slane %v3579, 4
    %v3644 = vsel %vm3606, %v3642, %v3643
    %v3645 = vrot.slane %v3580, 4
    %v3646 = vsel %vm3606, %v3643, %v3645
    %v3647 = vrot.slane %v3581, 4
    %v3648 = vsel %vm3606, %v3645, %v3647
    %v3667 = vadd.f32 %v3036, %v3609
    %v3668 = vadd.f32 %v3037, %v3611
    %v3669 = vadd.f32 %v3038, %v3613
    %v3670 = vadd.f32 %v3039, %v3616
    %v3671 = vadd.f32 %v3040, %v3618
    %v3672 = vadd.f32 %v3041, %v3620
    %v3673 = vadd.f32 %v3042, %v3623
    %v3674 = vadd.f32 %v3043, %v3625
    %v3675 = vadd.f32 %v3044, %v3627
    %v3676 = vadd.f32 %v3045, %v3630
    %v3677 = vadd.f32 %v3046, %v3632
    %v3678 = vadd.f32 %v3047, %v3634
    %v3679 = vadd.f32 %v3048, %v3637
    %v3680 = vadd.f32 %v3049, %v3639
    %v3681 = vadd.f32 %v3050, %v3641
    %v3682 = vadd.f32 %v3051, %v3644
    %v3683 = vadd.f32 %v3052, %v3646
    %v3684 = vadd.f32 %v3053, %v3648
    %v3685 = vmul.f32 %v542, 0.21300554
    %v3686 = vmul.f32 %v547, 0.21300554
    %v3687 = vmul.f32 %v552, 0.21300554
    %v3688 = vmul.f32 %v557, 0.21300554
    %v3689 = vmul.f32 %v567, 0.21300554
    %v3690 = vmul.f32 %v572, 0.21300554
    %v3691 = vmul.f32 %v577, 0.21300554
    %v3692 = vmul.f32 %v582, 0.21300554
    %v3693 = vmul.f32 %v592, 0.21300554
    %v3694 = vmul.f32 %v597, 0.21300554
    %v3695 = vmul.f32 %v602, 0.21300554
    %v3696 = vmul.f32 %v607, 0.21300554
    %v3697 = vmul.f32 %v617, 0.21300554
    %v3698 = vmul.f32 %v622, 0.21300554
    %v3699 = vmul.f32 %v627, 0.21300554
    %v3700 = vmul.f32 %v632, 0.21300554
    %v3701 = vmul.f32 %v642, 0.21300554
    %v3702 = vmul.f32 %v647, 0.21300554
    %v3703 = vmul.f32 %v652, 0.21300554
    %v3704 = vmul.f32 %v657, 0.21300554
    %v3705 = vmul.f32 %v667, 0.21300554
    %v3706 = vmul.f32 %v672, 0.21300554
    %v3707 = vmul.f32 %v677, 0.21300554
    %v3708 = vmul.f32 %v682, 0.21300554
    %v3733 = vrot.slane %v3685, 4
    %v3734 = vrot.slane %v3686, 4
    %v3735 = vsel %vm3606, %v3733, %v3734
    %v3736 = vrot.slane %v3687, 4
    %v3737 = vsel %vm3606, %v3734, %v3736
    %v3738 = vrot.slane %v3688, 4
    %v3739 = vsel %vm3606, %v3736, %v3738
    %v3740 = vrot.slane %v3689, 4
    %v3741 = vrot.slane %v3690, 4
    %v3742 = vsel %vm3606, %v3740, %v3741
    %v3743 = vrot.slane %v3691, 4
    %v3744 = vsel %vm3606, %v3741, %v3743
    %v3745 = vrot.slane %v3692, 4
    %v3746 = vsel %vm3606, %v3743, %v3745
    %v3747 = vrot.slane %v3693, 4
    %v3748 = vrot.slane %v3694, 4
    %v3749 = vsel %vm3606, %v3747, %v3748
    %v3750 = vrot.slane %v3695, 4
    %v3751 = vsel %vm3606, %v3748, %v3750
    %v3752 = vrot.slane %v3696, 4
    %v3753 = vsel %vm3606, %v3750, %v3752
    %v3754 = vrot.slane %v3697, 4
    %v3755 = vrot.slane %v3698, 4
    %v3756 = vsel %vm3606, %v3754, %v3755
    %v3757 = vrot.slane %v3699, 4
    %v3758 = vsel %vm3606, %v3755, %v3757
    %v3759 = vrot.slane %v3700, 4
    %v3760 = vsel %vm3606, %v3757, %v3759
    %v3761 = vrot.slane %v3701, 4
    %v3762 = vrot.slane %v3702, 4
    %v3763 = vsel %vm3606, %v3761, %v3762
    %v3764 = vrot.slane %v3703, 4
    %v3765 = vsel %vm3606, %v3762, %v3764
    %v3766 = vrot.slane %v3704, 4
    %v3767 = vsel %vm3606, %v3764, %v3766
    %v3768 = vrot.slane %v3705, 4
    %v3769 = vrot.slane %v3706, 4
    %v3770 = vsel %vm3606, %v3768, %v3769
    %v3771 = vrot.slane %v3707, 4
    %v3772 = vsel %vm3606, %v3769, %v3771
    %v3773 = vrot.slane %v3708, 4
    %v3774 = vsel %vm3606, %v3771, %v3773
    %v3793 = vadd.f32 %v3162, %v3735
    %v3794 = vadd.f32 %v3163, %v3737
    %v3795 = vadd.f32 %v3164, %v3739
    %v3796 = vadd.f32 %v3165, %v3742
    %v3797 = vadd.f32 %v3166, %v3744
    %v3798 = vadd.f32 %v3167, %v3746
    %v3799 = vadd.f32 %v3168, %v3749
    %v3800 = vadd.f32 %v3169, %v3751
    %v3801 = vadd.f32 %v3170, %v3753
    %v3802 = vadd.f32 %v3171, %v3756
    %v3803 = vadd.f32 %v3172, %v3758
    %v3804 = vadd.f32 %v3173, %v3760
    %v3805 = vadd.f32 %v3174, %v3763
    %v3806 = vadd.f32 %v3175, %v3765
    %v3807 = vadd.f32 %v3176, %v3767
    %v3808 = vadd.f32 %v3177, %v3770
    %v3809 = vadd.f32 %v3178, %v3772
    %v3810 = vadd.f32 %v3179, %v3774
    %v3811 = vmul.f32 %v877, 0.21300554
    %v3812 = vmul.f32 %v882, 0.21300554
    %v3813 = vmul.f32 %v887, 0.21300554
    %v3814 = vmul.f32 %v892, 0.21300554
    %v3815 = vmul.f32 %v902, 0.21300554
    %v3816 = vmul.f32 %v907, 0.21300554
    %v3817 = vmul.f32 %v912, 0.21300554
    %v3818 = vmul.f32 %v917, 0.21300554
    %v3819 = vmul.f32 %v927, 0.21300554
    %v3820 = vmul.f32 %v932, 0.21300554
    %v3821 = vmul.f32 %v937, 0.21300554
    %v3822 = vmul.f32 %v942, 0.21300554
    %v3823 = vmul.f32 %v952, 0.21300554
    %v3824 = vmul.f32 %v957, 0.21300554
    %v3825 = vmul.f32 %v962, 0.21300554
    %v3826 = vmul.f32 %v967, 0.21300554
    %v3827 = vmul.f32 %v977, 0.21300554
    %v3828 = vmul.f32 %v982, 0.21300554
    %v3829 = vmul.f32 %v987, 0.21300554
    %v3830 = vmul.f32 %v992, 0.21300554
    %v3831 = vmul.f32 %v1002, 0.21300554
    %v3832 = vmul.f32 %v1007, 0.21300554
    %v3833 = vmul.f32 %v1012, 0.21300554
    %v3834 = vmul.f32 %v1017, 0.21300554
    %v3859 = vrot.slane %v3811, 4
    %v3860 = vrot.slane %v3812, 4
    %v3861 = vsel %vm3606, %v3859, %v3860
    %v3862 = vrot.slane %v3813, 4
    %v3863 = vsel %vm3606, %v3860, %v3862
    %v3864 = vrot.slane %v3814, 4
    %v3865 = vsel %vm3606, %v3862, %v3864
    %v3866 = vrot.slane %v3815, 4
    %v3867 = vrot.slane %v3816, 4
    %v3868 = vsel %vm3606, %v3866, %v3867
    %v3869 = vrot.slane %v3817, 4
    %v3870 = vsel %vm3606, %v3867, %v3869
    %v3871 = vrot.slane %v3818, 4
    %v3872 = vsel %vm3606, %v3869, %v3871
    %v3873 = vrot.slane %v3819, 4
    %v3874 = vrot.slane %v3820, 4
    %v3875 = vsel %vm3606, %v3873, %v3874
    %v3876 = vrot.slane %v3821, 4
    %v3877 = vsel %vm3606, %v3874, %v3876
    %v3878 = vrot.slane %v3822, 4
    %v3879 = vsel %vm3606, %v3876, %v3878
    %v3880 = vrot.slane %v3823, 4
    %v3881 = vrot.slane %v3824, 4
    %v3882 = vsel %vm3606, %v3880, %v3881
    %v3883 = vrot.slane %v3825, 4
    %v3884 = vsel %vm3606, %v3881, %v3883
    %v3885 = vrot.slane %v3826, 4
    %v3886 = vsel %vm3606, %v3883, %v3885
    %v3887 = vrot.slane %v3827, 4
    %v3888 = vrot.slane %v3828, 4
    %v3889 = vsel %vm3606, %v3887, %v3888
    %v3890 = vrot.slane %v3829, 4
    %v3891 = vsel %vm3606, %v3888, %v3890
    %v3892 = vrot.slane %v3830, 4
    %v3893 = vsel %vm3606, %v3890, %v3892
    %v3894 = vrot.slane %v3831, 4
    %v3895 = vrot.slane %v3832, 4
    %v3896 = vsel %vm3606, %v3894, %v3895
    %v3897 = vrot.slane %v3833, 4
    %v3898 = vsel %vm3606, %v3895, %v3897
    %v3899 = vrot.slane %v3834, 4
    %v3900 = vsel %vm3606, %v3897, %v3899
    %v3919 = vadd.f32 %v3288, %v3861
    %v3920 = vadd.f32 %v3289, %v3863
    %v3921 = vadd.f32 %v3290, %v3865
    %v3922 = vadd.f32 %v3291, %v3868
    %v3923 = vadd.f32 %v3292, %v3870
    %v3924 = vadd.f32 %v3293, %v3872
    %v3925 = vadd.f32 %v3294, %v3875
    %v3926 = vadd.f32 %v3295, %v3877
    %v3927 = vadd.f32 %v3296, %v3879
    %v3928 = vadd.f32 %v3297, %v3882
    %v3929 = vadd.f32 %v3298, %v3884
    %v3930 = vadd.f32 %v3299, %v3886
    %v3931 = vadd.f32 %v3300, %v3889
    %v3932 = vadd.f32 %v3301, %v3891
    %v3933 = vadd.f32 %v3302, %v3893
    %v3934 = vadd.f32 %v3303, %v3896
    %v3935 = vadd.f32 %v3304, %v3898
    %v3936 = vadd.f32 %v3305, %v3900
    %v3937 = vmul.f32 %v1212, 0.21300554
    %v3938 = vmul.f32 %v1217, 0.21300554
    %v3939 = vmul.f32 %v1222, 0.21300554
    %v3940 = vmul.f32 %v1227, 0.21300554
    %v3941 = vmul.f32 %v1237, 0.21300554
    %v3942 = vmul.f32 %v1242, 0.21300554
    %v3943 = vmul.f32 %v1247, 0.21300554
    %v3944 = vmul.f32 %v1252, 0.21300554
    %v3945 = vmul.f32 %v1262, 0.21300554
    %v3946 = vmul.f32 %v1267, 0.21300554
    %v3947 = vmul.f32 %v1272, 0.21300554
    %v3948 = vmul.f32 %v1277, 0.21300554
    %v3949 = vmul.f32 %v1287, 0.21300554
    %v3950 = vmul.f32 %v1292, 0.21300554
    %v3951 = vmul.f32 %v1297, 0.21300554
    %v3952 = vmul.f32 %v1302, 0.21300554
    %v3953 = vmul.f32 %v1312, 0.21300554
    %v3954 = vmul.f32 %v1317, 0.21300554
    %v3955 = vmul.f32 %v1322, 0.21300554
    %v3956 = vmul.f32 %v1327, 0.21300554
    %v3957 = vmul.f32 %v1337, 0.21300554
    %v3958 = vmul.f32 %v1342, 0.21300554
    %v3959 = vmul.f32 %v1347, 0.21300554
    %v3960 = vmul.f32 %v1352, 0.21300554
    %v3985 = vrot.slane %v3937, 4
    %v3986 = vrot.slane %v3938, 4
    %v3987 = vsel %vm3606, %v3985, %v3986
    %v3988 = vrot.slane %v3939, 4
    %v3989 = vsel %vm3606, %v3986, %v3988
    %v3990 = vrot.slane %v3940, 4
    %v3991 = vsel %vm3606, %v3988, %v3990
    %v3992 = vrot.slane %v3941, 4
    %v3993 = vrot.slane %v3942, 4
    %v3994 = vsel %vm3606, %v3992, %v3993
    %v3995 = vrot.slane %v3943, 4
    %v3996 = vsel %vm3606, %v3993, %v3995
    %v3997 = vrot.slane %v3944, 4
    %v3998 = vsel %vm3606, %v3995, %v3997
    %v3999 = vrot.slane %v3945, 4
    %v4000 = vrot.slane %v3946, 4
    %v4001 = vsel %vm3606, %v3999, %v4000
    %v4002 = vrot.slane %v3947, 4
    %v4003 = vsel %vm3606, %v4000, %v4002
    %v4004 = vrot.slane %v3948, 4
    %v4005 = vsel %vm3606, %v4002, %v4004
    %v4006 = vrot.slane %v3949, 4
    %v4007 = vrot.slane %v3950, 4
    %v4008 = vsel %vm3606, %v4006, %v4007
    %v4009 = vrot.slane %v3951, 4
    %v4010 = vsel %vm3606, %v4007, %v4009
    %v4011 = vrot.slane %v3952, 4
    %v4012 = vsel %vm3606, %v4009, %v4011
    %v4013 = vrot.slane %v3953, 4
    %v4014 = vrot.slane %v3954, 4
    %v4015 = vsel %vm3606, %v4013, %v4014
    %v4016 = vrot.slane %v3955, 4
    %v4017 = vsel %vm3606, %v4014, %v4016
    %v4018 = vrot.slane %v3956, 4
    %v4019 = vsel %vm3606, %v4016, %v4018
    %v4020 = vrot.slane %v3957, 4
    %v4021 = vrot.slane %v3958, 4
    %v4022 = vsel %vm3606, %v4020, %v4021
    %v4023 = vrot.slane %v3959, 4
    %v4024 = vsel %vm3606, %v4021, %v4023
    %v4025 = vrot.slane %v3960, 4
    %v4026 = vsel %vm3606, %v4023, %v4025
    %v4045 = vadd.f32 %v3414, %v3987
    %v4046 = vadd.f32 %v3415, %v3989
    %v4047 = vadd.f32 %v3416, %v3991
    %v4048 = vadd.f32 %v3417, %v3994
    %v4049 = vadd.f32 %v3418, %v3996
    %v4050 = vadd.f32 %v3419, %v3998
    %v4051 = vadd.f32 %v3420, %v4001
    %v4052 = vadd.f32 %v3421, %v4003
    %v4053 = vadd.f32 %v3422, %v4005
    %v4054 = vadd.f32 %v3423, %v4008
    %v4055 = vadd.f32 %v3424, %v4010
    %v4056 = vadd.f32 %v3425, %v4012
    %v4057 = vadd.f32 %v3426, %v4015
    %v4058 = vadd.f32 %v3427, %v4017
    %v4059 = vadd.f32 %v3428, %v4019
    %v4060 = vadd.f32 %v3429, %v4022
    %v4061 = vadd.f32 %v3430, %v4024
    %v4062 = vadd.f32 %v3431, %v4026
    %v4063 = vmul.f32 %v1547, 0.21300554
    %v4064 = vmul.f32 %v1552, 0.21300554
    %v4065 = vmul.f32 %v1557, 0.21300554
    %v4066 = vmul.f32 %v1562, 0.21300554
    %v4067 = vmul.f32 %v1572, 0.21300554
    %v4068 = vmul.f32 %v1577, 0.21300554
    %v4069 = vmul.f32 %v1582, 0.21300554
    %v4070 = vmul.f32 %v1587, 0.21300554
    %v4071 = vmul.f32 %v1597, 0.21300554
    %v4072 = vmul.f32 %v1602, 0.21300554
    %v4073 = vmul.f32 %v1607, 0.21300554
    %v4074 = vmul.f32 %v1612, 0.21300554
    %v4075 = vmul.f32 %v1622, 0.21300554
    %v4076 = vmul.f32 %v1627, 0.21300554
    %v4077 = vmul.f32 %v1632, 0.21300554
    %v4078 = vmul.f32 %v1637, 0.21300554
    %v4079 = vmul.f32 %v1647, 0.21300554
    %v4080 = vmul.f32 %v1652, 0.21300554
    %v4081 = vmul.f32 %v1657, 0.21300554
    %v4082 = vmul.f32 %v1662, 0.21300554
    %v4083 = vmul.f32 %v1672, 0.21300554
    %v4084 = vmul.f32 %v1677, 0.21300554
    %v4085 = vmul.f32 %v1682, 0.21300554
    %v4086 = vmul.f32 %v1687, 0.21300554
    %v4111 = vrot.slane %v4063, 4
    %v4112 = vrot.slane %v4064, 4
    %v4113 = vsel %vm3606, %v4111, %v4112
    %v4114 = vrot.slane %v4065, 4
    %v4115 = vsel %vm3606, %v4112, %v4114
    %v4116 = vrot.slane %v4066, 4
    %v4117 = vsel %vm3606, %v4114, %v4116
    %v4118 = vrot.slane %v4067, 4
    %v4119 = vrot.slane %v4068, 4
    %v4120 = vsel %vm3606, %v4118, %v4119
    %v4121 = vrot.slane %v4069, 4
    %v4122 = vsel %vm3606, %v4119, %v4121
    %v4123 = vrot.slane %v4070, 4
    %v4124 = vsel %vm3606, %v4121, %v4123
    %v4125 = vrot.slane %v4071, 4
    %v4126 = vrot.slane %v4072, 4
    %v4127 = vsel %vm3606, %v4125, %v4126
    %v4128 = vrot.slane %v4073, 4
    %v4129 = vsel %vm3606, %v4126, %v4128
    %v4130 = vrot.slane %v4074, 4
    %v4131 = vsel %vm3606, %v4128, %v4130
    %v4132 = vrot.slane %v4075, 4
    %v4133 = vrot.slane %v4076, 4
    %v4134 = vsel %vm3606, %v4132, %v4133
    %v4135 = vrot.slane %v4077, 4
    %v4136 = vsel %vm3606, %v4133, %v4135
    %v4137 = vrot.slane %v4078, 4
    %v4138 = vsel %vm3606, %v4135, %v4137
    %v4139 = vrot.slane %v4079, 4
    %v4140 = vrot.slane %v4080, 4
    %v4141 = vsel %vm3606, %v4139, %v4140
    %v4142 = vrot.slane %v4081, 4
    %v4143 = vsel %vm3606, %v4140, %v4142
    %v4144 = vrot.slane %v4082, 4
    %v4145 = vsel %vm3606, %v4142, %v4144
    %v4146 = vrot.slane %v4083, 4
    %v4147 = vrot.slane %v4084, 4
    %v4148 = vsel %vm3606, %v4146, %v4147
    %v4149 = vrot.slane %v4085, 4
    %v4150 = vsel %vm3606, %v4147, %v4149
    %v4151 = vrot.slane %v4086, 4
    %v4152 = vsel %vm3606, %v4149, %v4151
    %v4171 = vadd.f32 %v3540, %v4113
    %v4172 = vadd.f32 %v3541, %v4115
    %v4173 = vadd.f32 %v3542, %v4117
    %v4174 = vadd.f32 %v3543, %v4120
    %v4175 = vadd.f32 %v3544, %v4122
    %v4176 = vadd.f32 %v3545, %v4124
    %v4177 = vadd.f32 %v3546, %v4127
    %v4178 = vadd.f32 %v3547, %v4129
    %v4179 = vadd.f32 %v3548, %v4131
    %v4180 = vadd.f32 %v3549, %v4134
    %v4181 = vadd.f32 %v3550, %v4136
    %v4182 = vadd.f32 %v3551, %v4138
    %v4183 = vadd.f32 %v3552, %v4141
    %v4184 = vadd.f32 %v3553, %v4143
    %v4185 = vadd.f32 %v3554, %v4145
    %v4186 = vadd.f32 %v3555, %v4148
    %v4187 = vadd.f32 %v3556, %v4150
    %v4188 = vadd.f32 %v3557, %v4152
    %v4189 = vmul.f32 %v237, 0.26601174
    %v4190 = vmul.f32 %v242, 0.26601174
    %v4191 = vmul.f32 %v247, 0.26601174
    %v4192 = vmul.f32 %v252, 0.26601174
    %v4193 = vmul.f32 %v262, 0.26601174
    %v4194 = vmul.f32 %v267, 0.26601174
    %v4195 = vmul.f32 %v272, 0.26601174
    %v4196 = vmul.f32 %v277, 0.26601174
    %v4197 = vmul.f32 %v287, 0.26601174
    %v4198 = vmul.f32 %v292, 0.26601174
    %v4199 = vmul.f32 %v297, 0.26601174
    %v4200 = vmul.f32 %v302, 0.26601174
    %v4201 = vmul.f32 %v312, 0.26601174
    %v4202 = vmul.f32 %v317, 0.26601174
    %v4203 = vmul.f32 %v322, 0.26601174
    %v4204 = vmul.f32 %v327, 0.26601174
    %v4205 = vmul.f32 %v337, 0.26601174
    %v4206 = vmul.f32 %v342, 0.26601174
    %v4207 = vmul.f32 %v347, 0.26601174
    %v4208 = vmul.f32 %v352, 0.26601174
    %v4209 = vmul.f32 %v362, 0.26601174
    %v4210 = vmul.f32 %v367, 0.26601174
    %v4211 = vmul.f32 %v372, 0.26601174
    %v4212 = vmul.f32 %v377, 0.26601174
    %vm4237 = vcmask 1042432
    %v4238 = vrot.slane %v4189, 5
    %v4239 = vrot.slane %v4190, 5
    %v4240 = vsel %vm4237, %v4238, %v4239
    %v4241 = vrot.slane %v4191, 5
    %v4242 = vsel %vm4237, %v4239, %v4241
    %v4243 = vrot.slane %v4192, 5
    %v4244 = vsel %vm4237, %v4241, %v4243
    %v4245 = vrot.slane %v4193, 5
    %v4246 = vrot.slane %v4194, 5
    %v4247 = vsel %vm4237, %v4245, %v4246
    %v4248 = vrot.slane %v4195, 5
    %v4249 = vsel %vm4237, %v4246, %v4248
    %v4250 = vrot.slane %v4196, 5
    %v4251 = vsel %vm4237, %v4248, %v4250
    %v4252 = vrot.slane %v4197, 5
    %v4253 = vrot.slane %v4198, 5
    %v4254 = vsel %vm4237, %v4252, %v4253
    %v4255 = vrot.slane %v4199, 5
    %v4256 = vsel %vm4237, %v4253, %v4255
    %v4257 = vrot.slane %v4200, 5
    %v4258 = vsel %vm4237, %v4255, %v4257
    %v4259 = vrot.slane %v4201, 5
    %v4260 = vrot.slane %v4202, 5
    %v4261 = vsel %vm4237, %v4259, %v4260
    %v4262 = vrot.slane %v4203, 5
    %v4263 = vsel %vm4237, %v4260, %v4262
    %v4264 = vrot.slane %v4204, 5
    %v4265 = vsel %vm4237, %v4262, %v4264
    %v4266 = vrot.slane %v4205, 5
    %v4267 = vrot.slane %v4206, 5
    %v4268 = vsel %vm4237, %v4266, %v4267
    %v4269 = vrot.slane %v4207, 5
    %v4270 = vsel %vm4237, %v4267, %v4269
    %v4271 = vrot.slane %v4208, 5
    %v4272 = vsel %vm4237, %v4269, %v4271
    %v4273 = vrot.slane %v4209, 5
    %v4274 = vrot.slane %v4210, 5
    %v4275 = vsel %vm4237, %v4273, %v4274
    %v4276 = vrot.slane %v4211, 5
    %v4277 = vsel %vm4237, %v4274, %v4276
    %v4278 = vrot.slane %v4212, 5
    %v4279 = vsel %vm4237, %v4276, %v4278
    %v4298 = vadd.f32 %v3667, %v4240
    %v4299 = vadd.f32 %v3668, %v4242
    %v4300 = vadd.f32 %v3669, %v4244
    %v4301 = vadd.f32 %v3670, %v4247
    %v4302 = vadd.f32 %v3671, %v4249
    %v4303 = vadd.f32 %v3672, %v4251
    %v4304 = vadd.f32 %v3673, %v4254
    %v4305 = vadd.f32 %v3674, %v4256
    %v4306 = vadd.f32 %v3675, %v4258
    %v4307 = vadd.f32 %v3676, %v4261
    %v4308 = vadd.f32 %v3677, %v4263
    %v4309 = vadd.f32 %v3678, %v4265
    %v4310 = vadd.f32 %v3679, %v4268
    %v4311 = vadd.f32 %v3680, %v4270
    %v4312 = vadd.f32 %v3681, %v4272
    %v4313 = vadd.f32 %v3682, %v4275
    %v4314 = vadd.f32 %v3683, %v4277
    %v4315 = vadd.f32 %v3684, %v4279
    %v4316 = vmul.f32 %v542, 0.26601174
    %v4317 = vmul.f32 %v547, 0.26601174
    %v4318 = vmul.f32 %v552, 0.26601174
    %v4319 = vmul.f32 %v557, 0.26601174
    %v4320 = vmul.f32 %v567, 0.26601174
    %v4321 = vmul.f32 %v572, 0.26601174
    %v4322 = vmul.f32 %v577, 0.26601174
    %v4323 = vmul.f32 %v582, 0.26601174
    %v4324 = vmul.f32 %v592, 0.26601174
    %v4325 = vmul.f32 %v597, 0.26601174
    %v4326 = vmul.f32 %v602, 0.26601174
    %v4327 = vmul.f32 %v607, 0.26601174
    %v4328 = vmul.f32 %v617, 0.26601174
    %v4329 = vmul.f32 %v622, 0.26601174
    %v4330 = vmul.f32 %v627, 0.26601174
    %v4331 = vmul.f32 %v632, 0.26601174
    %v4332 = vmul.f32 %v642, 0.26601174
    %v4333 = vmul.f32 %v647, 0.26601174
    %v4334 = vmul.f32 %v652, 0.26601174
    %v4335 = vmul.f32 %v657, 0.26601174
    %v4336 = vmul.f32 %v667, 0.26601174
    %v4337 = vmul.f32 %v672, 0.26601174
    %v4338 = vmul.f32 %v677, 0.26601174
    %v4339 = vmul.f32 %v682, 0.26601174
    %v4364 = vrot.slane %v4316, 5
    %v4365 = vrot.slane %v4317, 5
    %v4366 = vsel %vm4237, %v4364, %v4365
    %v4367 = vrot.slane %v4318, 5
    %v4368 = vsel %vm4237, %v4365, %v4367
    %v4369 = vrot.slane %v4319, 5
    %v4370 = vsel %vm4237, %v4367, %v4369
    %v4371 = vrot.slane %v4320, 5
    %v4372 = vrot.slane %v4321, 5
    %v4373 = vsel %vm4237, %v4371, %v4372
    %v4374 = vrot.slane %v4322, 5
    %v4375 = vsel %vm4237, %v4372, %v4374
    %v4376 = vrot.slane %v4323, 5
    %v4377 = vsel %vm4237, %v4374, %v4376
    %v4378 = vrot.slane %v4324, 5
    %v4379 = vrot.slane %v4325, 5
    %v4380 = vsel %vm4237, %v4378, %v4379
    %v4381 = vrot.slane %v4326, 5
    %v4382 = vsel %vm4237, %v4379, %v4381
    %v4383 = vrot.slane %v4327, 5
    %v4384 = vsel %vm4237, %v4381, %v4383
    %v4385 = vrot.slane %v4328, 5
    %v4386 = vrot.slane %v4329, 5
    %v4387 = vsel %vm4237, %v4385, %v4386
    %v4388 = vrot.slane %v4330, 5
    %v4389 = vsel %vm4237, %v4386, %v4388
    %v4390 = vrot.slane %v4331, 5
    %v4391 = vsel %vm4237, %v4388, %v4390
    %v4392 = vrot.slane %v4332, 5
    %v4393 = vrot.slane %v4333, 5
    %v4394 = vsel %vm4237, %v4392, %v4393
    %v4395 = vrot.slane %v4334, 5
    %v4396 = vsel %vm4237, %v4393, %v4395
    %v4397 = vrot.slane %v4335, 5
    %v4398 = vsel %vm4237, %v4395, %v4397
    %v4399 = vrot.slane %v4336, 5
    %v4400 = vrot.slane %v4337, 5
    %v4401 = vsel %vm4237, %v4399, %v4400
    %v4402 = vrot.slane %v4338, 5
    %v4403 = vsel %vm4237, %v4400, %v4402
    %v4404 = vrot.slane %v4339, 5
    %v4405 = vsel %vm4237, %v4402, %v4404
    %v4424 = vadd.f32 %v3793, %v4366
    %v4425 = vadd.f32 %v3794, %v4368
    %v4426 = vadd.f32 %v3795, %v4370
    %v4427 = vadd.f32 %v3796, %v4373
    %v4428 = vadd.f32 %v3797, %v4375
    %v4429 = vadd.f32 %v3798, %v4377
    %v4430 = vadd.f32 %v3799, %v4380
    %v4431 = vadd.f32 %v3800, %v4382
    %v4432 = vadd.f32 %v3801, %v4384
    %v4433 = vadd.f32 %v3802, %v4387
    %v4434 = vadd.f32 %v3803, %v4389
    %v4435 = vadd.f32 %v3804, %v4391
    %v4436 = vadd.f32 %v3805, %v4394
    %v4437 = vadd.f32 %v3806, %v4396
    %v4438 = vadd.f32 %v3807, %v4398
    %v4439 = vadd.f32 %v3808, %v4401
    %v4440 = vadd.f32 %v3809, %v4403
    %v4441 = vadd.f32 %v3810, %v4405
    %v4442 = vmul.f32 %v877, 0.26601174
    %v4443 = vmul.f32 %v882, 0.26601174
    %v4444 = vmul.f32 %v887, 0.26601174
    %v4445 = vmul.f32 %v892, 0.26601174
    %v4446 = vmul.f32 %v902, 0.26601174
    %v4447 = vmul.f32 %v907, 0.26601174
    %v4448 = vmul.f32 %v912, 0.26601174
    %v4449 = vmul.f32 %v917, 0.26601174
    %v4450 = vmul.f32 %v927, 0.26601174
    %v4451 = vmul.f32 %v932, 0.26601174
    %v4452 = vmul.f32 %v937, 0.26601174
    %v4453 = vmul.f32 %v942, 0.26601174
    %v4454 = vmul.f32 %v952, 0.26601174
    %v4455 = vmul.f32 %v957, 0.26601174
    %v4456 = vmul.f32 %v962, 0.26601174
    %v4457 = vmul.f32 %v967, 0.26601174
    %v4458 = vmul.f32 %v977, 0.26601174
    %v4459 = vmul.f32 %v982, 0.26601174
    %v4460 = vmul.f32 %v987, 0.26601174
    %v4461 = vmul.f32 %v992, 0.26601174
    %v4462 = vmul.f32 %v1002, 0.26601174
    %v4463 = vmul.f32 %v1007, 0.26601174
    %v4464 = vmul.f32 %v1012, 0.26601174
    %v4465 = vmul.f32 %v1017, 0.26601174
    %v4490 = vrot.slane %v4442, 5
    %v4491 = vrot.slane %v4443, 5
    %v4492 = vsel %vm4237, %v4490, %v4491
    %v4493 = vrot.slane %v4444, 5
    %v4494 = vsel %vm4237, %v4491, %v4493
    %v4495 = vrot.slane %v4445, 5
    %v4496 = vsel %vm4237, %v4493, %v4495
    %v4497 = vrot.slane %v4446, 5
    %v4498 = vrot.slane %v4447, 5
    %v4499 = vsel %vm4237, %v4497, %v4498
    %v4500 = vrot.slane %v4448, 5
    %v4501 = vsel %vm4237, %v4498, %v4500
    %v4502 = vrot.slane %v4449, 5
    %v4503 = vsel %vm4237, %v4500, %v4502
    %v4504 = vrot.slane %v4450, 5
    %v4505 = vrot.slane %v4451, 5
    %v4506 = vsel %vm4237, %v4504, %v4505
    %v4507 = vrot.slane %v4452, 5
    %v4508 = vsel %vm4237, %v4505, %v4507
    %v4509 = vrot.slane %v4453, 5
    %v4510 = vsel %vm4237, %v4507, %v4509
    %v4511 = vrot.slane %v4454, 5
    %v4512 = vrot.slane %v4455, 5
    %v4513 = vsel %vm4237, %v4511, %v4512
    %v4514 = vrot.slane %v4456, 5
    %v4515 = vsel %vm4237, %v4512, %v4514
    %v4516 = vrot.slane %v4457, 5
    %v4517 = vsel %vm4237, %v4514, %v4516
    %v4518 = vrot.slane %v4458, 5
    %v4519 = vrot.slane %v4459, 5
    %v4520 = vsel %vm4237, %v4518, %v4519
    %v4521 = vrot.slane %v4460, 5
    %v4522 = vsel %vm4237, %v4519, %v4521
    %v4523 = vrot.slane %v4461, 5
    %v4524 = vsel %vm4237, %v4521, %v4523
    %v4525 = vrot.slane %v4462, 5
    %v4526 = vrot.slane %v4463, 5
    %v4527 = vsel %vm4237, %v4525, %v4526
    %v4528 = vrot.slane %v4464, 5
    %v4529 = vsel %vm4237, %v4526, %v4528
    %v4530 = vrot.slane %v4465, 5
    %v4531 = vsel %vm4237, %v4528, %v4530
    %v4550 = vadd.f32 %v3919, %v4492
    %v4551 = vadd.f32 %v3920, %v4494
    %v4552 = vadd.f32 %v3921, %v4496
    %v4553 = vadd.f32 %v3922, %v4499
    %v4554 = vadd.f32 %v3923, %v4501
    %v4555 = vadd.f32 %v3924, %v4503
    %v4556 = vadd.f32 %v3925, %v4506
    %v4557 = vadd.f32 %v3926, %v4508
    %v4558 = vadd.f32 %v3927, %v4510
    %v4559 = vadd.f32 %v3928, %v4513
    %v4560 = vadd.f32 %v3929, %v4515
    %v4561 = vadd.f32 %v3930, %v4517
    %v4562 = vadd.f32 %v3931, %v4520
    %v4563 = vadd.f32 %v3932, %v4522
    %v4564 = vadd.f32 %v3933, %v4524
    %v4565 = vadd.f32 %v3934, %v4527
    %v4566 = vadd.f32 %v3935, %v4529
    %v4567 = vadd.f32 %v3936, %v4531
    %v4568 = vmul.f32 %v1212, 0.26601174
    %v4569 = vmul.f32 %v1217, 0.26601174
    %v4570 = vmul.f32 %v1222, 0.26601174
    %v4571 = vmul.f32 %v1227, 0.26601174
    %v4572 = vmul.f32 %v1237, 0.26601174
    %v4573 = vmul.f32 %v1242, 0.26601174
    %v4574 = vmul.f32 %v1247, 0.26601174
    %v4575 = vmul.f32 %v1252, 0.26601174
    %v4576 = vmul.f32 %v1262, 0.26601174
    %v4577 = vmul.f32 %v1267, 0.26601174
    %v4578 = vmul.f32 %v1272, 0.26601174
    %v4579 = vmul.f32 %v1277, 0.26601174
    %v4580 = vmul.f32 %v1287, 0.26601174
    %v4581 = vmul.f32 %v1292, 0.26601174
    %v4582 = vmul.f32 %v1297, 0.26601174
    %v4583 = vmul.f32 %v1302, 0.26601174
    %v4584 = vmul.f32 %v1312, 0.26601174
    %v4585 = vmul.f32 %v1317, 0.26601174
    %v4586 = vmul.f32 %v1322, 0.26601174
    %v4587 = vmul.f32 %v1327, 0.26601174
    %v4588 = vmul.f32 %v1337, 0.26601174
    %v4589 = vmul.f32 %v1342, 0.26601174
    %v4590 = vmul.f32 %v1347, 0.26601174
    %v4591 = vmul.f32 %v1352, 0.26601174
    %v4616 = vrot.slane %v4568, 5
    %v4617 = vrot.slane %v4569, 5
    %v4618 = vsel %vm4237, %v4616, %v4617
    %v4619 = vrot.slane %v4570, 5
    %v4620 = vsel %vm4237, %v4617, %v4619
    %v4621 = vrot.slane %v4571, 5
    %v4622 = vsel %vm4237, %v4619, %v4621
    %v4623 = vrot.slane %v4572, 5
    %v4624 = vrot.slane %v4573, 5
    %v4625 = vsel %vm4237, %v4623, %v4624
    %v4626 = vrot.slane %v4574, 5
    %v4627 = vsel %vm4237, %v4624, %v4626
    %v4628 = vrot.slane %v4575, 5
    %v4629 = vsel %vm4237, %v4626, %v4628
    %v4630 = vrot.slane %v4576, 5
    %v4631 = vrot.slane %v4577, 5
    %v4632 = vsel %vm4237, %v4630, %v4631
    %v4633 = vrot.slane %v4578, 5
    %v4634 = vsel %vm4237, %v4631, %v4633
    %v4635 = vrot.slane %v4579, 5
    %v4636 = vsel %vm4237, %v4633, %v4635
    %v4637 = vrot.slane %v4580, 5
    %v4638 = vrot.slane %v4581, 5
    %v4639 = vsel %vm4237, %v4637, %v4638
    %v4640 = vrot.slane %v4582, 5
    %v4641 = vsel %vm4237, %v4638, %v4640
    %v4642 = vrot.slane %v4583, 5
    %v4643 = vsel %vm4237, %v4640, %v4642
    %v4644 = vrot.slane %v4584, 5
    %v4645 = vrot.slane %v4585, 5
    %v4646 = vsel %vm4237, %v4644, %v4645
    %v4647 = vrot.slane %v4586, 5
    %v4648 = vsel %vm4237, %v4645, %v4647
    %v4649 = vrot.slane %v4587, 5
    %v4650 = vsel %vm4237, %v4647, %v4649
    %v4651 = vrot.slane %v4588, 5
    %v4652 = vrot.slane %v4589, 5
    %v4653 = vsel %vm4237, %v4651, %v4652
    %v4654 = vrot.slane %v4590, 5
    %v4655 = vsel %vm4237, %v4652, %v4654
    %v4656 = vrot.slane %v4591, 5
    %v4657 = vsel %vm4237, %v4654, %v4656
    %v4676 = vadd.f32 %v4045, %v4618
    %v4677 = vadd.f32 %v4046, %v4620
    %v4678 = vadd.f32 %v4047, %v4622
    %v4679 = vadd.f32 %v4048, %v4625
    %v4680 = vadd.f32 %v4049, %v4627
    %v4681 = vadd.f32 %v4050, %v4629
    %v4682 = vadd.f32 %v4051, %v4632
    %v4683 = vadd.f32 %v4052, %v4634
    %v4684 = vadd.f32 %v4053, %v4636
    %v4685 = vadd.f32 %v4054, %v4639
    %v4686 = vadd.f32 %v4055, %v4641
    %v4687 = vadd.f32 %v4056, %v4643
    %v4688 = vadd.f32 %v4057, %v4646
    %v4689 = vadd.f32 %v4058, %v4648
    %v4690 = vadd.f32 %v4059, %v4650
    %v4691 = vadd.f32 %v4060, %v4653
    %v4692 = vadd.f32 %v4061, %v4655
    %v4693 = vadd.f32 %v4062, %v4657
    %v4694 = vmul.f32 %v1547, 0.26601174
    %v4695 = vmul.f32 %v1552, 0.26601174
    %v4696 = vmul.f32 %v1557, 0.26601174
    %v4697 = vmul.f32 %v1562, 0.26601174
    %v4698 = vmul.f32 %v1572, 0.26601174
    %v4699 = vmul.f32 %v1577, 0.26601174
    %v4700 = vmul.f32 %v1582, 0.26601174
    %v4701 = vmul.f32 %v1587, 0.26601174
    %v4702 = vmul.f32 %v1597, 0.26601174
    %v4703 = vmul.f32 %v1602, 0.26601174
    %v4704 = vmul.f32 %v1607, 0.26601174
    %v4705 = vmul.f32 %v1612, 0.26601174
    %v4706 = vmul.f32 %v1622, 0.26601174
    %v4707 = vmul.f32 %v1627, 0.26601174
    %v4708 = vmul.f32 %v1632, 0.26601174
    %v4709 = vmul.f32 %v1637, 0.26601174
    %v4710 = vmul.f32 %v1647, 0.26601174
    %v4711 = vmul.f32 %v1652, 0.26601174
    %v4712 = vmul.f32 %v1657, 0.26601174
    %v4713 = vmul.f32 %v1662, 0.26601174
    %v4714 = vmul.f32 %v1672, 0.26601174
    %v4715 = vmul.f32 %v1677, 0.26601174
    %v4716 = vmul.f32 %v1682, 0.26601174
    %v4717 = vmul.f32 %v1687, 0.26601174
    %v4742 = vrot.slane %v4694, 5
    %v4743 = vrot.slane %v4695, 5
    %v4744 = vsel %vm4237, %v4742, %v4743
    %v4745 = vrot.slane %v4696, 5
    %v4746 = vsel %vm4237, %v4743, %v4745
    %v4747 = vrot.slane %v4697, 5
    %v4748 = vsel %vm4237, %v4745, %v4747
    %v4749 = vrot.slane %v4698, 5
    %v4750 = vrot.slane %v4699, 5
    %v4751 = vsel %vm4237, %v4749, %v4750
    %v4752 = vrot.slane %v4700, 5
    %v4753 = vsel %vm4237, %v4750, %v4752
    %v4754 = vrot.slane %v4701, 5
    %v4755 = vsel %vm4237, %v4752, %v4754
    %v4756 = vrot.slane %v4702, 5
    %v4757 = vrot.slane %v4703, 5
    %v4758 = vsel %vm4237, %v4756, %v4757
    %v4759 = vrot.slane %v4704, 5
    %v4760 = vsel %vm4237, %v4757, %v4759
    %v4761 = vrot.slane %v4705, 5
    %v4762 = vsel %vm4237, %v4759, %v4761
    %v4763 = vrot.slane %v4706, 5
    %v4764 = vrot.slane %v4707, 5
    %v4765 = vsel %vm4237, %v4763, %v4764
    %v4766 = vrot.slane %v4708, 5
    %v4767 = vsel %vm4237, %v4764, %v4766
    %v4768 = vrot.slane %v4709, 5
    %v4769 = vsel %vm4237, %v4766, %v4768
    %v4770 = vrot.slane %v4710, 5
    %v4771 = vrot.slane %v4711, 5
    %v4772 = vsel %vm4237, %v4770, %v4771
    %v4773 = vrot.slane %v4712, 5
    %v4774 = vsel %vm4237, %v4771, %v4773
    %v4775 = vrot.slane %v4713, 5
    %v4776 = vsel %vm4237, %v4773, %v4775
    %v4777 = vrot.slane %v4714, 5
    %v4778 = vrot.slane %v4715, 5
    %v4779 = vsel %vm4237, %v4777, %v4778
    %v4780 = vrot.slane %v4716, 5
    %v4781 = vsel %vm4237, %v4778, %v4780
    %v4782 = vrot.slane %v4717, 5
    %v4783 = vsel %vm4237, %v4780, %v4782
    %v4802 = vadd.f32 %v4171, %v4744
    %v4803 = vadd.f32 %v4172, %v4746
    %v4804 = vadd.f32 %v4173, %v4748
    %v4805 = vadd.f32 %v4174, %v4751
    %v4806 = vadd.f32 %v4175, %v4753
    %v4807 = vadd.f32 %v4176, %v4755
    %v4808 = vadd.f32 %v4177, %v4758
    %v4809 = vadd.f32 %v4178, %v4760
    %v4810 = vadd.f32 %v4179, %v4762
    %v4811 = vadd.f32 %v4180, %v4765
    %v4812 = vadd.f32 %v4181, %v4767
    %v4813 = vadd.f32 %v4182, %v4769
    %v4814 = vadd.f32 %v4183, %v4772
    %v4815 = vadd.f32 %v4184, %v4774
    %v4816 = vadd.f32 %v4185, %v4776
    %v4817 = vadd.f32 %v4186, %v4779
    %v4818 = vadd.f32 %v4187, %v4781
    %v4819 = vadd.f32 %v4188, %v4783
    %vm4820 = vcmask 1041408
    %v4821 = vrot.slane %v3558, 6
    %v4822 = vrot.slane %v3559, 6
    %v4823 = vsel %vm4820, %v4821, %v4822
    %v4824 = vrot.slane %v3560, 6
    %v4825 = vsel %vm4820, %v4822, %v4824
    %v4826 = vrot.slane %v3561, 6
    %v4827 = vsel %vm4820, %v4824, %v4826
    %v4828 = vrot.slane %v3562, 6
    %v4829 = vrot.slane %v3563, 6
    %v4830 = vsel %vm4820, %v4828, %v4829
    %v4831 = vrot.slane %v3564, 6
    %v4832 = vsel %vm4820, %v4829, %v4831
    %v4833 = vrot.slane %v3565, 6
    %v4834 = vsel %vm4820, %v4831, %v4833
    %v4835 = vrot.slane %v3566, 6
    %v4836 = vrot.slane %v3567, 6
    %v4837 = vsel %vm4820, %v4835, %v4836
    %v4838 = vrot.slane %v3568, 6
    %v4839 = vsel %vm4820, %v4836, %v4838
    %v4840 = vrot.slane %v3569, 6
    %v4841 = vsel %vm4820, %v4838, %v4840
    %v4842 = vrot.slane %v3570, 6
    %v4843 = vrot.slane %v3571, 6
    %v4844 = vsel %vm4820, %v4842, %v4843
    %v4845 = vrot.slane %v3572, 6
    %v4846 = vsel %vm4820, %v4843, %v4845
    %v4847 = vrot.slane %v3573, 6
    %v4848 = vsel %vm4820, %v4845, %v4847
    %v4849 = vrot.slane %v3574, 6
    %v4850 = vrot.slane %v3575, 6
    %v4851 = vsel %vm4820, %v4849, %v4850
    %v4852 = vrot.slane %v3576, 6
    %v4853 = vsel %vm4820, %v4850, %v4852
    %v4854 = vrot.slane %v3577, 6
    %v4855 = vsel %vm4820, %v4852, %v4854
    %v4856 = vrot.slane %v3578, 6
    %v4857 = vrot.slane %v3579, 6
    %v4858 = vsel %vm4820, %v4856, %v4857
    %v4859 = vrot.slane %v3580, 6
    %v4860 = vsel %vm4820, %v4857, %v4859
    %v4861 = vrot.slane %v3581, 6
    %v4862 = vsel %vm4820, %v4859, %v4861
    %v4881 = vadd.f32 %v4298, %v4823
    %v4882 = vadd.f32 %v4299, %v4825
    %v4883 = vadd.f32 %v4300, %v4827
    %v4884 = vadd.f32 %v4301, %v4830
    %v4885 = vadd.f32 %v4302, %v4832
    %v4886 = vadd.f32 %v4303, %v4834
    %v4887 = vadd.f32 %v4304, %v4837
    %v4888 = vadd.f32 %v4305, %v4839
    %v4889 = vadd.f32 %v4306, %v4841
    %v4890 = vadd.f32 %v4307, %v4844
    %v4891 = vadd.f32 %v4308, %v4846
    %v4892 = vadd.f32 %v4309, %v4848
    %v4893 = vadd.f32 %v4310, %v4851
    %v4894 = vadd.f32 %v4311, %v4853
    %v4895 = vadd.f32 %v4312, %v4855
    %v4896 = vadd.f32 %v4313, %v4858
    %v4897 = vadd.f32 %v4314, %v4860
    %v4898 = vadd.f32 %v4315, %v4862
    %v4899 = vrot.slane %v3685, 6
    %v4900 = vrot.slane %v3686, 6
    %v4901 = vsel %vm4820, %v4899, %v4900
    %v4902 = vrot.slane %v3687, 6
    %v4903 = vsel %vm4820, %v4900, %v4902
    %v4904 = vrot.slane %v3688, 6
    %v4905 = vsel %vm4820, %v4902, %v4904
    %v4906 = vrot.slane %v3689, 6
    %v4907 = vrot.slane %v3690, 6
    %v4908 = vsel %vm4820, %v4906, %v4907
    %v4909 = vrot.slane %v3691, 6
    %v4910 = vsel %vm4820, %v4907, %v4909
    %v4911 = vrot.slane %v3692, 6
    %v4912 = vsel %vm4820, %v4909, %v4911
    %v4913 = vrot.slane %v3693, 6
    %v4914 = vrot.slane %v3694, 6
    %v4915 = vsel %vm4820, %v4913, %v4914
    %v4916 = vrot.slane %v3695, 6
    %v4917 = vsel %vm4820, %v4914, %v4916
    %v4918 = vrot.slane %v3696, 6
    %v4919 = vsel %vm4820, %v4916, %v4918
    %v4920 = vrot.slane %v3697, 6
    %v4921 = vrot.slane %v3698, 6
    %v4922 = vsel %vm4820, %v4920, %v4921
    %v4923 = vrot.slane %v3699, 6
    %v4924 = vsel %vm4820, %v4921, %v4923
    %v4925 = vrot.slane %v3700, 6
    %v4926 = vsel %vm4820, %v4923, %v4925
    %v4927 = vrot.slane %v3701, 6
    %v4928 = vrot.slane %v3702, 6
    %v4929 = vsel %vm4820, %v4927, %v4928
    %v4930 = vrot.slane %v3703, 6
    %v4931 = vsel %vm4820, %v4928, %v4930
    %v4932 = vrot.slane %v3704, 6
    %v4933 = vsel %vm4820, %v4930, %v4932
    %v4934 = vrot.slane %v3705, 6
    %v4935 = vrot.slane %v3706, 6
    %v4936 = vsel %vm4820, %v4934, %v4935
    %v4937 = vrot.slane %v3707, 6
    %v4938 = vsel %vm4820, %v4935, %v4937
    %v4939 = vrot.slane %v3708, 6
    %v4940 = vsel %vm4820, %v4937, %v4939
    %v4959 = vadd.f32 %v4424, %v4901
    %v4960 = vadd.f32 %v4425, %v4903
    %v4961 = vadd.f32 %v4426, %v4905
    %v4962 = vadd.f32 %v4427, %v4908
    %v4963 = vadd.f32 %v4428, %v4910
    %v4964 = vadd.f32 %v4429, %v4912
    %v4965 = vadd.f32 %v4430, %v4915
    %v4966 = vadd.f32 %v4431, %v4917
    %v4967 = vadd.f32 %v4432, %v4919
    %v4968 = vadd.f32 %v4433, %v4922
    %v4969 = vadd.f32 %v4434, %v4924
    %v4970 = vadd.f32 %v4435, %v4926
    %v4971 = vadd.f32 %v4436, %v4929
    %v4972 = vadd.f32 %v4437, %v4931
    %v4973 = vadd.f32 %v4438, %v4933
    %v4974 = vadd.f32 %v4439, %v4936
    %v4975 = vadd.f32 %v4440, %v4938
    %v4976 = vadd.f32 %v4441, %v4940
    %v4977 = vrot.slane %v3811, 6
    %v4978 = vrot.slane %v3812, 6
    %v4979 = vsel %vm4820, %v4977, %v4978
    %v4980 = vrot.slane %v3813, 6
    %v4981 = vsel %vm4820, %v4978, %v4980
    %v4982 = vrot.slane %v3814, 6
    %v4983 = vsel %vm4820, %v4980, %v4982
    %v4984 = vrot.slane %v3815, 6
    %v4985 = vrot.slane %v3816, 6
    %v4986 = vsel %vm4820, %v4984, %v4985
    %v4987 = vrot.slane %v3817, 6
    %v4988 = vsel %vm4820, %v4985, %v4987
    %v4989 = vrot.slane %v3818, 6
    %v4990 = vsel %vm4820, %v4987, %v4989
    %v4991 = vrot.slane %v3819, 6
    %v4992 = vrot.slane %v3820, 6
    %v4993 = vsel %vm4820, %v4991, %v4992
    %v4994 = vrot.slane %v3821, 6
    %v4995 = vsel %vm4820, %v4992, %v4994
    %v4996 = vrot.slane %v3822, 6
    %v4997 = vsel %vm4820, %v4994, %v4996
    %v4998 = vrot.slane %v3823, 6
    %v4999 = vrot.slane %v3824, 6
    %v5000 = vsel %vm4820, %v4998, %v4999
    %v5001 = vrot.slane %v3825, 6
    %v5002 = vsel %vm4820, %v4999, %v5001
    %v5003 = vrot.slane %v3826, 6
    %v5004 = vsel %vm4820, %v5001, %v5003
    %v5005 = vrot.slane %v3827, 6
    %v5006 = vrot.slane %v3828, 6
    %v5007 = vsel %vm4820, %v5005, %v5006
    %v5008 = vrot.slane %v3829, 6
    %v5009 = vsel %vm4820, %v5006, %v5008
    %v5010 = vrot.slane %v3830, 6
    %v5011 = vsel %vm4820, %v5008, %v5010
    %v5012 = vrot.slane %v3831, 6
    %v5013 = vrot.slane %v3832, 6
    %v5014 = vsel %vm4820, %v5012, %v5013
    %v5015 = vrot.slane %v3833, 6
    %v5016 = vsel %vm4820, %v5013, %v5015
    %v5017 = vrot.slane %v3834, 6
    %v5018 = vsel %vm4820, %v5015, %v5017
    %v5037 = vadd.f32 %v4550, %v4979
    %v5038 = vadd.f32 %v4551, %v4981
    %v5039 = vadd.f32 %v4552, %v4983
    %v5040 = vadd.f32 %v4553, %v4986
    %v5041 = vadd.f32 %v4554, %v4988
    %v5042 = vadd.f32 %v4555, %v4990
    %v5043 = vadd.f32 %v4556, %v4993
    %v5044 = vadd.f32 %v4557, %v4995
    %v5045 = vadd.f32 %v4558, %v4997
    %v5046 = vadd.f32 %v4559, %v5000
    %v5047 = vadd.f32 %v4560, %v5002
    %v5048 = vadd.f32 %v4561, %v5004
    %v5049 = vadd.f32 %v4562, %v5007
    %v5050 = vadd.f32 %v4563, %v5009
    %v5051 = vadd.f32 %v4564, %v5011
    %v5052 = vadd.f32 %v4565, %v5014
    %v5053 = vadd.f32 %v4566, %v5016
    %v5054 = vadd.f32 %v4567, %v5018
    %v5055 = vrot.slane %v3937, 6
    %v5056 = vrot.slane %v3938, 6
    %v5057 = vsel %vm4820, %v5055, %v5056
    %v5058 = vrot.slane %v3939, 6
    %v5059 = vsel %vm4820, %v5056, %v5058
    %v5060 = vrot.slane %v3940, 6
    %v5061 = vsel %vm4820, %v5058, %v5060
    %v5062 = vrot.slane %v3941, 6
    %v5063 = vrot.slane %v3942, 6
    %v5064 = vsel %vm4820, %v5062, %v5063
    %v5065 = vrot.slane %v3943, 6
    %v5066 = vsel %vm4820, %v5063, %v5065
    %v5067 = vrot.slane %v3944, 6
    %v5068 = vsel %vm4820, %v5065, %v5067
    %v5069 = vrot.slane %v3945, 6
    %v5070 = vrot.slane %v3946, 6
    %v5071 = vsel %vm4820, %v5069, %v5070
    %v5072 = vrot.slane %v3947, 6
    %v5073 = vsel %vm4820, %v5070, %v5072
    %v5074 = vrot.slane %v3948, 6
    %v5075 = vsel %vm4820, %v5072, %v5074
    %v5076 = vrot.slane %v3949, 6
    %v5077 = vrot.slane %v3950, 6
    %v5078 = vsel %vm4820, %v5076, %v5077
    %v5079 = vrot.slane %v3951, 6
    %v5080 = vsel %vm4820, %v5077, %v5079
    %v5081 = vrot.slane %v3952, 6
    %v5082 = vsel %vm4820, %v5079, %v5081
    %v5083 = vrot.slane %v3953, 6
    %v5084 = vrot.slane %v3954, 6
    %v5085 = vsel %vm4820, %v5083, %v5084
    %v5086 = vrot.slane %v3955, 6
    %v5087 = vsel %vm4820, %v5084, %v5086
    %v5088 = vrot.slane %v3956, 6
    %v5089 = vsel %vm4820, %v5086, %v5088
    %v5090 = vrot.slane %v3957, 6
    %v5091 = vrot.slane %v3958, 6
    %v5092 = vsel %vm4820, %v5090, %v5091
    %v5093 = vrot.slane %v3959, 6
    %v5094 = vsel %vm4820, %v5091, %v5093
    %v5095 = vrot.slane %v3960, 6
    %v5096 = vsel %vm4820, %v5093, %v5095
    %v5115 = vadd.f32 %v4676, %v5057
    %v5116 = vadd.f32 %v4677, %v5059
    %v5117 = vadd.f32 %v4678, %v5061
    %v5118 = vadd.f32 %v4679, %v5064
    %v5119 = vadd.f32 %v4680, %v5066
    %v5120 = vadd.f32 %v4681, %v5068
    %v5121 = vadd.f32 %v4682, %v5071
    %v5122 = vadd.f32 %v4683, %v5073
    %v5123 = vadd.f32 %v4684, %v5075
    %v5124 = vadd.f32 %v4685, %v5078
    %v5125 = vadd.f32 %v4686, %v5080
    %v5126 = vadd.f32 %v4687, %v5082
    %v5127 = vadd.f32 %v4688, %v5085
    %v5128 = vadd.f32 %v4689, %v5087
    %v5129 = vadd.f32 %v4690, %v5089
    %v5130 = vadd.f32 %v4691, %v5092
    %v5131 = vadd.f32 %v4692, %v5094
    %v5132 = vadd.f32 %v4693, %v5096
    %v5133 = vrot.slane %v4063, 6
    %v5134 = vrot.slane %v4064, 6
    %v5135 = vsel %vm4820, %v5133, %v5134
    %v5136 = vrot.slane %v4065, 6
    %v5137 = vsel %vm4820, %v5134, %v5136
    %v5138 = vrot.slane %v4066, 6
    %v5139 = vsel %vm4820, %v5136, %v5138
    %v5140 = vrot.slane %v4067, 6
    %v5141 = vrot.slane %v4068, 6
    %v5142 = vsel %vm4820, %v5140, %v5141
    %v5143 = vrot.slane %v4069, 6
    %v5144 = vsel %vm4820, %v5141, %v5143
    %v5145 = vrot.slane %v4070, 6
    %v5146 = vsel %vm4820, %v5143, %v5145
    %v5147 = vrot.slane %v4071, 6
    %v5148 = vrot.slane %v4072, 6
    %v5149 = vsel %vm4820, %v5147, %v5148
    %v5150 = vrot.slane %v4073, 6
    %v5151 = vsel %vm4820, %v5148, %v5150
    %v5152 = vrot.slane %v4074, 6
    %v5153 = vsel %vm4820, %v5150, %v5152
    %v5154 = vrot.slane %v4075, 6
    %v5155 = vrot.slane %v4076, 6
    %v5156 = vsel %vm4820, %v5154, %v5155
    %v5157 = vrot.slane %v4077, 6
    %v5158 = vsel %vm4820, %v5155, %v5157
    %v5159 = vrot.slane %v4078, 6
    %v5160 = vsel %vm4820, %v5157, %v5159
    %v5161 = vrot.slane %v4079, 6
    %v5162 = vrot.slane %v4080, 6
    %v5163 = vsel %vm4820, %v5161, %v5162
    %v5164 = vrot.slane %v4081, 6
    %v5165 = vsel %vm4820, %v5162, %v5164
    %v5166 = vrot.slane %v4082, 6
    %v5167 = vsel %vm4820, %v5164, %v5166
    %v5168 = vrot.slane %v4083, 6
    %v5169 = vrot.slane %v4084, 6
    %v5170 = vsel %vm4820, %v5168, %v5169
    %v5171 = vrot.slane %v4085, 6
    %v5172 = vsel %vm4820, %v5169, %v5171
    %v5173 = vrot.slane %v4086, 6
    %v5174 = vsel %vm4820, %v5171, %v5173
    %v5193 = vadd.f32 %v4802, %v5135
    %v5194 = vadd.f32 %v4803, %v5137
    %v5195 = vadd.f32 %v4804, %v5139
    %v5196 = vadd.f32 %v4805, %v5142
    %v5197 = vadd.f32 %v4806, %v5144
    %v5198 = vadd.f32 %v4807, %v5146
    %v5199 = vadd.f32 %v4808, %v5149
    %v5200 = vadd.f32 %v4809, %v5151
    %v5201 = vadd.f32 %v4810, %v5153
    %v5202 = vadd.f32 %v4811, %v5156
    %v5203 = vadd.f32 %v4812, %v5158
    %v5204 = vadd.f32 %v4813, %v5160
    %v5205 = vadd.f32 %v4814, %v5163
    %v5206 = vadd.f32 %v4815, %v5165
    %v5207 = vadd.f32 %v4816, %v5167
    %v5208 = vadd.f32 %v4817, %v5170
    %v5209 = vadd.f32 %v4818, %v5172
    %v5210 = vadd.f32 %v4819, %v5174
    %vm5211 = vcmask 1040384
    %v5212 = vrot.slane %v2927, 7
    %v5213 = vrot.slane %v2928, 7
    %v5214 = vsel %vm5211, %v5212, %v5213
    %v5215 = vrot.slane %v2929, 7
    %v5216 = vsel %vm5211, %v5213, %v5215
    %v5217 = vrot.slane %v2930, 7
    %v5218 = vsel %vm5211, %v5215, %v5217
    %v5219 = vrot.slane %v2931, 7
    %v5220 = vrot.slane %v2932, 7
    %v5221 = vsel %vm5211, %v5219, %v5220
    %v5222 = vrot.slane %v2933, 7
    %v5223 = vsel %vm5211, %v5220, %v5222
    %v5224 = vrot.slane %v2934, 7
    %v5225 = vsel %vm5211, %v5222, %v5224
    %v5226 = vrot.slane %v2935, 7
    %v5227 = vrot.slane %v2936, 7
    %v5228 = vsel %vm5211, %v5226, %v5227
    %v5229 = vrot.slane %v2937, 7
    %v5230 = vsel %vm5211, %v5227, %v5229
    %v5231 = vrot.slane %v2938, 7
    %v5232 = vsel %vm5211, %v5229, %v5231
    %v5233 = vrot.slane %v2939, 7
    %v5234 = vrot.slane %v2940, 7
    %v5235 = vsel %vm5211, %v5233, %v5234
    %v5236 = vrot.slane %v2941, 7
    %v5237 = vsel %vm5211, %v5234, %v5236
    %v5238 = vrot.slane %v2942, 7
    %v5239 = vsel %vm5211, %v5236, %v5238
    %v5240 = vrot.slane %v2943, 7
    %v5241 = vrot.slane %v2944, 7
    %v5242 = vsel %vm5211, %v5240, %v5241
    %v5243 = vrot.slane %v2945, 7
    %v5244 = vsel %vm5211, %v5241, %v5243
    %v5245 = vrot.slane %v2946, 7
    %v5246 = vsel %vm5211, %v5243, %v5245
    %v5247 = vrot.slane %v2947, 7
    %v5248 = vrot.slane %v2948, 7
    %v5249 = vsel %vm5211, %v5247, %v5248
    %v5250 = vrot.slane %v2949, 7
    %v5251 = vsel %vm5211, %v5248, %v5250
    %v5252 = vrot.slane %v2950, 7
    %v5253 = vsel %vm5211, %v5250, %v5252
    %v5272 = vadd.f32 %v4881, %v5214
    %v5273 = vadd.f32 %v4882, %v5216
    %v5274 = vadd.f32 %v4883, %v5218
    %v5275 = vadd.f32 %v4884, %v5221
    %v5276 = vadd.f32 %v4885, %v5223
    %v5277 = vadd.f32 %v4886, %v5225
    %v5278 = vadd.f32 %v4887, %v5228
    %v5279 = vadd.f32 %v4888, %v5230
    %v5280 = vadd.f32 %v4889, %v5232
    %v5281 = vadd.f32 %v4890, %v5235
    %v5282 = vadd.f32 %v4891, %v5237
    %v5283 = vadd.f32 %v4892, %v5239
    %v5284 = vadd.f32 %v4893, %v5242
    %v5285 = vadd.f32 %v4894, %v5244
    %v5286 = vadd.f32 %v4895, %v5246
    %v5287 = vadd.f32 %v4896, %v5249
    %v5288 = vadd.f32 %v4897, %v5251
    %v5289 = vadd.f32 %v4898, %v5253
    %v5290 = vrot.slane %v3054, 7
    %v5291 = vrot.slane %v3055, 7
    %v5292 = vsel %vm5211, %v5290, %v5291
    %v5293 = vrot.slane %v3056, 7
    %v5294 = vsel %vm5211, %v5291, %v5293
    %v5295 = vrot.slane %v3057, 7
    %v5296 = vsel %vm5211, %v5293, %v5295
    %v5297 = vrot.slane %v3058, 7
    %v5298 = vrot.slane %v3059, 7
    %v5299 = vsel %vm5211, %v5297, %v5298
    %v5300 = vrot.slane %v3060, 7
    %v5301 = vsel %vm5211, %v5298, %v5300
    %v5302 = vrot.slane %v3061, 7
    %v5303 = vsel %vm5211, %v5300, %v5302
    %v5304 = vrot.slane %v3062, 7
    %v5305 = vrot.slane %v3063, 7
    %v5306 = vsel %vm5211, %v5304, %v5305
    %v5307 = vrot.slane %v3064, 7
    %v5308 = vsel %vm5211, %v5305, %v5307
    %v5309 = vrot.slane %v3065, 7
    %v5310 = vsel %vm5211, %v5307, %v5309
    %v5311 = vrot.slane %v3066, 7
    %v5312 = vrot.slane %v3067, 7
    %v5313 = vsel %vm5211, %v5311, %v5312
    %v5314 = vrot.slane %v3068, 7
    %v5315 = vsel %vm5211, %v5312, %v5314
    %v5316 = vrot.slane %v3069, 7
    %v5317 = vsel %vm5211, %v5314, %v5316
    %v5318 = vrot.slane %v3070, 7
    %v5319 = vrot.slane %v3071, 7
    %v5320 = vsel %vm5211, %v5318, %v5319
    %v5321 = vrot.slane %v3072, 7
    %v5322 = vsel %vm5211, %v5319, %v5321
    %v5323 = vrot.slane %v3073, 7
    %v5324 = vsel %vm5211, %v5321, %v5323
    %v5325 = vrot.slane %v3074, 7
    %v5326 = vrot.slane %v3075, 7
    %v5327 = vsel %vm5211, %v5325, %v5326
    %v5328 = vrot.slane %v3076, 7
    %v5329 = vsel %vm5211, %v5326, %v5328
    %v5330 = vrot.slane %v3077, 7
    %v5331 = vsel %vm5211, %v5328, %v5330
    %v5350 = vadd.f32 %v4959, %v5292
    %v5351 = vadd.f32 %v4960, %v5294
    %v5352 = vadd.f32 %v4961, %v5296
    %v5353 = vadd.f32 %v4962, %v5299
    %v5354 = vadd.f32 %v4963, %v5301
    %v5355 = vadd.f32 %v4964, %v5303
    %v5356 = vadd.f32 %v4965, %v5306
    %v5357 = vadd.f32 %v4966, %v5308
    %v5358 = vadd.f32 %v4967, %v5310
    %v5359 = vadd.f32 %v4968, %v5313
    %v5360 = vadd.f32 %v4969, %v5315
    %v5361 = vadd.f32 %v4970, %v5317
    %v5362 = vadd.f32 %v4971, %v5320
    %v5363 = vadd.f32 %v4972, %v5322
    %v5364 = vadd.f32 %v4973, %v5324
    %v5365 = vadd.f32 %v4974, %v5327
    %v5366 = vadd.f32 %v4975, %v5329
    %v5367 = vadd.f32 %v4976, %v5331
    %v5368 = vrot.slane %v3180, 7
    %v5369 = vrot.slane %v3181, 7
    %v5370 = vsel %vm5211, %v5368, %v5369
    %v5371 = vrot.slane %v3182, 7
    %v5372 = vsel %vm5211, %v5369, %v5371
    %v5373 = vrot.slane %v3183, 7
    %v5374 = vsel %vm5211, %v5371, %v5373
    %v5375 = vrot.slane %v3184, 7
    %v5376 = vrot.slane %v3185, 7
    %v5377 = vsel %vm5211, %v5375, %v5376
    %v5378 = vrot.slane %v3186, 7
    %v5379 = vsel %vm5211, %v5376, %v5378
    %v5380 = vrot.slane %v3187, 7
    %v5381 = vsel %vm5211, %v5378, %v5380
    %v5382 = vrot.slane %v3188, 7
    %v5383 = vrot.slane %v3189, 7
    %v5384 = vsel %vm5211, %v5382, %v5383
    %v5385 = vrot.slane %v3190, 7
    %v5386 = vsel %vm5211, %v5383, %v5385
    %v5387 = vrot.slane %v3191, 7
    %v5388 = vsel %vm5211, %v5385, %v5387
    %v5389 = vrot.slane %v3192, 7
    %v5390 = vrot.slane %v3193, 7
    %v5391 = vsel %vm5211, %v5389, %v5390
    %v5392 = vrot.slane %v3194, 7
    %v5393 = vsel %vm5211, %v5390, %v5392
    %v5394 = vrot.slane %v3195, 7
    %v5395 = vsel %vm5211, %v5392, %v5394
    %v5396 = vrot.slane %v3196, 7
    %v5397 = vrot.slane %v3197, 7
    %v5398 = vsel %vm5211, %v5396, %v5397
    %v5399 = vrot.slane %v3198, 7
    %v5400 = vsel %vm5211, %v5397, %v5399
    %v5401 = vrot.slane %v3199, 7
    %v5402 = vsel %vm5211, %v5399, %v5401
    %v5403 = vrot.slane %v3200, 7
    %v5404 = vrot.slane %v3201, 7
    %v5405 = vsel %vm5211, %v5403, %v5404
    %v5406 = vrot.slane %v3202, 7
    %v5407 = vsel %vm5211, %v5404, %v5406
    %v5408 = vrot.slane %v3203, 7
    %v5409 = vsel %vm5211, %v5406, %v5408
    %v5428 = vadd.f32 %v5037, %v5370
    %v5429 = vadd.f32 %v5038, %v5372
    %v5430 = vadd.f32 %v5039, %v5374
    %v5431 = vadd.f32 %v5040, %v5377
    %v5432 = vadd.f32 %v5041, %v5379
    %v5433 = vadd.f32 %v5042, %v5381
    %v5434 = vadd.f32 %v5043, %v5384
    %v5435 = vadd.f32 %v5044, %v5386
    %v5436 = vadd.f32 %v5045, %v5388
    %v5437 = vadd.f32 %v5046, %v5391
    %v5438 = vadd.f32 %v5047, %v5393
    %v5439 = vadd.f32 %v5048, %v5395
    %v5440 = vadd.f32 %v5049, %v5398
    %v5441 = vadd.f32 %v5050, %v5400
    %v5442 = vadd.f32 %v5051, %v5402
    %v5443 = vadd.f32 %v5052, %v5405
    %v5444 = vadd.f32 %v5053, %v5407
    %v5445 = vadd.f32 %v5054, %v5409
    %v5446 = vrot.slane %v3306, 7
    %v5447 = vrot.slane %v3307, 7
    %v5448 = vsel %vm5211, %v5446, %v5447
    %v5449 = vrot.slane %v3308, 7
    %v5450 = vsel %vm5211, %v5447, %v5449
    %v5451 = vrot.slane %v3309, 7
    %v5452 = vsel %vm5211, %v5449, %v5451
    %v5453 = vrot.slane %v3310, 7
    %v5454 = vrot.slane %v3311, 7
    %v5455 = vsel %vm5211, %v5453, %v5454
    %v5456 = vrot.slane %v3312, 7
    %v5457 = vsel %vm5211, %v5454, %v5456
    %v5458 = vrot.slane %v3313, 7
    %v5459 = vsel %vm5211, %v5456, %v5458
    %v5460 = vrot.slane %v3314, 7
    %v5461 = vrot.slane %v3315, 7
    %v5462 = vsel %vm5211, %v5460, %v5461
    %v5463 = vrot.slane %v3316, 7
    %v5464 = vsel %vm5211, %v5461, %v5463
    %v5465 = vrot.slane %v3317, 7
    %v5466 = vsel %vm5211, %v5463, %v5465
    %v5467 = vrot.slane %v3318, 7
    %v5468 = vrot.slane %v3319, 7
    %v5469 = vsel %vm5211, %v5467, %v5468
    %v5470 = vrot.slane %v3320, 7
    %v5471 = vsel %vm5211, %v5468, %v5470
    %v5472 = vrot.slane %v3321, 7
    %v5473 = vsel %vm5211, %v5470, %v5472
    %v5474 = vrot.slane %v3322, 7
    %v5475 = vrot.slane %v3323, 7
    %v5476 = vsel %vm5211, %v5474, %v5475
    %v5477 = vrot.slane %v3324, 7
    %v5478 = vsel %vm5211, %v5475, %v5477
    %v5479 = vrot.slane %v3325, 7
    %v5480 = vsel %vm5211, %v5477, %v5479
    %v5481 = vrot.slane %v3326, 7
    %v5482 = vrot.slane %v3327, 7
    %v5483 = vsel %vm5211, %v5481, %v5482
    %v5484 = vrot.slane %v3328, 7
    %v5485 = vsel %vm5211, %v5482, %v5484
    %v5486 = vrot.slane %v3329, 7
    %v5487 = vsel %vm5211, %v5484, %v5486
    %v5506 = vadd.f32 %v5115, %v5448
    %v5507 = vadd.f32 %v5116, %v5450
    %v5508 = vadd.f32 %v5117, %v5452
    %v5509 = vadd.f32 %v5118, %v5455
    %v5510 = vadd.f32 %v5119, %v5457
    %v5511 = vadd.f32 %v5120, %v5459
    %v5512 = vadd.f32 %v5121, %v5462
    %v5513 = vadd.f32 %v5122, %v5464
    %v5514 = vadd.f32 %v5123, %v5466
    %v5515 = vadd.f32 %v5124, %v5469
    %v5516 = vadd.f32 %v5125, %v5471
    %v5517 = vadd.f32 %v5126, %v5473
    %v5518 = vadd.f32 %v5127, %v5476
    %v5519 = vadd.f32 %v5128, %v5478
    %v5520 = vadd.f32 %v5129, %v5480
    %v5521 = vadd.f32 %v5130, %v5483
    %v5522 = vadd.f32 %v5131, %v5485
    %v5523 = vadd.f32 %v5132, %v5487
    %v5524 = vrot.slane %v3432, 7
    %v5525 = vrot.slane %v3433, 7
    %v5526 = vsel %vm5211, %v5524, %v5525
    %v5527 = vrot.slane %v3434, 7
    %v5528 = vsel %vm5211, %v5525, %v5527
    %v5529 = vrot.slane %v3435, 7
    %v5530 = vsel %vm5211, %v5527, %v5529
    %v5531 = vrot.slane %v3436, 7
    %v5532 = vrot.slane %v3437, 7
    %v5533 = vsel %vm5211, %v5531, %v5532
    %v5534 = vrot.slane %v3438, 7
    %v5535 = vsel %vm5211, %v5532, %v5534
    %v5536 = vrot.slane %v3439, 7
    %v5537 = vsel %vm5211, %v5534, %v5536
    %v5538 = vrot.slane %v3440, 7
    %v5539 = vrot.slane %v3441, 7
    %v5540 = vsel %vm5211, %v5538, %v5539
    %v5541 = vrot.slane %v3442, 7
    %v5542 = vsel %vm5211, %v5539, %v5541
    %v5543 = vrot.slane %v3443, 7
    %v5544 = vsel %vm5211, %v5541, %v5543
    %v5545 = vrot.slane %v3444, 7
    %v5546 = vrot.slane %v3445, 7
    %v5547 = vsel %vm5211, %v5545, %v5546
    %v5548 = vrot.slane %v3446, 7
    %v5549 = vsel %vm5211, %v5546, %v5548
    %v5550 = vrot.slane %v3447, 7
    %v5551 = vsel %vm5211, %v5548, %v5550
    %v5552 = vrot.slane %v3448, 7
    %v5553 = vrot.slane %v3449, 7
    %v5554 = vsel %vm5211, %v5552, %v5553
    %v5555 = vrot.slane %v3450, 7
    %v5556 = vsel %vm5211, %v5553, %v5555
    %v5557 = vrot.slane %v3451, 7
    %v5558 = vsel %vm5211, %v5555, %v5557
    %v5559 = vrot.slane %v3452, 7
    %v5560 = vrot.slane %v3453, 7
    %v5561 = vsel %vm5211, %v5559, %v5560
    %v5562 = vrot.slane %v3454, 7
    %v5563 = vsel %vm5211, %v5560, %v5562
    %v5564 = vrot.slane %v3455, 7
    %v5565 = vsel %vm5211, %v5562, %v5564
    %v5584 = vadd.f32 %v5193, %v5526
    %v5585 = vadd.f32 %v5194, %v5528
    %v5586 = vadd.f32 %v5195, %v5530
    %v5587 = vadd.f32 %v5196, %v5533
    %v5588 = vadd.f32 %v5197, %v5535
    %v5589 = vadd.f32 %v5198, %v5537
    %v5590 = vadd.f32 %v5199, %v5540
    %v5591 = vadd.f32 %v5200, %v5542
    %v5592 = vadd.f32 %v5201, %v5544
    %v5593 = vadd.f32 %v5202, %v5547
    %v5594 = vadd.f32 %v5203, %v5549
    %v5595 = vadd.f32 %v5204, %v5551
    %v5596 = vadd.f32 %v5205, %v5554
    %v5597 = vadd.f32 %v5206, %v5556
    %v5598 = vadd.f32 %v5207, %v5558
    %v5599 = vadd.f32 %v5208, %v5561
    %v5600 = vadd.f32 %v5209, %v5563
    %v5601 = vadd.f32 %v5210, %v5565
    %v5602 = vadd.f32 %v5272, %v2297
    %v5603 = vadd.f32 %v5273, %v2298
    %v5604 = vadd.f32 %v5274, %v2299
    %v5605 = vadd.f32 %v5275, %v2301
    %v5606 = vadd.f32 %v5276, %v2302
    %v5607 = vadd.f32 %v5277, %v2303
    %v5608 = vadd.f32 %v5278, %v2305
    %v5609 = vadd.f32 %v5279, %v2306
    %v5610 = vadd.f32 %v5280, %v2307
    %v5611 = vadd.f32 %v5281, %v2309
    %v5612 = vadd.f32 %v5282, %v2310
    %v5613 = vadd.f32 %v5283, %v2311
    %v5614 = vadd.f32 %v5284, %v2313
    %v5615 = vadd.f32 %v5285, %v2314
    %v5616 = vadd.f32 %v5286, %v2315
    %v5617 = vadd.f32 %v5287, %v2317
    %v5618 = vadd.f32 %v5288, %v2318
    %v5619 = vadd.f32 %v5289, %v2319
    %v5620 = vadd.f32 %v5350, %v2424
    %v5621 = vadd.f32 %v5351, %v2425
    %v5622 = vadd.f32 %v5352, %v2426
    %v5623 = vadd.f32 %v5353, %v2428
    %v5624 = vadd.f32 %v5354, %v2429
    %v5625 = vadd.f32 %v5355, %v2430
    %v5626 = vadd.f32 %v5356, %v2432
    %v5627 = vadd.f32 %v5357, %v2433
    %v5628 = vadd.f32 %v5358, %v2434
    %v5629 = vadd.f32 %v5359, %v2436
    %v5630 = vadd.f32 %v5360, %v2437
    %v5631 = vadd.f32 %v5361, %v2438
    %v5632 = vadd.f32 %v5362, %v2440
    %v5633 = vadd.f32 %v5363, %v2441
    %v5634 = vadd.f32 %v5364, %v2442
    %v5635 = vadd.f32 %v5365, %v2444
    %v5636 = vadd.f32 %v5366, %v2445
    %v5637 = vadd.f32 %v5367, %v2446
    %v5638 = vadd.f32 %v5428, %v2550
    %v5639 = vadd.f32 %v5429, %v2551
    %v5640 = vadd.f32 %v5430, %v2552
    %v5641 = vadd.f32 %v5431, %v2554
    %v5642 = vadd.f32 %v5432, %v2555
    %v5643 = vadd.f32 %v5433, %v2556
    %v5644 = vadd.f32 %v5434, %v2558
    %v5645 = vadd.f32 %v5435, %v2559
    %v5646 = vadd.f32 %v5436, %v2560
    %v5647 = vadd.f32 %v5437, %v2562
    %v5648 = vadd.f32 %v5438, %v2563
    %v5649 = vadd.f32 %v5439, %v2564
    %v5650 = vadd.f32 %v5440, %v2566
    %v5651 = vadd.f32 %v5441, %v2567
    %v5652 = vadd.f32 %v5442, %v2568
    %v5653 = vadd.f32 %v5443, %v2570
    %v5654 = vadd.f32 %v5444, %v2571
    %v5655 = vadd.f32 %v5445, %v2572
    %v5656 = vadd.f32 %v5506, %v2676
    %v5657 = vadd.f32 %v5507, %v2677
    %v5658 = vadd.f32 %v5508, %v2678
    %v5659 = vadd.f32 %v5509, %v2680
    %v5660 = vadd.f32 %v5510, %v2681
    %v5661 = vadd.f32 %v5511, %v2682
    %v5662 = vadd.f32 %v5512, %v2684
    %v5663 = vadd.f32 %v5513, %v2685
    %v5664 = vadd.f32 %v5514, %v2686
    %v5665 = vadd.f32 %v5515, %v2688
    %v5666 = vadd.f32 %v5516, %v2689
    %v5667 = vadd.f32 %v5517, %v2690
    %v5668 = vadd.f32 %v5518, %v2692
    %v5669 = vadd.f32 %v5519, %v2693
    %v5670 = vadd.f32 %v5520, %v2694
    %v5671 = vadd.f32 %v5521, %v2696
    %v5672 = vadd.f32 %v5522, %v2697
    %v5673 = vadd.f32 %v5523, %v2698
    %v5674 = vadd.f32 %v5584, %v2802
    %v5675 = vadd.f32 %v5585, %v2803
    %v5676 = vadd.f32 %v5586, %v2804
    %v5677 = vadd.f32 %v5587, %v2806
    %v5678 = vadd.f32 %v5588, %v2807
    %v5679 = vadd.f32 %v5589, %v2808
    %v5680 = vadd.f32 %v5590, %v2810
    %v5681 = vadd.f32 %v5591, %v2811
    %v5682 = vadd.f32 %v5592, %v2812
    %v5683 = vadd.f32 %v5593, %v2814
    %v5684 = vadd.f32 %v5594, %v2815
    %v5685 = vadd.f32 %v5595, %v2816
    %v5686 = vadd.f32 %v5596, %v2818
    %v5687 = vadd.f32 %v5597, %v2819
    %v5688 = vadd.f32 %v5598, %v2820
    %v5689 = vadd.f32 %v5599, %v2822
    %v5690 = vadd.f32 %v5600, %v2823
    %v5691 = vadd.f32 %v5601, %v2824
    %v5692 = vmul.f32 %v252, 0.0075987587
    %v5693 = vmul.f32 %v277, 0.0075987587
    %v5694 = vmul.f32 %v302, 0.0075987587
    %v5695 = vmul.f32 %v327, 0.0075987587
    %v5696 = vmul.f32 %v352, 0.0075987587
    %v5697 = vmul.f32 %v377, 0.0075987587
    %v5704 = vrot.slane %v5692, 1
    %v5705 = vsel %vm1821, %v1825, %v5704
    %v5706 = vrot.slane %v5693, 1
    %v5707 = vsel %vm1821, %v1830, %v5706
    %v5708 = vrot.slane %v5694, 1
    %v5709 = vsel %vm1821, %v1835, %v5708
    %v5710 = vrot.slane %v5695, 1
    %v5711 = vsel %vm1821, %v1840, %v5710
    %v5712 = vrot.slane %v5696, 1
    %v5713 = vsel %vm1821, %v1845, %v5712
    %v5714 = vrot.slane %v5697, 1
    %v5715 = vsel %vm1821, %v1850, %v5714
    %v5728 = vadd.f32 %v5602, %v1826
    %v5729 = vadd.f32 %v5603, %v5705
    %v5730 = vadd.f32 %v5604, %v5704
    %v5731 = vadd.f32 %v5605, %v1831
    %v5732 = vadd.f32 %v5606, %v5707
    %v5733 = vadd.f32 %v5607, %v5706
    %v5734 = vadd.f32 %v5608, %v1836
    %v5735 = vadd.f32 %v5609, %v5709
    %v5736 = vadd.f32 %v5610, %v5708
    %v5737 = vadd.f32 %v5611, %v1841
    %v5738 = vadd.f32 %v5612, %v5711
    %v5739 = vadd.f32 %v5613, %v5710
    %v5740 = vadd.f32 %v5614, %v1846
    %v5741 = vadd.f32 %v5615, %v5713
    %v5742 = vadd.f32 %v5616, %v5712
    %v5743 = vadd.f32 %v5617, %v1851
    %v5744 = vadd.f32 %v5618, %v5715
    %v5745 = vadd.f32 %v5619, %v5714
    %v5746 = vmul.f32 %v557, 0.0075987587
    %v5747 = vmul.f32 %v582, 0.0075987587
    %v5748 = vmul.f32 %v607, 0.0075987587
    %v5749 = vmul.f32 %v632, 0.0075987587
    %v5750 = vmul.f32 %v657, 0.0075987587
    %v5751 = vmul.f32 %v682, 0.0075987587
    %v5758 = vrot.slane %v5746, 1
    %v5759 = vsel %vm1821, %v1927, %v5758
    %v5760 = vrot.slane %v5747, 1
    %v5761 = vsel %vm1821, %v1932, %v5760
    %v5762 = vrot.slane %v5748, 1
    %v5763 = vsel %vm1821, %v1937, %v5762
    %v5764 = vrot.slane %v5749, 1
    %v5765 = vsel %vm1821, %v1942, %v5764
    %v5766 = vrot.slane %v5750, 1
    %v5767 = vsel %vm1821, %v1947, %v5766
    %v5768 = vrot.slane %v5751, 1
    %v5769 = vsel %vm1821, %v1952, %v5768
    %v5782 = vadd.f32 %v5620, %v1928
    %v5783 = vadd.f32 %v5621, %v5759
    %v5784 = vadd.f32 %v5622, %v5758
    %v5785 = vadd.f32 %v5623, %v1933
    %v5786 = vadd.f32 %v5624, %v5761
    %v5787 = vadd.f32 %v5625, %v5760
    %v5788 = vadd.f32 %v5626, %v1938
    %v5789 = vadd.f32 %v5627, %v5763
    %v5790 = vadd.f32 %v5628, %v5762
    %v5791 = vadd.f32 %v5629, %v1943
    %v5792 = vadd.f32 %v5630, %v5765
    %v5793 = vadd.f32 %v5631, %v5764
    %v5794 = vadd.f32 %v5632, %v1948
    %v5795 = vadd.f32 %v5633, %v5767
    %v5796 = vadd.f32 %v5634, %v5766
    %v5797 = vadd.f32 %v5635, %v1953
    %v5798 = vadd.f32 %v5636, %v5769
    %v5799 = vadd.f32 %v5637, %v5768
    %v5800 = vmul.f32 %v892, 0.0075987587
    %v5801 = vmul.f32 %v917, 0.0075987587
    %v5802 = vmul.f32 %v942, 0.0075987587
    %v5803 = vmul.f32 %v967, 0.0075987587
    %v5804 = vmul.f32 %v992, 0.0075987587
    %v5805 = vmul.f32 %v1017, 0.0075987587
    %v5812 = vrot.slane %v5800, 1
    %v5813 = vsel %vm1821, %v2029, %v5812
    %v5814 = vrot.slane %v5801, 1
    %v5815 = vsel %vm1821, %v2034, %v5814
    %v5816 = vrot.slane %v5802, 1
    %v5817 = vsel %vm1821, %v2039, %v5816
    %v5818 = vrot.slane %v5803, 1
    %v5819 = vsel %vm1821, %v2044, %v5818
    %v5820 = vrot.slane %v5804, 1
    %v5821 = vsel %vm1821, %v2049, %v5820
    %v5822 = vrot.slane %v5805, 1
    %v5823 = vsel %vm1821, %v2054, %v5822
    %v5836 = vadd.f32 %v5638, %v2030
    %v5837 = vadd.f32 %v5639, %v5813
    %v5838 = vadd.f32 %v5640, %v5812
    %v5839 = vadd.f32 %v5641, %v2035
    %v5840 = vadd.f32 %v5642, %v5815
    %v5841 = vadd.f32 %v5643, %v5814
    %v5842 = vadd.f32 %v5644, %v2040
    %v5843 = vadd.f32 %v5645, %v5817
    %v5844 = vadd.f32 %v5646, %v5816
    %v5845 = vadd.f32 %v5647, %v2045
    %v5846 = vadd.f32 %v5648, %v5819
    %v5847 = vadd.f32 %v5649, %v5818
    %v5848 = vadd.f32 %v5650, %v2050
    %v5849 = vadd.f32 %v5651, %v5821
    %v5850 = vadd.f32 %v5652, %v5820
    %v5851 = vadd.f32 %v5653, %v2055
    %v5852 = vadd.f32 %v5654, %v5823
    %v5853 = vadd.f32 %v5655, %v5822
    %v5854 = vmul.f32 %v1227, 0.0075987587
    %v5855 = vmul.f32 %v1252, 0.0075987587
    %v5856 = vmul.f32 %v1277, 0.0075987587
    %v5857 = vmul.f32 %v1302, 0.0075987587
    %v5858 = vmul.f32 %v1327, 0.0075987587
    %v5859 = vmul.f32 %v1352, 0.0075987587
    %v5866 = vrot.slane %v5854, 1
    %v5867 = vsel %vm1821, %v2131, %v5866
    %v5868 = vrot.slane %v5855, 1
    %v5869 = vsel %vm1821, %v2136, %v5868
    %v5870 = vrot.slane %v5856, 1
    %v5871 = vsel %vm1821, %v2141, %v5870
    %v5872 = vrot.slane %v5857, 1
    %v5873 = vsel %vm1821, %v2146, %v5872
    %v5874 = vrot.slane %v5858, 1
    %v5875 = vsel %vm1821, %v2151, %v5874
    %v5876 = vrot.slane %v5859, 1
    %v5877 = vsel %vm1821, %v2156, %v5876
    %v5890 = vadd.f32 %v5656, %v2132
    %v5891 = vadd.f32 %v5657, %v5867
    %v5892 = vadd.f32 %v5658, %v5866
    %v5893 = vadd.f32 %v5659, %v2137
    %v5894 = vadd.f32 %v5660, %v5869
    %v5895 = vadd.f32 %v5661, %v5868
    %v5896 = vadd.f32 %v5662, %v2142
    %v5897 = vadd.f32 %v5663, %v5871
    %v5898 = vadd.f32 %v5664, %v5870
    %v5899 = vadd.f32 %v5665, %v2147
    %v5900 = vadd.f32 %v5666, %v5873
    %v5901 = vadd.f32 %v5667, %v5872
    %v5902 = vadd.f32 %v5668, %v2152
    %v5903 = vadd.f32 %v5669, %v5875
    %v5904 = vadd.f32 %v5670, %v5874
    %v5905 = vadd.f32 %v5671, %v2157
    %v5906 = vadd.f32 %v5672, %v5877
    %v5907 = vadd.f32 %v5673, %v5876
    %v5908 = vmul.f32 %v1562, 0.0075987587
    %v5909 = vmul.f32 %v1587, 0.0075987587
    %v5910 = vmul.f32 %v1612, 0.0075987587
    %v5911 = vmul.f32 %v1637, 0.0075987587
    %v5912 = vmul.f32 %v1662, 0.0075987587
    %v5913 = vmul.f32 %v1687, 0.0075987587
    %v5920 = vrot.slane %v5908, 1
    %v5921 = vsel %vm1821, %v2233, %v5920
    %v5922 = vrot.slane %v5909, 1
    %v5923 = vsel %vm1821, %v2238, %v5922
    %v5924 = vrot.slane %v5910, 1
    %v5925 = vsel %vm1821, %v2243, %v5924
    %v5926 = vrot.slane %v5911, 1
    %v5927 = vsel %vm1821, %v2248, %v5926
    %v5928 = vrot.slane %v5912, 1
    %v5929 = vsel %vm1821, %v2253, %v5928
    %v5930 = vrot.slane %v5913, 1
    %v5931 = vsel %vm1821, %v2258, %v5930
    %v5944 = vadd.f32 %v5674, %v2234
    %v5945 = vadd.f32 %v5675, %v5921
    %v5946 = vadd.f32 %v5676, %v5920
    %v5947 = vadd.f32 %v5677, %v2239
    %v5948 = vadd.f32 %v5678, %v5923
    %v5949 = vadd.f32 %v5679, %v5922
    %v5950 = vadd.f32 %v5680, %v2244
    %v5951 = vadd.f32 %v5681, %v5925
    %v5952 = vadd.f32 %v5682, %v5924
    %v5953 = vadd.f32 %v5683, %v2249
    %v5954 = vadd.f32 %v5684, %v5927
    %v5955 = vadd.f32 %v5685, %v5926
    %v5956 = vadd.f32 %v5686, %v2254
    %v5957 = vadd.f32 %v5687, %v5929
    %v5958 = vadd.f32 %v5688, %v5928
    %v5959 = vadd.f32 %v5689, %v2259
    %v5960 = vadd.f32 %v5690, %v5931
    %v5961 = vadd.f32 %v5691, %v5930
    %v5962 = vmul.f32 %v252, 0.0010283804
    %v5963 = vmul.f32 %v257, 0.0010283804
    %v5964 = vmul.f32 %v277, 0.0010283804
    %v5965 = vmul.f32 %v282, 0.0010283804
    %v5966 = vmul.f32 %v302, 0.0010283804
    %v5967 = vmul.f32 %v307, 0.0010283804
    %v5968 = vmul.f32 %v327, 0.0010283804
    %v5969 = vmul.f32 %v332, 0.0010283804
    %v5970 = vmul.f32 %v352, 0.0010283804
    %v5971 = vmul.f32 %v357, 0.0010283804
    %v5972 = vmul.f32 %v377, 0.0010283804
    %v5973 = vmul.f32 %v382, 0.0010283804
    %v5998 = vrot.slane %v1696, 2
    %v5999 = vrot.slane %v1697, 2
    %v6000 = vsel %vm2344, %v5998, %v5999
    %v6001 = vrot.slane %v5962, 2
    %v6002 = vsel %vm2344, %v5999, %v6001
    %v6003 = vrot.slane %v5963, 2
    %v6004 = vsel %vm2344, %v6001, %v6003
    %v6005 = vrot.slane %v1699, 2
    %v6006 = vrot.slane %v1700, 2
    %v6007 = vsel %vm2344, %v6005, %v6006
    %v6008 = vrot.slane %v5964, 2
    %v6009 = vsel %vm2344, %v6006, %v6008
    %v6010 = vrot.slane %v5965, 2
    %v6011 = vsel %vm2344, %v6008, %v6010
    %v6012 = vrot.slane %v1702, 2
    %v6013 = vrot.slane %v1703, 2
    %v6014 = vsel %vm2344, %v6012, %v6013
    %v6015 = vrot.slane %v5966, 2
    %v6016 = vsel %vm2344, %v6013, %v6015
    %v6017 = vrot.slane %v5967, 2
    %v6018 = vsel %vm2344, %v6015, %v6017
    %v6019 = vrot.slane %v1705, 2
    %v6020 = vrot.slane %v1706, 2
    %v6021 = vsel %vm2344, %v6019, %v6020
    %v6022 = vrot.slane %v5968, 2
    %v6023 = vsel %vm2344, %v6020, %v6022
    %v6024 = vrot.slane %v5969, 2
    %v6025 = vsel %vm2344, %v6022, %v6024
    %v6026 = vrot.slane %v1708, 2
    %v6027 = vrot.slane %v1709, 2
    %v6028 = vsel %vm2344, %v6026, %v6027
    %v6029 = vrot.slane %v5970, 2
    %v6030 = vsel %vm2344, %v6027, %v6029
    %v6031 = vrot.slane %v5971, 2
    %v6032 = vsel %vm2344, %v6029, %v6031
    %v6033 = vrot.slane %v1711, 2
    %v6034 = vrot.slane %v1712, 2
    %v6035 = vsel %vm2344, %v6033, %v6034
    %v6036 = vrot.slane %v5972, 2
    %v6037 = vsel %vm2344, %v6034, %v6036
    %v6038 = vrot.slane %v5973, 2
    %v6039 = vsel %vm2344, %v6036, %v6038
    %v6058 = vadd.f32 %v5728, %v6000
    %v6059 = vadd.f32 %v5729, %v6002
    %v6060 = vadd.f32 %v5730, %v6004
    %v6061 = vadd.f32 %v5731, %v6007
    %v6062 = vadd.f32 %v5732, %v6009
    %v6063 = vadd.f32 %v5733, %v6011
    %v6064 = vadd.f32 %v5734, %v6014
    %v6065 = vadd.f32 %v5735, %v6016
    %v6066 = vadd.f32 %v5736, %v6018
    %v6067 = vadd.f32 %v5737, %v6021
    %v6068 = vadd.f32 %v5738, %v6023
    %v6069 = vadd.f32 %v5739, %v6025
    %v6070 = vadd.f32 %v5740, %v6028
    %v6071 = vadd.f32 %v5741, %v6030
    %v6072 = vadd.f32 %v5742, %v6032
    %v6073 = vadd.f32 %v5743, %v6035
    %v6074 = vadd.f32 %v5744, %v6037
    %v6075 = vadd.f32 %v5745, %v6039
    %v6076 = vmul.f32 %v557, 0.0010283804
    %v6077 = vmul.f32 %v562, 0.0010283804
    %v6078 = vmul.f32 %v582, 0.0010283804
    %v6079 = vmul.f32 %v587, 0.0010283804
    %v6080 = vmul.f32 %v607, 0.0010283804
    %v6081 = vmul.f32 %v612, 0.0010283804
    %v6082 = vmul.f32 %v632, 0.0010283804
    %v6083 = vmul.f32 %v637, 0.0010283804
    %v6084 = vmul.f32 %v657, 0.0010283804
    %v6085 = vmul.f32 %v662, 0.0010283804
    %v6086 = vmul.f32 %v682, 0.0010283804
    %v6087 = vmul.f32 %v687, 0.0010283804
    %v6112 = vrot.slane %v1714, 2
    %v6113 = vrot.slane %v1715, 2
    %v6114 = vsel %vm2344, %v6112, %v6113
    %v6115 = vrot.slane %v6076, 2
    %v6116 = vsel %vm2344, %v6113, %v6115
    %v6117 = vrot.slane %v6077, 2
    %v6118 = vsel %vm2344, %v6115, %v6117
    %v6119 = vrot.slane %v1717, 2
    %v6120 = vrot.slane %v1718, 2
    %v6121 = vsel %vm2344, %v6119, %v6120
    %v6122 = vrot.slane %v6078, 2
    %v6123 = vsel %vm2344, %v6120, %v6122
    %v6124 = vrot.slane %v6079, 2
    %v6125 = vsel %vm2344, %v6122, %v6124
    %v6126 = vrot.slane %v1720, 2
    %v6127 = vrot.slane %v1721, 2
    %v6128 = vsel %vm2344, %v6126, %v6127
    %v6129 = vrot.slane %v6080, 2
    %v6130 = vsel %vm2344, %v6127, %v6129
    %v6131 = vrot.slane %v6081, 2
    %v6132 = vsel %vm2344, %v6129, %v6131
    %v6133 = vrot.slane %v1723, 2
    %v6134 = vrot.slane %v1724, 2
    %v6135 = vsel %vm2344, %v6133, %v6134
    %v6136 = vrot.slane %v6082, 2
    %v6137 = vsel %vm2344, %v6134, %v6136
    %v6138 = vrot.slane %v6083, 2
    %v6139 = vsel %vm2344, %v6136, %v6138
    %v6140 = vrot.slane %v1726, 2
    %v6141 = vrot.slane %v1727, 2
    %v6142 = vsel %vm2344, %v6140, %v6141
    %v6143 = vrot.slane %v6084, 2
    %v6144 = vsel %vm2344, %v6141, %v6143
    %v6145 = vrot.slane %v6085, 2
    %v6146 = vsel %vm2344, %v6143, %v6145
    %v6147 = vrot.slane %v1729, 2
    %v6148 = vrot.slane %v1730, 2
    %v6149 = vsel %vm2344, %v6147, %v6148
    %v6150 = vrot.slane %v6086, 2
    %v6151 = vsel %vm2344, %v6148, %v6150
    %v6152 = vrot.slane %v6087, 2
    %v6153 = vsel %vm2344, %v6150, %v6152
    %v6172 = vadd.f32 %v5782, %v6114
    %v6173 = vadd.f32 %v5783, %v6116
    %v6174 = vadd.f32 %v5784, %v6118
    %v6175 = vadd.f32 %v5785, %v6121
    %v6176 = vadd.f32 %v5786, %v6123
    %v6177 = vadd.f32 %v5787, %v6125
    %v6178 = vadd.f32 %v5788, %v6128
    %v6179 = vadd.f32 %v5789, %v6130
    %v6180 = vadd.f32 %v5790, %v6132
    %v6181 = vadd.f32 %v5791, %v6135
    %v6182 = vadd.f32 %v5792, %v6137
    %v6183 = vadd.f32 %v5793, %v6139
    %v6184 = vadd.f32 %v5794, %v6142
    %v6185 = vadd.f32 %v5795, %v6144
    %v6186 = vadd.f32 %v5796, %v6146
    %v6187 = vadd.f32 %v5797, %v6149
    %v6188 = vadd.f32 %v5798, %v6151
    %v6189 = vadd.f32 %v5799, %v6153
    %v6190 = vmul.f32 %v892, 0.0010283804
    %v6191 = vmul.f32 %v897, 0.0010283804
    %v6192 = vmul.f32 %v917, 0.0010283804
    %v6193 = vmul.f32 %v922, 0.0010283804
    %v6194 = vmul.f32 %v942, 0.0010283804
    %v6195 = vmul.f32 %v947, 0.0010283804
    %v6196 = vmul.f32 %v967, 0.0010283804
    %v6197 = vmul.f32 %v972, 0.0010283804
    %v6198 = vmul.f32 %v992, 0.0010283804
    %v6199 = vmul.f32 %v997, 0.0010283804
    %v6200 = vmul.f32 %v1017, 0.0010283804
    %v6201 = vmul.f32 %v1022, 0.0010283804
    %v6226 = vrot.slane %v1732, 2
    %v6227 = vrot.slane %v1733, 2
    %v6228 = vsel %vm2344, %v6226, %v6227
    %v6229 = vrot.slane %v6190, 2
    %v6230 = vsel %vm2344, %v6227, %v6229
    %v6231 = vrot.slane %v6191, 2
    %v6232 = vsel %vm2344, %v6229, %v6231
    %v6233 = vrot.slane %v1735, 2
    %v6234 = vrot.slane %v1736, 2
    %v6235 = vsel %vm2344, %v6233, %v6234
    %v6236 = vrot.slane %v6192, 2
    %v6237 = vsel %vm2344, %v6234, %v6236
    %v6238 = vrot.slane %v6193, 2
    %v6239 = vsel %vm2344, %v6236, %v6238
    %v6240 = vrot.slane %v1738, 2
    %v6241 = vrot.slane %v1739, 2
    %v6242 = vsel %vm2344, %v6240, %v6241
    %v6243 = vrot.slane %v6194, 2
    %v6244 = vsel %vm2344, %v6241, %v6243
    %v6245 = vrot.slane %v6195, 2
    %v6246 = vsel %vm2344, %v6243, %v6245
    %v6247 = vrot.slane %v1741, 2
    %v6248 = vrot.slane %v1742, 2
    %v6249 = vsel %vm2344, %v6247, %v6248
    %v6250 = vrot.slane %v6196, 2
    %v6251 = vsel %vm2344, %v6248, %v6250
    %v6252 = vrot.slane %v6197, 2
    %v6253 = vsel %vm2344, %v6250, %v6252
    %v6254 = vrot.slane %v1744, 2
    %v6255 = vrot.slane %v1745, 2
    %v6256 = vsel %vm2344, %v6254, %v6255
    %v6257 = vrot.slane %v6198, 2
    %v6258 = vsel %vm2344, %v6255, %v6257
    %v6259 = vrot.slane %v6199, 2
    %v6260 = vsel %vm2344, %v6257, %v6259
    %v6261 = vrot.slane %v1747, 2
    %v6262 = vrot.slane %v1748, 2
    %v6263 = vsel %vm2344, %v6261, %v6262
    %v6264 = vrot.slane %v6200, 2
    %v6265 = vsel %vm2344, %v6262, %v6264
    %v6266 = vrot.slane %v6201, 2
    %v6267 = vsel %vm2344, %v6264, %v6266
    %v6286 = vadd.f32 %v5836, %v6228
    %v6287 = vadd.f32 %v5837, %v6230
    %v6288 = vadd.f32 %v5838, %v6232
    %v6289 = vadd.f32 %v5839, %v6235
    %v6290 = vadd.f32 %v5840, %v6237
    %v6291 = vadd.f32 %v5841, %v6239
    %v6292 = vadd.f32 %v5842, %v6242
    %v6293 = vadd.f32 %v5843, %v6244
    %v6294 = vadd.f32 %v5844, %v6246
    %v6295 = vadd.f32 %v5845, %v6249
    %v6296 = vadd.f32 %v5846, %v6251
    %v6297 = vadd.f32 %v5847, %v6253
    %v6298 = vadd.f32 %v5848, %v6256
    %v6299 = vadd.f32 %v5849, %v6258
    %v6300 = vadd.f32 %v5850, %v6260
    %v6301 = vadd.f32 %v5851, %v6263
    %v6302 = vadd.f32 %v5852, %v6265
    %v6303 = vadd.f32 %v5853, %v6267
    %v6304 = vmul.f32 %v1227, 0.0010283804
    %v6305 = vmul.f32 %v1232, 0.0010283804
    %v6306 = vmul.f32 %v1252, 0.0010283804
    %v6307 = vmul.f32 %v1257, 0.0010283804
    %v6308 = vmul.f32 %v1277, 0.0010283804
    %v6309 = vmul.f32 %v1282, 0.0010283804
    %v6310 = vmul.f32 %v1302, 0.0010283804
    %v6311 = vmul.f32 %v1307, 0.0010283804
    %v6312 = vmul.f32 %v1327, 0.0010283804
    %v6313 = vmul.f32 %v1332, 0.0010283804
    %v6314 = vmul.f32 %v1352, 0.0010283804
    %v6315 = vmul.f32 %v1357, 0.0010283804
    %v6340 = vrot.slane %v1750, 2
    %v6341 = vrot.slane %v1751, 2
    %v6342 = vsel %vm2344, %v6340, %v6341
    %v6343 = vrot.slane %v6304, 2
    %v6344 = vsel %vm2344, %v6341, %v6343
    %v6345 = vrot.slane %v6305, 2
    %v6346 = vsel %vm2344, %v6343, %v6345
    %v6347 = vrot.slane %v1753, 2
    %v6348 = vrot.slane %v1754, 2
    %v6349 = vsel %vm2344, %v6347, %v6348
    %v6350 = vrot.slane %v6306, 2
    %v6351 = vsel %vm2344, %v6348, %v6350
    %v6352 = vrot.slane %v6307, 2
    %v6353 = vsel %vm2344, %v6350, %v6352
    %v6354 = vrot.slane %v1756, 2
    %v6355 = vrot.slane %v1757, 2
    %v6356 = vsel %vm2344, %v6354, %v6355
    %v6357 = vrot.slane %v6308, 2
    %v6358 = vsel %vm2344, %v6355, %v6357
    %v6359 = vrot.slane %v6309, 2
    %v6360 = vsel %vm2344, %v6357, %v6359
    %v6361 = vrot.slane %v1759, 2
    %v6362 = vrot.slane %v1760, 2
    %v6363 = vsel %vm2344, %v6361, %v6362
    %v6364 = vrot.slane %v6310, 2
    %v6365 = vsel %vm2344, %v6362, %v6364
    %v6366 = vrot.slane %v6311, 2
    %v6367 = vsel %vm2344, %v6364, %v6366
    %v6368 = vrot.slane %v1762, 2
    %v6369 = vrot.slane %v1763, 2
    %v6370 = vsel %vm2344, %v6368, %v6369
    %v6371 = vrot.slane %v6312, 2
    %v6372 = vsel %vm2344, %v6369, %v6371
    %v6373 = vrot.slane %v6313, 2
    %v6374 = vsel %vm2344, %v6371, %v6373
    %v6375 = vrot.slane %v1765, 2
    %v6376 = vrot.slane %v1766, 2
    %v6377 = vsel %vm2344, %v6375, %v6376
    %v6378 = vrot.slane %v6314, 2
    %v6379 = vsel %vm2344, %v6376, %v6378
    %v6380 = vrot.slane %v6315, 2
    %v6381 = vsel %vm2344, %v6378, %v6380
    %v6400 = vadd.f32 %v5890, %v6342
    %v6401 = vadd.f32 %v5891, %v6344
    %v6402 = vadd.f32 %v5892, %v6346
    %v6403 = vadd.f32 %v5893, %v6349
    %v6404 = vadd.f32 %v5894, %v6351
    %v6405 = vadd.f32 %v5895, %v6353
    %v6406 = vadd.f32 %v5896, %v6356
    %v6407 = vadd.f32 %v5897, %v6358
    %v6408 = vadd.f32 %v5898, %v6360
    %v6409 = vadd.f32 %v5899, %v6363
    %v6410 = vadd.f32 %v5900, %v6365
    %v6411 = vadd.f32 %v5901, %v6367
    %v6412 = vadd.f32 %v5902, %v6370
    %v6413 = vadd.f32 %v5903, %v6372
    %v6414 = vadd.f32 %v5904, %v6374
    %v6415 = vadd.f32 %v5905, %v6377
    %v6416 = vadd.f32 %v5906, %v6379
    %v6417 = vadd.f32 %v5907, %v6381
    %v6418 = vmul.f32 %v1562, 0.0010283804
    %v6419 = vmul.f32 %v1567, 0.0010283804
    %v6420 = vmul.f32 %v1587, 0.0010283804
    %v6421 = vmul.f32 %v1592, 0.0010283804
    %v6422 = vmul.f32 %v1612, 0.0010283804
    %v6423 = vmul.f32 %v1617, 0.0010283804
    %v6424 = vmul.f32 %v1637, 0.0010283804
    %v6425 = vmul.f32 %v1642, 0.0010283804
    %v6426 = vmul.f32 %v1662, 0.0010283804
    %v6427 = vmul.f32 %v1667, 0.0010283804
    %v6428 = vmul.f32 %v1687, 0.0010283804
    %v6429 = vmul.f32 %v1692, 0.0010283804
    %v6454 = vrot.slane %v1768, 2
    %v6455 = vrot.slane %v1769, 2
    %v6456 = vsel %vm2344, %v6454, %v6455
    %v6457 = vrot.slane %v6418, 2
    %v6458 = vsel %vm2344, %v6455, %v6457
    %v6459 = vrot.slane %v6419, 2
    %v6460 = vsel %vm2344, %v6457, %v6459
    %v6461 = vrot.slane %v1771, 2
    %v6462 = vrot.slane %v1772, 2
    %v6463 = vsel %vm2344, %v6461, %v6462
    %v6464 = vrot.slane %v6420, 2
    %v6465 = vsel %vm2344, %v6462, %v6464
    %v6466 = vrot.slane %v6421, 2
    %v6467 = vsel %vm2344, %v6464, %v6466
    %v6468 = vrot.slane %v1774, 2
    %v6469 = vrot.slane %v1775, 2
    %v6470 = vsel %vm2344, %v6468, %v6469
    %v6471 = vrot.slane %v6422, 2
    %v6472 = vsel %vm2344, %v6469, %v6471
    %v6473 = vrot.slane %v6423, 2
    %v6474 = vsel %vm2344, %v6471, %v6473
    %v6475 = vrot.slane %v1777, 2
    %v6476 = vrot.slane %v1778, 2
    %v6477 = vsel %vm2344, %v6475, %v6476
    %v6478 = vrot.slane %v6424, 2
    %v6479 = vsel %vm2344, %v6476, %v6478
    %v6480 = vrot.slane %v6425, 2
    %v6481 = vsel %vm2344, %v6478, %v6480
    %v6482 = vrot.slane %v1780, 2
    %v6483 = vrot.slane %v1781, 2
    %v6484 = vsel %vm2344, %v6482, %v6483
    %v6485 = vrot.slane %v6426, 2
    %v6486 = vsel %vm2344, %v6483, %v6485
    %v6487 = vrot.slane %v6427, 2
    %v6488 = vsel %vm2344, %v6485, %v6487
    %v6489 = vrot.slane %v1783, 2
    %v6490 = vrot.slane %v1784, 2
    %v6491 = vsel %vm2344, %v6489, %v6490
    %v6492 = vrot.slane %v6428, 2
    %v6493 = vsel %vm2344, %v6490, %v6492
    %v6494 = vrot.slane %v6429, 2
    %v6495 = vsel %vm2344, %v6492, %v6494
    %v6514 = vadd.f32 %v5944, %v6456
    %v6515 = vadd.f32 %v5945, %v6458
    %v6516 = vadd.f32 %v5946, %v6460
    %v6517 = vadd.f32 %v5947, %v6463
    %v6518 = vadd.f32 %v5948, %v6465
    %v6519 = vadd.f32 %v5949, %v6467
    %v6520 = vadd.f32 %v5950, %v6470
    %v6521 = vadd.f32 %v5951, %v6472
    %v6522 = vadd.f32 %v5952, %v6474
    %v6523 = vadd.f32 %v5953, %v6477
    %v6524 = vadd.f32 %v5954, %v6479
    %v6525 = vadd.f32 %v5955, %v6481
    %v6526 = vadd.f32 %v5956, %v6484
    %v6527 = vadd.f32 %v5957, %v6486
    %v6528 = vadd.f32 %v5958, %v6488
    %v6529 = vadd.f32 %v5959, %v6491
    %v6530 = vadd.f32 %v5960, %v6493
    %v6531 = vadd.f32 %v5961, %v6495
    %v6532 = vmul.f32 %v6058, %v6058
    %v6533 = vmul.f32 %v6059, %v6059
    %v6534 = vmul.f32 %v6060, %v6060
    %v6535 = vmul.f32 %v6061, %v6061
    %v6536 = vmul.f32 %v6062, %v6062
    %v6537 = vmul.f32 %v6063, %v6063
    %v6538 = vmul.f32 %v6064, %v6064
    %v6539 = vmul.f32 %v6065, %v6065
    %v6540 = vmul.f32 %v6066, %v6066
    %v6541 = vmul.f32 %v6067, %v6067
    %v6542 = vmul.f32 %v6068, %v6068
    %v6543 = vmul.f32 %v6069, %v6069
    %v6544 = vmul.f32 %v6070, %v6070
    %v6545 = vmul.f32 %v6071, %v6071
    %v6546 = vmul.f32 %v6072, %v6072
    %v6547 = vmul.f32 %v6073, %v6073
    %v6548 = vmul.f32 %v6074, %v6074
    %v6549 = vmul.f32 %v6075, %v6075
    %v6550 = vmul.f32 %v6172, %v6172
    %v6551 = vmul.f32 %v6173, %v6173
    %v6552 = vmul.f32 %v6174, %v6174
    %v6553 = vmul.f32 %v6175, %v6175
    %v6554 = vmul.f32 %v6176, %v6176
    %v6555 = vmul.f32 %v6177, %v6177
    %v6556 = vmul.f32 %v6178, %v6178
    %v6557 = vmul.f32 %v6179, %v6179
    %v6558 = vmul.f32 %v6180, %v6180
    %v6559 = vmul.f32 %v6181, %v6181
    %v6560 = vmul.f32 %v6182, %v6182
    %v6561 = vmul.f32 %v6183, %v6183
    %v6562 = vmul.f32 %v6184, %v6184
    %v6563 = vmul.f32 %v6185, %v6185
    %v6564 = vmul.f32 %v6186, %v6186
    %v6565 = vmul.f32 %v6187, %v6187
    %v6566 = vmul.f32 %v6188, %v6188
    %v6567 = vmul.f32 %v6189, %v6189
    %v6568 = vmul.f32 %v6058, %v6172
    %v6569 = vmul.f32 %v6059, %v6173
    %v6570 = vmul.f32 %v6060, %v6174
    %v6571 = vmul.f32 %v6061, %v6175
    %v6572 = vmul.f32 %v6062, %v6176
    %v6573 = vmul.f32 %v6063, %v6177
    %v6574 = vmul.f32 %v6064, %v6178
    %v6575 = vmul.f32 %v6065, %v6179
    %v6576 = vmul.f32 %v6066, %v6180
    %v6577 = vmul.f32 %v6067, %v6181
    %v6578 = vmul.f32 %v6068, %v6182
    %v6579 = vmul.f32 %v6069, %v6183
    %v6580 = vmul.f32 %v6070, %v6184
    %v6581 = vmul.f32 %v6071, %v6185
    %v6582 = vmul.f32 %v6072, %v6186
    %v6583 = vmul.f32 %v6073, %v6187
    %v6584 = vmul.f32 %v6074, %v6188
    %v6585 = vmul.f32 %v6075, %v6189
    %v6586 = vsub.f32 %v6286, %v6532
    %v6587 = vsub.f32 %v6287, %v6533
    %v6588 = vsub.f32 %v6288, %v6534
    %v6589 = vsub.f32 %v6289, %v6535
    %v6590 = vsub.f32 %v6290, %v6536
    %v6591 = vsub.f32 %v6291, %v6537
    %v6592 = vsub.f32 %v6292, %v6538
    %v6593 = vsub.f32 %v6293, %v6539
    %v6594 = vsub.f32 %v6294, %v6540
    %v6595 = vsub.f32 %v6295, %v6541
    %v6596 = vsub.f32 %v6296, %v6542
    %v6597 = vsub.f32 %v6297, %v6543
    %v6598 = vsub.f32 %v6298, %v6544
    %v6599 = vsub.f32 %v6299, %v6545
    %v6600 = vsub.f32 %v6300, %v6546
    %v6601 = vsub.f32 %v6301, %v6547
    %v6602 = vsub.f32 %v6302, %v6548
    %v6603 = vsub.f32 %v6303, %v6549
    %v6604 = vsub.f32 %v6400, %v6550
    %v6605 = vsub.f32 %v6401, %v6551
    %v6606 = vsub.f32 %v6402, %v6552
    %v6607 = vsub.f32 %v6403, %v6553
    %v6608 = vsub.f32 %v6404, %v6554
    %v6609 = vsub.f32 %v6405, %v6555
    %v6610 = vsub.f32 %v6406, %v6556
    %v6611 = vsub.f32 %v6407, %v6557
    %v6612 = vsub.f32 %v6408, %v6558
    %v6613 = vsub.f32 %v6409, %v6559
    %v6614 = vsub.f32 %v6410, %v6560
    %v6615 = vsub.f32 %v6411, %v6561
    %v6616 = vsub.f32 %v6412, %v6562
    %v6617 = vsub.f32 %v6413, %v6563
    %v6618 = vsub.f32 %v6414, %v6564
    %v6619 = vsub.f32 %v6415, %v6565
    %v6620 = vsub.f32 %v6416, %v6566
    %v6621 = vsub.f32 %v6417, %v6567
    %v6622 = vsub.f32 %v6514, %v6568
    %v6623 = vsub.f32 %v6515, %v6569
    %v6624 = vsub.f32 %v6516, %v6570
    %v6625 = vsub.f32 %v6517, %v6571
    %v6626 = vsub.f32 %v6518, %v6572
    %v6627 = vsub.f32 %v6519, %v6573
    %v6628 = vsub.f32 %v6520, %v6574
    %v6629 = vsub.f32 %v6521, %v6575
    %v6630 = vsub.f32 %v6522, %v6576
    %v6631 = vsub.f32 %v6523, %v6577
    %v6632 = vsub.f32 %v6524, %v6578
    %v6633 = vsub.f32 %v6525, %v6579
    %v6634 = vsub.f32 %v6526, %v6580
    %v6635 = vsub.f32 %v6527, %v6581
    %v6636 = vsub.f32 %v6528, %v6582
    %v6637 = vsub.f32 %v6529, %v6583
    %v6638 = vsub.f32 %v6530, %v6584
    %v6639 = vsub.f32 %v6531, %v6585
    %v6640 = vmul.f32 %v6622, 2.0
    %v6641 = vmul.f32 %v6623, 2.0
    %v6642 = vmul.f32 %v6624, 2.0
    %v6643 = vmul.f32 %v6625, 2.0
    %v6644 = vmul.f32 %v6626, 2.0
    %v6645 = vmul.f32 %v6627, 2.0
    %v6646 = vmul.f32 %v6628, 2.0
    %v6647 = vmul.f32 %v6629, 2.0
    %v6648 = vmul.f32 %v6630, 2.0
    %v6649 = vmul.f32 %v6631, 2.0
    %v6650 = vmul.f32 %v6632, 2.0
    %v6651 = vmul.f32 %v6633, 2.0
    %v6652 = vmul.f32 %v6634, 2.0
    %v6653 = vmul.f32 %v6635, 2.0
    %v6654 = vmul.f32 %v6636, 2.0
    %v6655 = vmul.f32 %v6637, 2.0
    %v6656 = vmul.f32 %v6638, 2.0
    %v6657 = vmul.f32 %v6639, 2.0
    %v6658 = vadd.f32 %v6640, 58.5225
    %v6659 = vadd.f32 %v6641, 58.5225
    %v6660 = vadd.f32 %v6642, 58.5225
    %v6661 = vadd.f32 %v6643, 58.5225
    %v6662 = vadd.f32 %v6644, 58.5225
    %v6663 = vadd.f32 %v6645, 58.5225
    %v6664 = vadd.f32 %v6646, 58.5225
    %v6665 = vadd.f32 %v6647, 58.5225
    %v6666 = vadd.f32 %v6648, 58.5225
    %v6667 = vadd.f32 %v6649, 58.5225
    %v6668 = vadd.f32 %v6650, 58.5225
    %v6669 = vadd.f32 %v6651, 58.5225
    %v6670 = vadd.f32 %v6652, 58.5225
    %v6671 = vadd.f32 %v6653, 58.5225
    %v6672 = vadd.f32 %v6654, 58.5225
    %v6673 = vadd.f32 %v6655, 58.5225
    %v6674 = vadd.f32 %v6656, 58.5225
    %v6675 = vadd.f32 %v6657, 58.5225
    %v6676 = vadd.f32 %v6586, %v6604
    %v6677 = vadd.f32 %v6587, %v6605
    %v6678 = vadd.f32 %v6588, %v6606
    %v6679 = vadd.f32 %v6589, %v6607
    %v6680 = vadd.f32 %v6590, %v6608
    %v6681 = vadd.f32 %v6591, %v6609
    %v6682 = vadd.f32 %v6592, %v6610
    %v6683 = vadd.f32 %v6593, %v6611
    %v6684 = vadd.f32 %v6594, %v6612
    %v6685 = vadd.f32 %v6595, %v6613
    %v6686 = vadd.f32 %v6596, %v6614
    %v6687 = vadd.f32 %v6597, %v6615
    %v6688 = vadd.f32 %v6598, %v6616
    %v6689 = vadd.f32 %v6599, %v6617
    %v6690 = vadd.f32 %v6600, %v6618
    %v6691 = vadd.f32 %v6601, %v6619
    %v6692 = vadd.f32 %v6602, %v6620
    %v6693 = vadd.f32 %v6603, %v6621
    %v6694 = vadd.f32 %v6676, 58.5225
    %v6695 = vadd.f32 %v6677, 58.5225
    %v6696 = vadd.f32 %v6678, 58.5225
    %v6697 = vadd.f32 %v6679, 58.5225
    %v6698 = vadd.f32 %v6680, 58.5225
    %v6699 = vadd.f32 %v6681, 58.5225
    %v6700 = vadd.f32 %v6682, 58.5225
    %v6701 = vadd.f32 %v6683, 58.5225
    %v6702 = vadd.f32 %v6684, 58.5225
    %v6703 = vadd.f32 %v6685, 58.5225
    %v6704 = vadd.f32 %v6686, 58.5225
    %v6705 = vadd.f32 %v6687, 58.5225
    %v6706 = vadd.f32 %v6688, 58.5225
    %v6707 = vadd.f32 %v6689, 58.5225
    %v6708 = vadd.f32 %v6690, 58.5225
    %v6709 = vadd.f32 %v6691, 58.5225
    %v6710 = vadd.f32 %v6692, 58.5225
    %v6711 = vadd.f32 %v6693, 58.5225
    %v6712 = vrcp.pop %v6694
    %v6713 = vmul.f32 %v6658, %v6712
    %v6714 = vrcp.pop %v6695
    %v6715 = vmul.f32 %v6659, %v6714
    %v6716 = vrcp.pop %v6696
    %v6717 = vmul.f32 %v6660, %v6716
    %v6718 = vrcp.pop %v6697
    %v6719 = vmul.f32 %v6661, %v6718
    %v6720 = vrcp.pop %v6698
    %v6721 = vmul.f32 %v6662, %v6720
    %v6722 = vrcp.pop %v6699
    %v6723 = vmul.f32 %v6663, %v6722
    %v6724 = vrcp.pop %v6700
    %v6725 = vmul.f32 %v6664, %v6724
    %v6726 = vrcp.pop %v6701
    %v6727 = vmul.f32 %v6665, %v6726
    %v6728 = vrcp.pop %v6702
    %v6729 = vmul.f32 %v6666, %v6728
    %v6730 = vrcp.pop %v6703
    %v6731 = vmul.f32 %v6667, %v6730
    %v6732 = vrcp.pop %v6704
    %v6733 = vmul.f32 %v6668, %v6732
    %v6734 = vrcp.pop %v6705
    %v6735 = vmul.f32 %v6669, %v6734
    %v6736 = vrcp.pop %v6706
    %v6737 = vmul.f32 %v6670, %v6736
    %v6738 = vrcp.pop %v6707
    %v6739 = vmul.f32 %v6671, %v6738
    %v6740 = vrcp.pop %v6708
    %v6741 = vmul.f32 %v6672, %v6740
    %v6742 = vrcp.pop %v6709
    %v6743 = vmul.f32 %v6673, %v6742
    %v6744 = vrcp.pop %v6710
    %v6745 = vmul.f32 %v6674, %v6744
    %v6746 = vrcp.pop %v6711
    %v6747 = vmul.f32 %v6675, %v6746
    %vm6748 = vcmask 179200
    %v6749 = vsel %vm6748, %v6713, 0.0
    %6750 = vadd.xlane.f32.xlu0 %v6749
    %v6751 = vpop.xlane.xlu0 %6750
    %v6752 = vsel %vm6748, %v6715, 0.0
    %6753 = vadd.xlane.f32.xlu0 %v6752
    %v6754 = vpop.xlane.xlu0 %6753
    %vm6755 = vcmask 178176
    %v6756 = vsel %vm6755, %v6717, 0.0
    %6757 = vadd.xlane.f32.xlu0 %v6756
    %v6758 = vpop.xlane.xlu0 %6757
    %v6759 = vsel %vm6748, %v6719, 0.0
    %6760 = vadd.xlane.f32.xlu0 %v6759
    %v6761 = vpop.xlane.xlu0 %6760
    %v6762 = vsel %vm6748, %v6721, 0.0
    %6763 = vadd.xlane.f32.xlu0 %v6762
    %v6764 = vpop.xlane.xlu0 %6763
    %v6765 = vsel %vm6755, %v6723, 0.0
    %6766 = vadd.xlane.f32.xlu0 %v6765
    %v6767 = vpop.xlane.xlu0 %6766
    %v6768 = vsel %vm6748, %v6725, 0.0
    %6769 = vadd.xlane.f32.xlu0 %v6768
    %v6770 = vpop.xlane.xlu0 %6769
    %v6771 = vsel %vm6748, %v6727, 0.0
    %6772 = vadd.xlane.f32.xlu0 %v6771
    %v6773 = vpop.xlane.xlu0 %6772
    %v6774 = vsel %vm6755, %v6729, 0.0
    %6775 = vadd.xlane.f32.xlu0 %v6774
    %v6776 = vpop.xlane.xlu0 %6775
    %v6777 = vsel %vm6748, %v6731, 0.0
    %6778 = vadd.xlane.f32.xlu0 %v6777
    %v6779 = vpop.xlane.xlu0 %6778
    %v6780 = vsel %vm6748, %v6733, 0.0
    %6781 = vadd.xlane.f32.xlu0 %v6780
    %v6782 = vpop.xlane.xlu0 %6781
    %v6783 = vsel %vm6755, %v6735, 0.0
    %6784 = vadd.xlane.f32.xlu0 %v6783
    %v6785 = vpop.xlane.xlu0 %6784
    %v6786 = vsel %vm6748, %v6737, 0.0
    %6787 = vadd.xlane.f32.xlu0 %v6786
    %v6788 = vpop.xlane.xlu0 %6787
    %v6789 = vsel %vm6748, %v6739, 0.0
    %6790 = vadd.xlane.f32.xlu0 %v6789
    %v6791 = vpop.xlane.xlu0 %6790
    %v6792 = vsel %vm6755, %v6741, 0.0
    %6793 = vadd.xlane.f32.xlu0 %v6792
    %v6794 = vpop.xlane.xlu0 %6793
    %v6795 = vsel %vm6748, %v6743, 0.0
    %6796 = vadd.xlane.f32.xlu0 %v6795
    %v6797 = vpop.xlane.xlu0 %6796
    %v6798 = vsel %vm6748, %v6745, 0.0
    %6799 = vadd.xlane.f32.xlu0 %v6798
    %v6800 = vpop.xlane.xlu0 %6799
    %v6801 = vsel %vm6755, %v6747, 0.0
    %6802 = vadd.xlane.f32.xlu0 %v6801
    %v6803 = vpop.xlane.xlu0 %6802
    %v6822 = vlaneseq
    %v6823 = vand.u32 %v6822, 127
    %v6824 = vlaneseq
    %v6825 = vshrl.u32 %v6824, 7
    %v6826 = vsub.s32 %v6823, %v6825
    %v6827 = vrot.slane %v6751, %v6826
    %v6828 = vadd.s32 %v6823, 4294967288
    %v6829 = vlaneseq
    %v6830 = vshrl.u32 %v6829, 7
    %v6831 = vsub.s32 %v6828, %v6830
    %v6832 = vrot.slane %v6754, %v6831
    %vm6833 = vcmask 130112
    %v6834 = vsel %vm6833, %v6832, %v6827
    %v6835 = vadd.s32 %v6823, 4294967280
    %v6836 = vlaneseq
    %v6837 = vshrl.u32 %v6836, 7
    %v6838 = vsub.s32 %v6835, %v6837
    %v6839 = vrot.slane %v6758, %v6838
    %vm6840 = vcmask 195712
    %v6841 = vsel %vm6840, %v6839, %v6834
    %v6842 = vlaneseq
    %v6843 = vshrl.u32 %v6842, 7
    %v6844 = vsub.s32 %v6823, %v6843
    %v6845 = vrot.slane %v6761, %v6844
    %v6846 = vlaneseq
    %v6847 = vshrl.u32 %v6846, 7
    %v6848 = vsub.s32 %v6828, %v6847
    %v6849 = vrot.slane %v6764, %v6848
    %v6850 = vsel %vm6833, %v6849, %v6845
    %v6851 = vlaneseq
    %v6852 = vshrl.u32 %v6851, 7
    %v6853 = vsub.s32 %v6835, %v6852
    %v6854 = vrot.slane %v6767, %v6853
    %v6855 = vsel %vm6840, %v6854, %v6850
    %v6856 = vlaneseq
    %v6857 = vshrl.u32 %v6856, 7
    %v6858 = vsub.s32 %v6823, %v6857
    %v6859 = vrot.slane %v6770, %v6858
    %v6860 = vlaneseq
    %v6861 = vshrl.u32 %v6860, 7
    %v6862 = vsub.s32 %v6828, %v6861
    %v6863 = vrot.slane %v6773, %v6862
    %v6864 = vsel %vm6833, %v6863, %v6859
    %v6865 = vlaneseq
    %v6866 = vshrl.u32 %v6865, 7
    %v6867 = vsub.s32 %v6835, %v6866
    %v6868 = vrot.slane %v6776, %v6867
    %v6869 = vsel %vm6840, %v6868, %v6864
    %v6870 = vlaneseq
    %v6871 = vshrl.u32 %v6870, 7
    %v6872 = vsub.s32 %v6823, %v6871
    %v6873 = vrot.slane %v6779, %v6872
    %v6874 = vlaneseq
    %v6875 = vshrl.u32 %v6874, 7
    %v6876 = vsub.s32 %v6828, %v6875
    %v6877 = vrot.slane %v6782, %v6876
    %v6878 = vsel %vm6833, %v6877, %v6873
    %v6879 = vlaneseq
    %v6880 = vshrl.u32 %v6879, 7
    %v6881 = vsub.s32 %v6835, %v6880
    %v6882 = vrot.slane %v6785, %v6881
    %v6883 = vsel %vm6840, %v6882, %v6878
    %v6884 = vlaneseq
    %v6885 = vshrl.u32 %v6884, 7
    %v6886 = vsub.s32 %v6823, %v6885
    %v6887 = vrot.slane %v6788, %v6886
    %v6888 = vlaneseq
    %v6889 = vshrl.u32 %v6888, 7
    %v6890 = vsub.s32 %v6828, %v6889
    %v6891 = vrot.slane %v6791, %v6890
    %v6892 = vsel %vm6833, %v6891, %v6887
    %v6893 = vlaneseq
    %v6894 = vshrl.u32 %v6893, 7
    %v6895 = vsub.s32 %v6835, %v6894
    %v6896 = vrot.slane %v6794, %v6895
    %v6897 = vsel %vm6840, %v6896, %v6892
    %v6898 = vlaneseq
    %v6899 = vshrl.u32 %v6898, 7
    %v6900 = vsub.s32 %v6823, %v6899
    %v6901 = vrot.slane %v6797, %v6900
    %v6902 = vlaneseq
    %v6903 = vshrl.u32 %v6902, 7
    %v6904 = vsub.s32 %v6828, %v6903
    %v6905 = vrot.slane %v6800, %v6904
    %v6906 = vsel %vm6833, %v6905, %v6901
    %v6907 = vlaneseq
    %v6908 = vshrl.u32 %v6907, 7
    %v6909 = vsub.s32 %v6835, %v6908
    %v6910 = vrot.slane %v6803, %v6909
    %v6911 = vsel %vm6840, %v6910, %v6906
    %vm6912 = vcmask 1041409
    %v6913 = vsel %vm6912, %v6855, %v6841
    %vm6914 = vcmask 1042434
    %v6915 = vsel %vm6914, %v6869, %v6913
    %vm6916 = vcmask 1043459
    %v6917 = vsel %vm6916, %v6883, %v6915
    %vm6918 = vcmask 1044484
    %v6919 = vsel %vm6918, %v6897, %v6917
    %vm6920 = vcmask 1045509
    %v6921 = vsel %vm6920, %v6911, %v6919
    %vm6923 = vcmask 185344
    %v6924 = vsel %vm6923, %v6921, 0.0
    %6925 = vadd.xlane.f32.xlu0 %v6924
    %v6926 = vpop.xlane.xlu0 %6925
    %v6927 = vmul.f32 %v6926, 0.0019762847
    %v6929 = vlaneseq
    %v6930 = vshrl.u32 %v6929, 7
    %v6931 = vsub.s32 %v6823, %v6930
    %v6932 = vrot.slane %v6927, %v6931
    %vm6934 = vcmask 40960
    %6935 = vst.msk [vmem:[#allocation2] sm:$0x1] %vm6934, %v6932
    // Predicated region
    $region14: #{tpu_custom_call.1} parent=1 // pred_check
      _
    $region15: #{tpu_custom_call.1} parent=1 // pred_check_branch
      %6937 = sbr.rel (0) target = $region17
    $region16: #{tpu_custom_call.1} parent=1 // pred_region
      %s6939 = ssub.s32 16, 16
      %6940 = vsyncadd [#allocation3], %s6939
      %s6942 = sshll.u32 [#allocation2], 4
      %s6943 = int_to_ptr.vmem [resolvable:$true] %s6942
      %6945 = dma.vmem_to_hbm [thread:$0]  %s6943, 16, %s3, [#allocation3]
    $region17: #{tpu_custom_call.1} parent=1 // pred_fallthru
      _
    // Predicated region
    $region18: #{tpu_custom_call.1} parent=1 // pred_check
      _
    $region19: #{tpu_custom_call.1} parent=1 // pred_check_branch
      %6947 = sbr.rel (0) target = $region21
    $region20: #{tpu_custom_call.1} parent=1 // pred_region
      %6948 = dma.done [#allocation3], 16
    $region21: #{tpu_custom_call.1} parent=1 // pred_fallthru
      _
    %6949 = vsyncpa [#allocation3], 1

</llo_original>
